<compile_context>
chip_gen: v7x
topology: tpu7x:2x2x1
jax: 0.10.0
libtpu: 0.0.40
codegen_flags: <defaults>
</compile_context>

<pallas_src>
import functools

import jax
import jax.numpy as jnp
from jax.experimental import pallas as pl
from jax.experimental.pallas import tpu as pltpu


def _round_up(x, m):
    return ((x + m - 1) // m) * m


def _pick_tk(K):
    if K <= 1024:
        return K
    for cand in (1024, 512, 256, 128):
        if K % cand == 0:
            return cand
    return K


# --------------------------------------------------------------------------- #
# Phase 1: conv-as-matmul (bf16 -> f32 acc) + per-tile BN partial sums         #
# --------------------------------------------------------------------------- #
def _matmul_stats_kernel(x_ref, w_ref, y_ref, part_ref):
    k = pl.program_id(1)

    @pl.when(k == 0)
    def _():
        y_ref[...] = jnp.zeros_like(y_ref)

    # bf16 operands, f32 accumulation on the MXU; accumulate directly into the
    # resident output block (its index_map ignores k).
    y_ref[...] += jnp.dot(x_ref[...], w_ref[...],
                          preferred_element_type=jnp.float32)

    @pl.when(k == pl.num_programs(1) - 1)
    def _():
        y = y_ref[...]
        s = jnp.sum(y, axis=0, keepdims=True)          # (1, Cp) channel sum
        sq = jnp.sum(y * y, axis=0, keepdims=True)     # (1, Cp) channel sumsq
        row = jax.lax.broadcasted_iota(jnp.int32, part_ref.shape, 0)
        part_ref[...] = jnp.where(row == 0, s, jnp.where(row == 1, sq, 0.0))


def conv_matmul_stats(patches, w_mat, tm, tk):
    """patches: (Mp, K) bf16, w_mat: (K, Cp) bf16 -> (y (Mp,Cp) f32, partials)."""
    Mp, K = patches.shape
    K2, Cp = w_mat.shape
    assert K == K2 and Mp % tm == 0 and K % tk == 0
    num_m, num_k = Mp // tm, K // tk
    return pl.pallas_call(
        _matmul_stats_kernel,
        out_shape=(jax.ShapeDtypeStruct((Mp, Cp), jnp.float32),
                   jax.ShapeDtypeStruct((num_m * 8, Cp), jnp.float32)),
        grid_spec=pltpu.PrefetchScalarGridSpec(
            num_scalar_prefetch=0,
            grid=(num_m, num_k),
            in_specs=[
                pl.BlockSpec((tm, tk), lambda i, k: (i, k)),   # patches
                pl.BlockSpec((tk, Cp), lambda i, k: (k, 0)),   # weights
            ],
            out_specs=(
                pl.BlockSpec((tm, Cp), lambda i, k: (i, 0)),   # conv output
                pl.BlockSpec((8, Cp), lambda i, k: (i, 0)),    # sum / sumsq
            ),
        ),
        compiler_params=pltpu.CompilerParams(
            dimension_semantics=("parallel", "arbitrary")),
    )(patches, w_mat)


# --------------------------------------------------------------------------- #
# Phase 3: BatchNorm normalize + activation                                    #
# --------------------------------------------------------------------------- #
def _bn_act_kernel(y_ref, scale_ref, shift_ref, o_ref, *, act):
    z = y_ref[...] * scale_ref[...] + shift_ref[...]
    if act == "leaky":
        z = jnp.where(z >= 0.0, z, 0.2 * z)     # LeakyReLU(0.2)
    else:
        z = jnp.tanh(z)                         # Tanh
    o_ref[...] = z.astype(o_ref.dtype)


def bn_act(y, scale, shift, act, tm):
    Mp, Cp = y.shape
    kern = functools.partial(_bn_act_kernel, act=act)
    return pl.pallas_call(
        kern,
        out_shape=jax.ShapeDtypeStruct((Mp, Cp), jnp.float32),
        grid_spec=pltpu.PrefetchScalarGridSpec(
            num_scalar_prefetch=0,
            grid=(Mp // tm,),
            in_specs=[
                pl.BlockSpec((tm, Cp), lambda i: (i, 0)),
                pl.BlockSpec((1, Cp), lambda i: (0, 0)),
                pl.BlockSpec((1, Cp), lambda i: (0, 0)),
            ],
            out_specs=pl.BlockSpec((tm, Cp), lambda i: (i, 0)),
        ),
        compiler_params=pltpu.CompilerParams(
            dimension_semantics=("parallel",)),
    )(y, scale, shift)


# --------------------------------------------------------------------------- #
# JAX glue: im2col patch extraction + layout plumbing                          #
# --------------------------------------------------------------------------- #
def im2col(x_nhwc, kh, kw, stride, pad):
    # TODO(synk): fold patch extraction into the matmul kernel (grid over the
    # 16 (kh,kw) taps with strided in-kernel loads) to avoid materializing the
    # duplicated im2col slab in HBM; currently it stays fused inside one jit.
    N, H, W, C = x_nhwc.shape
    if pad > 0:
        x_nhwc = jnp.pad(x_nhwc, ((0, 0), (pad, pad), (pad, pad), (0, 0)))
    Ho = (H + 2 * pad - kh) // stride + 1
    Wo = (W + 2 * pad - kw) // stride + 1
    cols = []
    for i in range(kh):
        for j in range(kw):
            cols.append(x_nhwc[:, i:i + (Ho - 1) * stride + 1:stride,
                               j:j + (Wo - 1) * stride + 1:stride, :])
    p = jnp.stack(cols, axis=3)                   # (N, Ho, Wo, kh*kw, C)
    return p.reshape(N * Ho * Wo, kh * kw * C), Ho, Wo


def dcgan_layer(x_nhwc, w, b, gamma, beta, stride, pad, act):
    """One dcgan_conv block (or c5): Conv2d(4x4) + BatchNorm2d + activation."""
    del b  # BatchNorm's mean subtraction exactly cancels the conv bias.
    cout, cin, kh, kw = w.shape
    patches, Ho, Wo = im2col(x_nhwc, kh, kw, stride, pad)   # (M, K) f32
    M, K = patches.shape
    Cp = _round_up(cout, 128)                 # lane-dense output channels
    tm = min(256, _round_up(M, 8))            # M tile (parallel grid axis)
    Mp = _round_up(M, tm)
    tk = _pick_tk(K)

    patches_p = jnp.pad(patches, ((0, Mp - M), (0, 0))).astype(jnp.bfloat16)
    w_mat = jnp.transpose(w, (2, 3, 1, 0)).reshape(K, cout)
    w_p = jnp.pad(w_mat, ((0, 0), (0, Cp - cout))).astype(jnp.bfloat16)

    y, partials = conv_matmul_stats(patches_p, w_p, tm, tk)

    # Tiny cross-tile reduction + scale/shift prep (Cp-sized, plain JAX).
    parts = partials.reshape(Mp // tm, 8, Cp)
    total = jnp.sum(parts[:, 0, :], axis=0)
    total_sq = jnp.sum(parts[:, 1, :], axis=0)
    mean = total / M                                        # padded rows are 0
    var = jnp.maximum(total_sq / M - mean * mean, 0.0)      # biased variance
    g = jnp.pad(gamma, (0, Cp - cout))
    be = jnp.pad(beta, (0, Cp - cout))
    scale = g * jax.lax.rsqrt(var + 1e-5)
    shift = be - mean * scale

    out = bn_act(y, scale.reshape(1, Cp), shift.reshape(1, Cp), act, tm)
    out = out[:M, :cout]
    N = x_nhwc.shape[0]
    return out.reshape(N, Ho, Wo, cout)


def encoder_forward(x_nchw, params, dim):
    x = jnp.transpose(x_nchw, (0, 2, 3, 1))       # NCHW -> NHWC
    h1 = dcgan_layer(x,  *params["c1"], stride=2, pad=1, act="leaky")
    h2 = dcgan_layer(h1, *params["c2"], stride=2, pad=1, act="leaky")
    h3 = dcgan_layer(h2, *params["c3"], stride=2, pad=1, act="leaky")
    h4 = dcgan_layer(h3, *params["c4"], stride=2, pad=1, act="leaky")
    h5 = dcgan_layer(h4, *params["c5"], stride=1, pad=0, act="tanh")   # (N,1,1,dim)
    N = x.shape[0]
    h5_flat = h5.reshape(N, dim)                  # == h5.view(-1, dim)
    to_nchw = lambda h: jnp.transpose(h, (0, 3, 1, 2))
    return h5_flat, [to_nchw(h1), to_nchw(h2), to_nchw(h3), to_nchw(h4)]


# --------------------------------------------------------------------------- #
# Deterministic parameter init (shapes from encoder.__init__)                  #
# --------------------------------------------------------------------------- #
def init_params(key, nc, nf, dim):
    def conv_block(k, cin, cout):
        k1, k2 = jax.random.split(k)
        fan_in = cin * 4 * 4
        w = jax.random.normal(k1, (cout, cin, 4, 4), jnp.float32) / jnp.sqrt(fan_in)
        b = 0.01 * jax.random.normal(k2, (cout,), jnp.float32)   # unused (BN cancels it)
        gamma = jnp.ones((cout,), jnp.float32)    # BatchNorm default affine init
        beta = jnp.zeros((cout,), jnp.float32)
        return (w, b, gamma, beta)

    keys = jax.random.split(key, 5)
    chans = [(nc, nf), (nf, 2 * nf), (2 * nf, 4 * nf), (4 * nf, 8 * nf), (8 * nf, dim)]
    names = ["c1", "c2", "c3", "c4", "c5"]
    return {n: conv_block(k, ci, co) for n, k, (ci, co) in zip(names, keys, chans)}


if __name__ == "__main__":
    key = jax.random.PRNGKey(0)
    kx, kp = jax.random.split(key)

    # Small but shape-consistent config: 64x64 input is required so that
    # c5 (4x4 conv, stride 1, no pad) reduces the 4x4 map to 1x1.
    N, nc, nf, dim = 2, 1, 8, 16
    x = jax.random.normal(kx, (N, nc, 64, 64), jnp.float32)   # PyTorch NCHW input
    params = init_params(kp, nc, nf, dim)

    fwd = jax.jit(functools.partial(encoder_forward, dim=dim))
    h5, feats = fwd(x, params)
    jax.block_until_ready(h5)
    for f in feats:
        jax.block_until_ready(f)

    assert h5.shape == (N, dim)
    assert feats[0].shape == (N, nf, 32, 32)
    assert feats[1].shape == (N, 2 * nf, 16, 16)
    assert feats[2].shape == (N, 4 * nf, 8, 8)
    assert feats[3].shape == (N, 8 * nf, 4, 4)
    assert bool(jnp.all(jnp.isfinite(h5)))

    print("KERNEL_OK")
</pallas_src>

<mosaic_0001>
module attributes {stable_mosaic.version = 11 : i64} {
  func.func @_matmul_stats_kernel(%arg0: i32, %arg1: i32, %arg2: memref<256x16xbf16, #tpu.memory_space<vmem>>, %arg3: memref<16x128xbf16, #tpu.memory_space<vmem>>, %arg4: memref<256x128xf32, #tpu.memory_space<vmem>>, %arg5: memref<8x128xf32, #tpu.memory_space<vmem>>) attributes {dimension_semantics = [#tpu.dimension_semantics<parallel>, #tpu.dimension_semantics<arbitrary>], iteration_bounds = array<i64: 8, 1>, scalar_prefetch = 0 : i64, scratch_operands = 0 : i64, tpu.core_type = #tpu.core_type<tc>, window_params = [{transform_indices = @transform_0, window_bounds = array<i64: 256, 16>}, {transform_indices = @transform_1, window_bounds = array<i64: 16, 128>}, {transform_indices = @transform_2, window_bounds = array<i64: 256, 128>}, {transform_indices = @transform_3, window_bounds = array<i64: 8, 128>}]} {
    %c0_i32 = arith.constant 0 : i32
    %0 = arith.cmpi eq, %arg1, %c0_i32 : i32
    %1 = arith.extui %0 : i1 to i32
    %c0_i32_0 = arith.constant 0 : i32
    %2 = arith.cmpi ne, %1, %c0_i32_0 : i32
    scf.if %2 {
      %cst_10 = arith.constant 0.000000e+00 : f32
      %12 = vector.broadcast %cst_10 : f32 to vector<256x128xf32>
      %c0_11 = arith.constant 0 : index
      %c0_12 = arith.constant 0 : index
      %13 = vector.load %arg4[%c0_11, %c0_12] : memref<256x128xf32, #tpu.memory_space<vmem>>, vector<256x128xf32>
      tpu.vector_store %arg4[%c0_11, %c0_12], %12 {strides = array<i32>} : memref<256x128xf32, #tpu.memory_space<vmem>>, vector<256x128xf32>,
    } else {
    }
    %c0 = arith.constant 0 : index
    %c0_1 = arith.constant 0 : index
    %3 = vector.load %arg4[%c0, %c0_1] : memref<256x128xf32, #tpu.memory_space<vmem>>, vector<256x128xf32>
    %c0_2 = arith.constant 0 : index
    %c0_3 = arith.constant 0 : index
    %4 = vector.load %arg2[%c0_2, %c0_3] : memref<256x16xbf16, #tpu.memory_space<vmem>>, vector<256x16xbf16>
    %c0_4 = arith.constant 0 : index
    %c0_5 = arith.constant 0 : index
    %5 = vector.load %arg3[%c0_4, %c0_5] : memref<16x128xbf16, #tpu.memory_space<vmem>>, vector<16x128xbf16>
    %cst = arith.constant dense<0.000000e+00> : vector<256x128xf32>
    %6 = tpu.matmul %4, %5, %cst {dimension_numbers = #tpu.dot_dimension_numbers<[1], [0], [0], [1], [0, 0, 1, 1], [], []>} : vector<256x16xbf16>, vector<16x128xbf16>, vector<256x128xf32> -> vector<256x128xf32>
    %7 = arith.addf %3, %6 : vector<256x128xf32>
    %c0_6 = arith.constant 0 : index
    %c0_7 = arith.constant 0 : index
    %8 = vector.load %arg4[%c0_6, %c0_7] : memref<256x128xf32, #tpu.memory_space<vmem>>, vector<256x128xf32>
    tpu.vector_store %arg4[%c0_6, %c0_7], %7 {strides = array<i32>} : memref<256x128xf32, #tpu.memory_space<vmem>>, vector<256x128xf32>,
    %c0_i32_8 = arith.constant 0 : i32
    %9 = arith.cmpi eq, %arg1, %c0_i32_8 : i32
    %10 = arith.extui %9 : i1 to i32
    %c0_i32_9 = arith.constant 0 : i32
    %11 = arith.cmpi ne, %10, %c0_i32_9 : i32
    scf.if %11 {
      %c0_10 = arith.constant 0 : index
      %c0_11 = arith.constant 0 : index
      %12 = vector.load %arg4[%c0_10, %c0_11] : memref<256x128xf32, #tpu.memory_space<vmem>>, vector<256x128xf32>
      %cst_12 = arith.constant dense<0.000000e+00> : vector<128xf32>
      %13 = vector.multi_reduction <add>, %12, %cst_12 [0] : vector<256x128xf32> to vector<128xf32>
      %14 = vector.shape_cast %13 : vector<128xf32> to vector<1x128xf32>
      %15 = arith.mulf %12, %12 : vector<256x128xf32>
      %cst_13 = arith.constant dense<0.000000e+00> : vector<128xf32>
      %16 = vector.multi_reduction <add>, %15, %cst_13 [0] : vector<256x128xf32> to vector<128xf32>
      %17 = vector.shape_cast %16 : vector<128xf32> to vector<1x128xf32>
      %18 = tpu.iota {dimensions = array<i32: 0>} : vector<8x128xi32>
      %c0_i32_14 = arith.constant 0 : i32
      %19 = vector.broadcast %c0_i32_14 : i32 to vector<8x128xi32>
      %20 = arith.cmpi eq, %18, %19 : vector<8x128xi32>
      %c1_i32 = arith.constant 1 : i32
      %21 = vector.broadcast %c1_i32 : i32 to vector<8x128xi32>
      %22 = arith.cmpi eq, %18, %21 : vector<8x128xi32>
      %cst_15 = arith.constant 0.000000e+00 : f32
      %23 = vector.shape_cast %17 : vector<1x128xf32> to vector<1x128xf32>
      %24 = vector.broadcast %23 : vector<1x128xf32> to vector<8x128xf32>
      %25 = vector.broadcast %cst_15 : f32 to vector<8x128xf32>
      %26 = arith.select %22, %24, %25 : vector<8x128xi1>, vector<8x128xf32>
      %27 = vector.shape_cast %14 : vector<1x128xf32> to vector<1x128xf32>
      %28 = vector.broadcast %27 : vector<1x128xf32> to vector<8x128xf32>
      %29 = arith.select %20, %28, %26 : vector<8x128xi1>, vector<8x128xf32>
      %c0_16 = arith.constant 0 : index
      %c0_17 = arith.constant 0 : index
      %30 = vector.load %arg5[%c0_16, %c0_17] : memref<8x128xf32, #tpu.memory_space<vmem>>, vector<8x128xf32>
      tpu.vector_store %arg5[%c0_16, %c0_17], %29 {strides = array<i32>} : memref<8x128xf32, #tpu.memory_space<vmem>>, vector<8x128xf32>,
    } else {
    }
    return
  }
  func.func @transform_0(%arg0: i32, %arg1: i32) -> (i32, i32) {
    %c0_i32 = arith.constant 0 : i32
    return %arg0, %arg1 : i32, i32
  }
  func.func @transform_1(%arg0: i32, %arg1: i32) -> (i32, i32) {
    %c0_i32 = arith.constant 0 : i32
    %c0_i32_0 = arith.constant 0 : i32
    return %arg1, %c0_i32 : i32, i32
  }
  func.func @transform_2(%arg0: i32, %arg1: i32) -> (i32, i32) {
    %c0_i32 = arith.constant 0 : i32
    %c0_i32_0 = arith.constant 0 : i32
    return %arg0, %c0_i32 : i32, i32
  }
  func.func @transform_3(%arg0: i32, %arg1: i32) -> (i32, i32) {
    %c0_i32 = arith.constant 0 : i32
    %c0_i32_0 = arith.constant 0 : i32
    return %arg0, %c0_i32 : i32, i32
  }
}

module attributes {stable_mosaic.version = 11 : i64} {
  func.func @_bn_act_kernel(%arg0: i32, %arg1: memref<256x128xf32, #tpu.memory_space<vmem>>, %arg2: memref<1x128xf32, #tpu.memory_space<vmem>>, %arg3: memref<1x128xf32, #tpu.memory_space<vmem>>, %arg4: memref<256x128xf32, #tpu.memory_space<vmem>>) attributes {dimension_semantics = [#tpu.dimension_semantics<parallel>], iteration_bounds = array<i64: 8>, scalar_prefetch = 0 : i64, scratch_operands = 0 : i64, tpu.core_type = #tpu.core_type<tc>, window_params = [{transform_indices = @transform_0, window_bounds = array<i64: 256, 128>}, {pipeline_mode = #tpu.pipeline_mode<synchronous>, transform_indices = @transform_1, window_bounds = array<i64: 1, 128>}, {pipeline_mode = #tpu.pipeline_mode<synchronous>, transform_indices = @transform_2, window_bounds = array<i64: 1, 128>}, {transform_indices = @transform_3, window_bounds = array<i64: 256, 128>}]} {
    %c0 = arith.constant 0 : index
    %c0_0 = arith.constant 0 : index
    %0 = vector.load %arg1[%c0, %c0_0] : memref<256x128xf32, #tpu.memory_space<vmem>>, vector<256x128xf32>
    %c0_1 = arith.constant 0 : index
    %c0_2 = arith.constant 0 : index
    %1 = vector.load %arg2[%c0_1, %c0_2] : memref<1x128xf32, #tpu.memory_space<vmem>>, vector<1x128xf32>
    %2 = vector.broadcast %1 : vector<1x128xf32> to vector<256x128xf32>
    %3 = arith.mulf %0, %2 : vector<256x128xf32>
    %c0_3 = arith.constant 0 : index
    %c0_4 = arith.constant 0 : index
    %4 = vector.load %arg3[%c0_3, %c0_4] : memref<1x128xf32, #tpu.memory_space<vmem>>, vector<1x128xf32>
    %5 = vector.broadcast %4 : vector<1x128xf32> to vector<256x128xf32>
    %6 = arith.addf %3, %5 : vector<256x128xf32>
    %cst = arith.constant 0.000000e+00 : f32
    %7 = vector.broadcast %cst : f32 to vector<256x128xf32>
    %8 = arith.cmpf oge, %6, %7 : vector<256x128xf32>
    %cst_5 = arith.constant 2.000000e-01 : f32
    %9 = vector.broadcast %cst_5 : f32 to vector<256x128xf32>
    %10 = arith.mulf %9, %6 : vector<256x128xf32>
    %11 = arith.select %8, %6, %10 : vector<256x128xi1>, vector<256x128xf32>
    %c0_6 = arith.constant 0 : index
    %c0_7 = arith.constant 0 : index
    %12 = vector.load %arg4[%c0_6, %c0_7] : memref<256x128xf32, #tpu.memory_space<vmem>>, vector<256x128xf32>
    tpu.vector_store %arg4[%c0_6, %c0_7], %11 {strides = array<i32>} : memref<256x128xf32, #tpu.memory_space<vmem>>, vector<256x128xf32>,
    return
  }
  func.func @transform_0(%arg0: i32) -> (i32, i32) {
    %c0_i32 = arith.constant 0 : i32
    %c0_i32_0 = arith.constant 0 : i32
    return %arg0, %c0_i32 : i32, i32
  }
  func.func @transform_1(%arg0: i32) -> (i32, i32) {
    %c0_i32 = arith.constant 0 : i32
    %c0_i32_0 = arith.constant 0 : i32
    %c0_i32_1 = arith.constant 0 : i32
    return %c0_i32, %c0_i32_0 : i32, i32
  }
  func.func @transform_2(%arg0: i32) -> (i32, i32) {
    %c0_i32 = arith.constant 0 : i32
    %c0_i32_0 = arith.constant 0 : i32
    %c0_i32_1 = arith.constant 0 : i32
    return %c0_i32, %c0_i32_0 : i32, i32
  }
  func.func @transform_3(%arg0: i32) -> (i32, i32) {
    %c0_i32 = arith.constant 0 : i32
    %c0_i32_0 = arith.constant 0 : i32
    return %arg0, %c0_i32 : i32, i32
  }
}

module attributes {stable_mosaic.version = 11 : i64} {
  func.func @_matmul_stats_kernel(%arg0: i32, %arg1: i32, %arg2: memref<256x128xbf16, #tpu.memory_space<vmem>>, %arg3: memref<128x128xbf16, #tpu.memory_space<vmem>>, %arg4: memref<256x128xf32, #tpu.memory_space<vmem>>, %arg5: memref<8x128xf32, #tpu.memory_space<vmem>>) attributes {dimension_semantics = [#tpu.dimension_semantics<parallel>, #tpu.dimension_semantics<arbitrary>], iteration_bounds = array<i64: 2, 1>, scalar_prefetch = 0 : i64, scratch_operands = 0 : i64, tpu.core_type = #tpu.core_type<tc>, window_params = [{transform_indices = @transform_0, window_bounds = array<i64: 256, 128>}, {transform_indices = @transform_1, window_bounds = array<i64: 128, 128>}, {transform_indices = @transform_2, window_bounds = array<i64: 256, 128>}, {transform_indices = @transform_3, window_bounds = array<i64: 8, 128>}]} {
    %c0_i32 = arith.constant 0 : i32
    %0 = arith.cmpi eq, %arg1, %c0_i32 : i32
    %1 = arith.extui %0 : i1 to i32
    %c0_i32_0 = arith.constant 0 : i32
    %2 = arith.cmpi ne, %1, %c0_i32_0 : i32
    scf.if %2 {
      %cst_10 = arith.constant 0.000000e+00 : f32
      %12 = vector.broadcast %cst_10 : f32 to vector<256x128xf32>
      %c0_11 = arith.constant 0 : index
      %c0_12 = arith.constant 0 : index
      %13 = vector.load %arg4[%c0_11, %c0_12] : memref<256x128xf32, #tpu.memory_space<vmem>>, vector<256x128xf32>
      tpu.vector_store %arg4[%c0_11, %c0_12], %12 {strides = array<i32>} : memref<256x128xf32, #tpu.memory_space<vmem>>, vector<256x128xf32>,
    } else {
    }
    %c0 = arith.constant 0 : index
    %c0_1 = arith.constant 0 : index
    %3 = vector.load %arg4[%c0, %c0_1] : memref<256x128xf32, #tpu.memory_space<vmem>>, vector<256x128xf32>
    %c0_2 = arith.constant 0 : index
    %c0_3 = arith.constant 0 : index
    %4 = vector.load %arg2[%c0_2, %c0_3] : memref<256x128xbf16, #tpu.memory_space<vmem>>, vector<256x128xbf16>
    %c0_4 = arith.constant 0 : index
    %c0_5 = arith.constant 0 : index
    %5 = vector.load %arg3[%c0_4, %c0_5] : memref<128x128xbf16, #tpu.memory_space<vmem>>, vector<128x128xbf16>
    %cst = arith.constant dense<0.000000e+00> : vector<256x128xf32>
    %6 = tpu.matmul %4, %5, %cst {dimension_numbers = #tpu.dot_dimension_numbers<[1], [0], [0], [1], [0, 0, 1, 1], [], []>} : vector<256x128xbf16>, vector<128x128xbf16>, vector<256x128xf32> -> vector<256x128xf32>
    %7 = arith.addf %3, %6 : vector<256x128xf32>
    %c0_6 = arith.constant 0 : index
    %c0_7 = arith.constant 0 : index
    %8 = vector.load %arg4[%c0_6, %c0_7] : memref<256x128xf32, #tpu.memory_space<vmem>>, vector<256x128xf32>
    tpu.vector_store %arg4[%c0_6, %c0_7], %7 {strides = array<i32>} : memref<256x128xf32, #tpu.memory_space<vmem>>, vector<256x128xf32>,
    %c0_i32_8 = arith.constant 0 : i32
    %9 = arith.cmpi eq, %arg1, %c0_i32_8 : i32
    %10 = arith.extui %9 : i1 to i32
    %c0_i32_9 = arith.constant 0 : i32
    %11 = arith.cmpi ne, %10, %c0_i32_9 : i32
    scf.if %11 {
      %c0_10 = arith.constant 0 : index
      %c0_11 = arith.constant 0 : index
      %12 = vector.load %arg4[%c0_10, %c0_11] : memref<256x128xf32, #tpu.memory_space<vmem>>, vector<256x128xf32>
      %cst_12 = arith.constant dense<0.000000e+00> : vector<128xf32>
      %13 = vector.multi_reduction <add>, %12, %cst_12 [0] : vector<256x128xf32> to vector<128xf32>
      %14 = vector.shape_cast %13 : vector<128xf32> to vector<1x128xf32>
      %15 = arith.mulf %12, %12 : vector<256x128xf32>
      %cst_13 = arith.constant dense<0.000000e+00> : vector<128xf32>
      %16 = vector.multi_reduction <add>, %15, %cst_13 [0] : vector<256x128xf32> to vector<128xf32>
      %17 = vector.shape_cast %16 : vector<128xf32> to vector<1x128xf32>
      %18 = tpu.iota {dimensions = array<i32: 0>} : vector<8x128xi32>
      %c0_i32_14 = arith.constant 0 : i32
      %19 = vector.broadcast %c0_i32_14 : i32 to vector<8x128xi32>
      %20 = arith.cmpi eq, %18, %19 : vector<8x128xi32>
      %c1_i32 = arith.constant 1 : i32
      %21 = vector.broadcast %c1_i32 : i32 to vector<8x128xi32>
      %22 = arith.cmpi eq, %18, %21 : vector<8x128xi32>
      %cst_15 = arith.constant 0.000000e+00 : f32
      %23 = vector.shape_cast %17 : vector<1x128xf32> to vector<1x128xf32>
      %24 = vector.broadcast %23 : vector<1x128xf32> to vector<8x128xf32>
      %25 = vector.broadcast %cst_15 : f32 to vector<8x128xf32>
      %26 = arith.select %22, %24, %25 : vector<8x128xi1>, vector<8x128xf32>
      %27 = vector.shape_cast %14 : vector<1x128xf32> to vector<1x128xf32>
      %28 = vector.broadcast %27 : vector<1x128xf32> to vector<8x128xf32>
      %29 = arith.select %20, %28, %26 : vector<8x128xi1>, vector<8x128xf32>
      %c0_16 = arith.constant 0 : index
      %c0_17 = arith.constant 0 : index
      %30 = vector.load %arg5[%c0_16, %c0_17] : memref<8x128xf32, #tpu.memory_space<vmem>>, vector<8x128xf32>
      tpu.vector_store %arg5[%c0_16, %c0_17], %29 {strides = array<i32>} : memref<8x128xf32, #tpu.memory_space<vmem>>, vector<8x128xf32>,
    } else {
    }
    return
  }
  func.func @transform_0(%arg0: i32, %arg1: i32) -> (i32, i32) {
    %c0_i32 = arith.constant 0 : i32
    return %arg0, %arg1 : i32, i32
  }
  func.func @transform_1(%arg0: i32, %arg1: i32) -> (i32, i32) {
    %c0_i32 = arith.constant 0 : i32
    %c0_i32_0 = arith.constant 0 : i32
    return %arg1, %c0_i32 : i32, i32
  }
  func.func @transform_2(%arg0: i32, %arg1: i32) -> (i32, i32) {
    %c0_i32 = arith.constant 0 : i32
    %c0_i32_0 = arith.constant 0 : i32
    return %arg0, %c0_i32 : i32, i32
  }
  func.func @transform_3(%arg0: i32, %arg1: i32) -> (i32, i32) {
    %c0_i32 = arith.constant 0 : i32
    %c0_i32_0 = arith.constant 0 : i32
    return %arg0, %c0_i32 : i32, i32
  }
}

module attributes {stable_mosaic.version = 11 : i64} {
  func.func @_bn_act_kernel(%arg0: i32, %arg1: memref<256x128xf32, #tpu.memory_space<vmem>>, %arg2: memref<1x128xf32, #tpu.memory_space<vmem>>, %arg3: memref<1x128xf32, #tpu.memory_space<vmem>>, %arg4: memref<256x128xf32, #tpu.memory_space<vmem>>) attributes {dimension_semantics = [#tpu.dimension_semantics<parallel>], iteration_bounds = array<i64: 2>, scalar_prefetch = 0 : i64, scratch_operands = 0 : i64, tpu.core_type = #tpu.core_type<tc>, window_params = [{transform_indices = @transform_0, window_bounds = array<i64: 256, 128>}, {pipeline_mode = #tpu.pipeline_mode<synchronous>, transform_indices = @transform_1, window_bounds = array<i64: 1, 128>}, {pipeline_mode = #tpu.pipeline_mode<synchronous>, transform_indices = @transform_2, window_bounds = array<i64: 1, 128>}, {transform_indices = @transform_3, window_bounds = array<i64: 256, 128>}]} {
    %c0 = arith.constant 0 : index
    %c0_0 = arith.constant 0 : index
    %0 = vector.load %arg1[%c0, %c0_0] : memref<256x128xf32, #tpu.memory_space<vmem>>, vector<256x128xf32>
    %c0_1 = arith.constant 0 : index
    %c0_2 = arith.constant 0 : index
    %1 = vector.load %arg2[%c0_1, %c0_2] : memref<1x128xf32, #tpu.memory_space<vmem>>, vector<1x128xf32>
    %2 = vector.broadcast %1 : vector<1x128xf32> to vector<256x128xf32>
    %3 = arith.mulf %0, %2 : vector<256x128xf32>
    %c0_3 = arith.constant 0 : index
    %c0_4 = arith.constant 0 : index
    %4 = vector.load %arg3[%c0_3, %c0_4] : memref<1x128xf32, #tpu.memory_space<vmem>>, vector<1x128xf32>
    %5 = vector.broadcast %4 : vector<1x128xf32> to vector<256x128xf32>
    %6 = arith.addf %3, %5 : vector<256x128xf32>
    %cst = arith.constant 0.000000e+00 : f32
    %7 = vector.broadcast %cst : f32 to vector<256x128xf32>
    %8 = arith.cmpf oge, %6, %7 : vector<256x128xf32>
    %cst_5 = arith.constant 2.000000e-01 : f32
    %9 = vector.broadcast %cst_5 : f32 to vector<256x128xf32>
    %10 = arith.mulf %9, %6 : vector<256x128xf32>
    %11 = arith.select %8, %6, %10 : vector<256x128xi1>, vector<256x128xf32>
    %c0_6 = arith.constant 0 : index
    %c0_7 = arith.constant 0 : index
    %12 = vector.load %arg4[%c0_6, %c0_7] : memref<256x128xf32, #tpu.memory_space<vmem>>, vector<256x128xf32>
    tpu.vector_store %arg4[%c0_6, %c0_7], %11 {strides = array<i32>} : memref<256x128xf32, #tpu.memory_space<vmem>>, vector<256x128xf32>,
    return
  }
  func.func @transform_0(%arg0: i32) -> (i32, i32) {
    %c0_i32 = arith.constant 0 : i32
    %c0_i32_0 = arith.constant 0 : i32
    return %arg0, %c0_i32 : i32, i32
  }
  func.func @transform_1(%arg0: i32) -> (i32, i32) {
    %c0_i32 = arith.constant 0 : i32
    %c0_i32_0 = arith.constant 0 : i32
    %c0_i32_1 = arith.constant 0 : i32
    return %c0_i32, %c0_i32_0 : i32, i32
  }
  func.func @transform_2(%arg0: i32) -> (i32, i32) {
    %c0_i32 = arith.constant 0 : i32
    %c0_i32_0 = arith.constant 0 : i32
    %c0_i32_1 = arith.constant 0 : i32
    return %c0_i32, %c0_i32_0 : i32, i32
  }
  func.func @transform_3(%arg0: i32) -> (i32, i32) {
    %c0_i32 = arith.constant 0 : i32
    %c0_i32_0 = arith.constant 0 : i32
    return %arg0, %c0_i32 : i32, i32
  }
}

module attributes {stable_mosaic.version = 11 : i64} {
  func.func @_matmul_stats_kernel(%arg0: i32, %arg1: i32, %arg2: memref<128x256xbf16, #tpu.memory_space<vmem>>, %arg3: memref<256x128xbf16, #tpu.memory_space<vmem>>, %arg4: memref<128x128xf32, #tpu.memory_space<vmem>>, %arg5: memref<8x128xf32, #tpu.memory_space<vmem>>) attributes {dimension_semantics = [#tpu.dimension_semantics<parallel>, #tpu.dimension_semantics<arbitrary>], iteration_bounds = array<i64: 1, 1>, scalar_prefetch = 0 : i64, scratch_operands = 0 : i64, tpu.core_type = #tpu.core_type<tc>, window_params = [{transform_indices = @transform_0, window_bounds = array<i64: 128, 256>}, {transform_indices = @transform_1, window_bounds = array<i64: 256, 128>}, {transform_indices = @transform_2, window_bounds = array<i64: 128, 128>}, {transform_indices = @transform_3, window_bounds = array<i64: 8, 128>}]} {
    %c0_i32 = arith.constant 0 : i32
    %0 = arith.cmpi eq, %arg1, %c0_i32 : i32
    %1 = arith.extui %0 : i1 to i32
    %c0_i32_0 = arith.constant 0 : i32
    %2 = arith.cmpi ne, %1, %c0_i32_0 : i32
    scf.if %2 {
      %cst_10 = arith.constant 0.000000e+00 : f32
      %12 = vector.broadcast %cst_10 : f32 to vector<128x128xf32>
      %c0_11 = arith.constant 0 : index
      %c0_12 = arith.constant 0 : index
      %13 = vector.load %arg4[%c0_11, %c0_12] : memref<128x128xf32, #tpu.memory_space<vmem>>, vector<128x128xf32>
      tpu.vector_store %arg4[%c0_11, %c0_12], %12 {strides = array<i32>} : memref<128x128xf32, #tpu.memory_space<vmem>>, vector<128x128xf32>,
    } else {
    }
    %c0 = arith.constant 0 : index
    %c0_1 = arith.constant 0 : index
    %3 = vector.load %arg4[%c0, %c0_1] : memref<128x128xf32, #tpu.memory_space<vmem>>, vector<128x128xf32>
    %c0_2 = arith.constant 0 : index
    %c0_3 = arith.constant 0 : index
    %4 = vector.load %arg2[%c0_2, %c0_3] : memref<128x256xbf16, #tpu.memory_space<vmem>>, vector<128x256xbf16>
    %c0_4 = arith.constant 0 : index
    %c0_5 = arith.constant 0 : index
    %5 = vector.load %arg3[%c0_4, %c0_5] : memref<256x128xbf16, #tpu.memory_space<vmem>>, vector<256x128xbf16>
    %cst = arith.constant dense<0.000000e+00> : vector<128x128xf32>
    %6 = tpu.matmul %4, %5, %cst {dimension_numbers = #tpu.dot_dimension_numbers<[1], [0], [0], [1], [0, 0, 1, 1], [], []>} : vector<128x256xbf16>, vector<256x128xbf16>, vector<128x128xf32> -> vector<128x128xf32>
    %7 = arith.addf %3, %6 : vector<128x128xf32>
    %c0_6 = arith.constant 0 : index
    %c0_7 = arith.constant 0 : index
    %8 = vector.load %arg4[%c0_6, %c0_7] : memref<128x128xf32, #tpu.memory_space<vmem>>, vector<128x128xf32>
    tpu.vector_store %arg4[%c0_6, %c0_7], %7 {strides = array<i32>} : memref<128x128xf32, #tpu.memory_space<vmem>>, vector<128x128xf32>,
    %c0_i32_8 = arith.constant 0 : i32
    %9 = arith.cmpi eq, %arg1, %c0_i32_8 : i32
    %10 = arith.extui %9 : i1 to i32
    %c0_i32_9 = arith.constant 0 : i32
    %11 = arith.cmpi ne, %10, %c0_i32_9 : i32
    scf.if %11 {
      %c0_10 = arith.constant 0 : index
      %c0_11 = arith.constant 0 : index
      %12 = vector.load %arg4[%c0_10, %c0_11] : memref<128x128xf32, #tpu.memory_space<vmem>>, vector<128x128xf32>
      %cst_12 = arith.constant dense<0.000000e+00> : vector<128xf32>
      %13 = vector.multi_reduction <add>, %12, %cst_12 [0] : vector<128x128xf32> to vector<128xf32>
      %14 = vector.shape_cast %13 : vector<128xf32> to vector<1x128xf32>
      %15 = arith.mulf %12, %12 : vector<128x128xf32>
      %cst_13 = arith.constant dense<0.000000e+00> : vector<128xf32>
      %16 = vector.multi_reduction <add>, %15, %cst_13 [0] : vector<128x128xf32> to vector<128xf32>
      %17 = vector.shape_cast %16 : vector<128xf32> to vector<1x128xf32>
      %18 = tpu.iota {dimensions = array<i32: 0>} : vector<8x128xi32>
      %c0_i32_14 = arith.constant 0 : i32
      %19 = vector.broadcast %c0_i32_14 : i32 to vector<8x128xi32>
      %20 = arith.cmpi eq, %18, %19 : vector<8x128xi32>
      %c1_i32 = arith.constant 1 : i32
      %21 = vector.broadcast %c1_i32 : i32 to vector<8x128xi32>
      %22 = arith.cmpi eq, %18, %21 : vector<8x128xi32>
      %cst_15 = arith.constant 0.000000e+00 : f32
      %23 = vector.shape_cast %17 : vector<1x128xf32> to vector<1x128xf32>
      %24 = vector.broadcast %23 : vector<1x128xf32> to vector<8x128xf32>
      %25 = vector.broadcast %cst_15 : f32 to vector<8x128xf32>
      %26 = arith.select %22, %24, %25 : vector<8x128xi1>, vector<8x128xf32>
      %27 = vector.shape_cast %14 : vector<1x128xf32> to vector<1x128xf32>
      %28 = vector.broadcast %27 : vector<1x128xf32> to vector<8x128xf32>
      %29 = arith.select %20, %28, %26 : vector<8x128xi1>, vector<8x128xf32>
      %c0_16 = arith.constant 0 : index
      %c0_17 = arith.constant 0 : index
      %30 = vector.load %arg5[%c0_16, %c0_17] : memref<8x128xf32, #tpu.memory_space<vmem>>, vector<8x128xf32>
      tpu.vector_store %arg5[%c0_16, %c0_17], %29 {strides = array<i32>} : memref<8x128xf32, #tpu.memory_space<vmem>>, vector<8x128xf32>,
    } else {
    }
    return
  }
  func.func @transform_0(%arg0: i32, %arg1: i32) -> (i32, i32) {
    %c0_i32 = arith.constant 0 : i32
    return %arg0, %arg1 : i32, i32
  }
  func.func @transform_1(%arg0: i32, %arg1: i32) -> (i32, i32) {
    %c0_i32 = arith.constant 0 : i32
    %c0_i32_0 = arith.constant 0 : i32
    return %arg1, %c0_i32 : i32, i32
  }
  func.func @transform_2(%arg0: i32, %arg1: i32) -> (i32, i32) {
    %c0_i32 = arith.constant 0 : i32
    %c0_i32_0 = arith.constant 0 : i32
    return %arg0, %c0_i32 : i32, i32
  }
  func.func @transform_3(%arg0: i32, %arg1: i32) -> (i32, i32) {
    %c0_i32 = arith.constant 0 : i32
    %c0_i32_0 = arith.constant 0 : i32
    return %arg0, %c0_i32 : i32, i32
  }
}

module attributes {stable_mosaic.version = 11 : i64} {
  func.func @_bn_act_kernel(%arg0: i32, %arg1: memref<128x128xf32, #tpu.memory_space<vmem>>, %arg2: memref<1x128xf32, #tpu.memory_space<vmem>>, %arg3: memref<1x128xf32, #tpu.memory_space<vmem>>, %arg4: memref<128x128xf32, #tpu.memory_space<vmem>>) attributes {dimension_semantics = [#tpu.dimension_semantics<parallel>], iteration_bounds = array<i64: 1>, scalar_prefetch = 0 : i64, scratch_operands = 0 : i64, tpu.core_type = #tpu.core_type<tc>, window_params = [{transform_indices = @transform_0, window_bounds = array<i64: 128, 128>}, {pipeline_mode = #tpu.pipeline_mode<synchronous>, transform_indices = @transform_1, window_bounds = array<i64: 1, 128>}, {pipeline_mode = #tpu.pipeline_mode<synchronous>, transform_indices = @transform_2, window_bounds = array<i64: 1, 128>}, {transform_indices = @transform_3, window_bounds = array<i64: 128, 128>}]} {
    %c0 = arith.constant 0 : index
    %c0_0 = arith.constant 0 : index
    %0 = vector.load %arg1[%c0, %c0_0] : memref<128x128xf32, #tpu.memory_space<vmem>>, vector<128x128xf32>
    %c0_1 = arith.constant 0 : index
    %c0_2 = arith.constant 0 : index
    %1 = vector.load %arg2[%c0_1, %c0_2] : memref<1x128xf32, #tpu.memory_space<vmem>>, vector<1x128xf32>
    %2 = vector.broadcast %1 : vector<1x128xf32> to vector<128x128xf32>
    %3 = arith.mulf %0, %2 : vector<128x128xf32>
    %c0_3 = arith.constant 0 : index
    %c0_4 = arith.constant 0 : index
    %4 = vector.load %arg3[%c0_3, %c0_4] : memref<1x128xf32, #tpu.memory_space<vmem>>, vector<1x128xf32>
    %5 = vector.broadcast %4 : vector<1x128xf32> to vector<128x128xf32>
    %6 = arith.addf %3, %5 : vector<128x128xf32>
    %cst = arith.constant 0.000000e+00 : f32
    %7 = vector.broadcast %cst : f32 to vector<128x128xf32>
    %8 = arith.cmpf oge, %6, %7 : vector<128x128xf32>
    %cst_5 = arith.constant 2.000000e-01 : f32
    %9 = vector.broadcast %cst_5 : f32 to vector<128x128xf32>
    %10 = arith.mulf %9, %6 : vector<128x128xf32>
    %11 = arith.select %8, %6, %10 : vector<128x128xi1>, vector<128x128xf32>
    %c0_6 = arith.constant 0 : index
    %c0_7 = arith.constant 0 : index
    %12 = vector.load %arg4[%c0_6, %c0_7] : memref<128x128xf32, #tpu.memory_space<vmem>>, vector<128x128xf32>
    tpu.vector_store %arg4[%c0_6, %c0_7], %11 {strides = array<i32>} : memref<128x128xf32, #tpu.memory_space<vmem>>, vector<128x128xf32>,
    return
  }
  func.func @transform_0(%arg0: i32) -> (i32, i32) {
    %c0_i32 = arith.constant 0 : i32
    %c0_i32_0 = arith.constant 0 : i32
    return %arg0, %c0_i32 : i32, i32
  }
  func.func @transform_1(%arg0: i32) -> (i32, i32) {
    %c0_i32 = arith.constant 0 : i32
    %c0_i32_0 = arith.constant 0 : i32
    %c0_i32_1 = arith.constant 0 : i32
    return %c0_i32, %c0_i32_0 : i32, i32
  }
  func.func @transform_2(%arg0: i32) -> (i32, i32) {
    %c0_i32 = arith.constant 0 : i32
    %c0_i32_0 = arith.constant 0 : i32
    %c0_i32_1 = arith.constant 0 : i32
    return %c0_i32, %c0_i32_0 : i32, i32
  }
  func.func @transform_3(%arg0: i32) -> (i32, i32) {
    %c0_i32 = arith.constant 0 : i32
    %c0_i32_0 = arith.constant 0 : i32
    return %arg0, %c0_i32 : i32, i32
  }
}

module attributes {stable_mosaic.version = 11 : i64} {
  func.func @_matmul_stats_kernel(%arg0: i32, %arg1: i32, %arg2: memref<32x512xbf16, #tpu.memory_space<vmem>>, %arg3: memref<512x128xbf16, #tpu.memory_space<vmem>>, %arg4: memref<32x128xf32, #tpu.memory_space<vmem>>, %arg5: memref<8x128xf32, #tpu.memory_space<vmem>>) attributes {dimension_semantics = [#tpu.dimension_semantics<parallel>, #tpu.dimension_semantics<arbitrary>], iteration_bounds = array<i64: 1, 1>, scalar_prefetch = 0 : i64, scratch_operands = 0 : i64, tpu.core_type = #tpu.core_type<tc>, window_params = [{transform_indices = @transform_0, window_bounds = array<i64: 32, 512>}, {transform_indices = @transform_1, window_bounds = array<i64: 512, 128>}, {transform_indices = @transform_2, window_bounds = array<i64: 32, 128>}, {transform_indices = @transform_3, window_bounds = array<i64: 8, 128>}]} {
    %c0_i32 = arith.constant 0 : i32
    %0 = arith.cmpi eq, %arg1, %c0_i32 : i32
    %1 = arith.extui %0 : i1 to i32
    %c0_i32_0 = arith.constant 0 : i32
    %2 = arith.cmpi ne, %1, %c0_i32_0 : i32
    scf.if %2 {
      %cst_10 = arith.constant 0.000000e+00 : f32
      %12 = vector.broadcast %cst_10 : f32 to vector<32x128xf32>
      %c0_11 = arith.constant 0 : index
      %c0_12 = arith.constant 0 : index
      %13 = vector.load %arg4[%c0_11, %c0_12] : memref<32x128xf32, #tpu.memory_space<vmem>>, vector<32x128xf32>
      tpu.vector_store %arg4[%c0_11, %c0_12], %12 {strides = array<i32>} : memref<32x128xf32, #tpu.memory_space<vmem>>, vector<32x128xf32>,
    } else {
    }
    %c0 = arith.constant 0 : index
    %c0_1 = arith.constant 0 : index
    %3 = vector.load %arg4[%c0, %c0_1] : memref<32x128xf32, #tpu.memory_space<vmem>>, vector<32x128xf32>
    %c0_2 = arith.constant 0 : index
    %c0_3 = arith.constant 0 : index
    %4 = vector.load %arg2[%c0_2, %c0_3] : memref<32x512xbf16, #tpu.memory_space<vmem>>, vector<32x512xbf16>
    %c0_4 = arith.constant 0 : index
    %c0_5 = arith.constant 0 : index
    %5 = vector.load %arg3[%c0_4, %c0_5] : memref<512x128xbf16, #tpu.memory_space<vmem>>, vector<512x128xbf16>
    %cst = arith.constant dense<0.000000e+00> : vector<32x128xf32>
    %6 = tpu.matmul %4, %5, %cst {dimension_numbers = #tpu.dot_dimension_numbers<[1], [0], [0], [1], [0, 0, 1, 1], [], []>} : vector<32x512xbf16>, vector<512x128xbf16>, vector<32x128xf32> -> vector<32x128xf32>
    %7 = arith.addf %3, %6 : vector<32x128xf32>
    %c0_6 = arith.constant 0 : index
    %c0_7 = arith.constant 0 : index
    %8 = vector.load %arg4[%c0_6, %c0_7] : memref<32x128xf32, #tpu.memory_space<vmem>>, vector<32x128xf32>
    tpu.vector_store %arg4[%c0_6, %c0_7], %7 {strides = array<i32>} : memref<32x128xf32, #tpu.memory_space<vmem>>, vector<32x128xf32>,
    %c0_i32_8 = arith.constant 0 : i32
    %9 = arith.cmpi eq, %arg1, %c0_i32_8 : i32
    %10 = arith.extui %9 : i1 to i32
    %c0_i32_9 = arith.constant 0 : i32
    %11 = arith.cmpi ne, %10, %c0_i32_9 : i32
    scf.if %11 {
      %c0_10 = arith.constant 0 : index
      %c0_11 = arith.constant 0 : index
      %12 = vector.load %arg4[%c0_10, %c0_11] : memref<32x128xf32, #tpu.memory_space<vmem>>, vector<32x128xf32>
      %cst_12 = arith.constant dense<0.000000e+00> : vector<128xf32>
      %13 = vector.multi_reduction <add>, %12, %cst_12 [0] : vector<32x128xf32> to vector<128xf32>
      %14 = vector.shape_cast %13 : vector<128xf32> to vector<1x128xf32>
      %15 = arith.mulf %12, %12 : vector<32x128xf32>
      %cst_13 = arith.constant dense<0.000000e+00> : vector<128xf32>
      %16 = vector.multi_reduction <add>, %15, %cst_13 [0] : vector<32x128xf32> to vector<128xf32>
      %17 = vector.shape_cast %16 : vector<128xf32> to vector<1x128xf32>
      %18 = tpu.iota {dimensions = array<i32: 0>} : vector<8x128xi32>
      %c0_i32_14 = arith.constant 0 : i32
      %19 = vector.broadcast %c0_i32_14 : i32 to vector<8x128xi32>
      %20 = arith.cmpi eq, %18, %19 : vector<8x128xi32>
      %c1_i32 = arith.constant 1 : i32
      %21 = vector.broadcast %c1_i32 : i32 to vector<8x128xi32>
      %22 = arith.cmpi eq, %18, %21 : vector<8x128xi32>
      %cst_15 = arith.constant 0.000000e+00 : f32
      %23 = vector.shape_cast %17 : vector<1x128xf32> to vector<1x128xf32>
      %24 = vector.broadcast %23 : vector<1x128xf32> to vector<8x128xf32>
      %25 = vector.broadcast %cst_15 : f32 to vector<8x128xf32>
      %26 = arith.select %22, %24, %25 : vector<8x128xi1>, vector<8x128xf32>
      %27 = vector.shape_cast %14 : vector<1x128xf32> to vector<1x128xf32>
      %28 = vector.broadcast %27 : vector<1x128xf32> to vector<8x128xf32>
      %29 = arith.select %20, %28, %26 : vector<8x128xi1>, vector<8x128xf32>
      %c0_16 = arith.constant 0 : index
      %c0_17 = arith.constant 0 : index
      %30 = vector.load %arg5[%c0_16, %c0_17] : memref<8x128xf32, #tpu.memory_space<vmem>>, vector<8x128xf32>
      tpu.vector_store %arg5[%c0_16, %c0_17], %29 {strides = array<i32>} : memref<8x128xf32, #tpu.memory_space<vmem>>, vector<8x128xf32>,
    } else {
    }
    return
  }
  func.func @transform_0(%arg0: i32, %arg1: i32) -> (i32, i32) {
    %c0_i32 = arith.constant 0 : i32
    return %arg0, %arg1 : i32, i32
  }
  func.func @transform_1(%arg0: i32, %arg1: i32) -> (i32, i32) {
    %c0_i32 = arith.constant 0 : i32
    %c0_i32_0 = arith.constant 0 : i32
    return %arg1, %c0_i32 : i32, i32
  }
  func.func @transform_2(%arg0: i32, %arg1: i32) -> (i32, i32) {
    %c0_i32 = arith.constant 0 : i32
    %c0_i32_0 = arith.constant 0 : i32
    return %arg0, %c0_i32 : i32, i32
  }
  func.func @transform_3(%arg0: i32, %arg1: i32) -> (i32, i32) {
    %c0_i32 = arith.constant 0 : i32
    %c0_i32_0 = arith.constant 0 : i32
    return %arg0, %c0_i32 : i32, i32
  }
}

module attributes {stable_mosaic.version = 11 : i64} {
  func.func @_bn_act_kernel(%arg0: i32, %arg1: memref<32x128xf32, #tpu.memory_space<vmem>>, %arg2: memref<1x128xf32, #tpu.memory_space<vmem>>, %arg3: memref<1x128xf32, #tpu.memory_space<vmem>>, %arg4: memref<32x128xf32, #tpu.memory_space<vmem>>) attributes {dimension_semantics = [#tpu.dimension_semantics<parallel>], iteration_bounds = array<i64: 1>, scalar_prefetch = 0 : i64, scratch_operands = 0 : i64, tpu.core_type = #tpu.core_type<tc>, window_params = [{transform_indices = @transform_0, window_bounds = array<i64: 32, 128>}, {pipeline_mode = #tpu.pipeline_mode<synchronous>, transform_indices = @transform_1, window_bounds = array<i64: 1, 128>}, {pipeline_mode = #tpu.pipeline_mode<synchronous>, transform_indices = @transform_2, window_bounds = array<i64: 1, 128>}, {transform_indices = @transform_3, window_bounds = array<i64: 32, 128>}]} {
    %c0 = arith.constant 0 : index
    %c0_0 = arith.constant 0 : index
    %0 = vector.load %arg1[%c0, %c0_0] : memref<32x128xf32, #tpu.memory_space<vmem>>, vector<32x128xf32>
    %c0_1 = arith.constant 0 : index
    %c0_2 = arith.constant 0 : index
    %1 = vector.load %arg2[%c0_1, %c0_2] : memref<1x128xf32, #tpu.memory_space<vmem>>, vector<1x128xf32>
    %2 = vector.broadcast %1 : vector<1x128xf32> to vector<32x128xf32>
    %3 = arith.mulf %0, %2 : vector<32x128xf32>
    %c0_3 = arith.constant 0 : index
    %c0_4 = arith.constant 0 : index
    %4 = vector.load %arg3[%c0_3, %c0_4] : memref<1x128xf32, #tpu.memory_space<vmem>>, vector<1x128xf32>
    %5 = vector.broadcast %4 : vector<1x128xf32> to vector<32x128xf32>
    %6 = arith.addf %3, %5 : vector<32x128xf32>
    %cst = arith.constant 0.000000e+00 : f32
    %7 = vector.broadcast %cst : f32 to vector<32x128xf32>
    %8 = arith.cmpf oge, %6, %7 : vector<32x128xf32>
    %cst_5 = arith.constant 2.000000e-01 : f32
    %9 = vector.broadcast %cst_5 : f32 to vector<32x128xf32>
    %10 = arith.mulf %9, %6 : vector<32x128xf32>
    %11 = arith.select %8, %6, %10 : vector<32x128xi1>, vector<32x128xf32>
    %c0_6 = arith.constant 0 : index
    %c0_7 = arith.constant 0 : index
    %12 = vector.load %arg4[%c0_6, %c0_7] : memref<32x128xf32, #tpu.memory_space<vmem>>, vector<32x128xf32>
    tpu.vector_store %arg4[%c0_6, %c0_7], %11 {strides = array<i32>} : memref<32x128xf32, #tpu.memory_space<vmem>>, vector<32x128xf32>,
    return
  }
  func.func @transform_0(%arg0: i32) -> (i32, i32) {
    %c0_i32 = arith.constant 0 : i32
    %c0_i32_0 = arith.constant 0 : i32
    return %arg0, %c0_i32 : i32, i32
  }
  func.func @transform_1(%arg0: i32) -> (i32, i32) {
    %c0_i32 = arith.constant 0 : i32
    %c0_i32_0 = arith.constant 0 : i32
    %c0_i32_1 = arith.constant 0 : i32
    return %c0_i32, %c0_i32_0 : i32, i32
  }
  func.func @transform_2(%arg0: i32) -> (i32, i32) {
    %c0_i32 = arith.constant 0 : i32
    %c0_i32_0 = arith.constant 0 : i32
    %c0_i32_1 = arith.constant 0 : i32
    return %c0_i32, %c0_i32_0 : i32, i32
  }
  func.func @transform_3(%arg0: i32) -> (i32, i32) {
    %c0_i32 = arith.constant 0 : i32
    %c0_i32_0 = arith.constant 0 : i32
    return %arg0, %c0_i32 : i32, i32
  }
}

module attributes {stable_mosaic.version = 11 : i64} {
  func.func @_bn_act_kernel(%arg0: i32, %arg1: memref<8x128xf32, #tpu.memory_space<vmem>>, %arg2: memref<1x128xf32, #tpu.memory_space<vmem>>, %arg3: memref<1x128xf32, #tpu.memory_space<vmem>>, %arg4: memref<8x128xf32, #tpu.memory_space<vmem>>) attributes {dimension_semantics = [#tpu.dimension_semantics<parallel>], iteration_bounds = array<i64: 1>, scalar_prefetch = 0 : i64, scratch_operands = 0 : i64, tpu.core_type = #tpu.core_type<tc>, window_params = [{transform_indices = @transform_0, window_bounds = array<i64: 8, 128>}, {pipeline_mode = #tpu.pipeline_mode<synchronous>, transform_indices = @transform_1, window_bounds = array<i64: 1, 128>}, {pipeline_mode = #tpu.pipeline_mode<synchronous>, transform_indices = @transform_2, window_bounds = array<i64: 1, 128>}, {transform_indices = @transform_3, window_bounds = array<i64: 8, 128>}]} {
    %c0 = arith.constant 0 : index
    %c0_0 = arith.constant 0 : index
    %0 = vector.load %arg1[%c0, %c0_0] : memref<8x128xf32, #tpu.memory_space<vmem>>, vector<8x128xf32>
    %c0_1 = arith.constant 0 : index
    %c0_2 = arith.constant 0 : index
    %1 = vector.load %arg2[%c0_1, %c0_2] : memref<1x128xf32, #tpu.memory_space<vmem>>, vector<1x128xf32>
    %2 = vector.broadcast %1 : vector<1x128xf32> to vector<8x128xf32>
    %3 = arith.mulf %0, %2 : vector<8x128xf32>
    %c0_3 = arith.constant 0 : index
    %c0_4 = arith.constant 0 : index
    %4 = vector.load %arg3[%c0_3, %c0_4] : memref<1x128xf32, #tpu.memory_space<vmem>>, vector<1x128xf32>
    %5 = vector.broadcast %4 : vector<1x128xf32> to vector<8x128xf32>
    %6 = arith.addf %3, %5 : vector<8x128xf32>
    %7 = math.tanh %6 : vector<8x128xf32>
    %c0_5 = arith.constant 0 : index
    %c0_6 = arith.constant 0 : index
    %8 = vector.load %arg4[%c0_5, %c0_6] : memref<8x128xf32, #tpu.memory_space<vmem>>, vector<8x128xf32>
    tpu.vector_store %arg4[%c0_5, %c0_6], %7 {strides = array<i32>} : memref<8x128xf32, #tpu.memory_space<vmem>>, vector<8x128xf32>,
    return
  }
  func.func @transform_0(%arg0: i32) -> (i32, i32) {
    %c0_i32 = arith.constant 0 : i32
    %c0_i32_0 = arith.constant 0 : i32
    return %arg0, %c0_i32 : i32, i32
  }
  func.func @transform_1(%arg0: i32) -> (i32, i32) {
    %c0_i32 = arith.constant 0 : i32
    %c0_i32_0 = arith.constant 0 : i32
    %c0_i32_1 = arith.constant 0 : i32
    return %c0_i32, %c0_i32_0 : i32, i32
  }
  func.func @transform_2(%arg0: i32) -> (i32, i32) {
    %c0_i32 = arith.constant 0 : i32
    %c0_i32_0 = arith.constant 0 : i32
    %c0_i32_1 = arith.constant 0 : i32
    return %c0_i32, %c0_i32_0 : i32, i32
  }
  func.func @transform_3(%arg0: i32) -> (i32, i32) {
    %c0_i32 = arith.constant 0 : i32
    %c0_i32_0 = arith.constant 0 : i32
    return %arg0, %c0_i32 : i32, i32
  }
}

module attributes {stable_mosaic.version = 11 : i64} {
  func.func @_matmul_stats_kernel(%arg0: i32, %arg1: i32, %arg2: memref<8x1024xbf16, #tpu.memory_space<vmem>>, %arg3: memref<1024x128xbf16, #tpu.memory_space<vmem>>, %arg4: memref<8x128xf32, #tpu.memory_space<vmem>>, %arg5: memref<8x128xf32, #tpu.memory_space<vmem>>) attributes {dimension_semantics = [#tpu.dimension_semantics<parallel>, #tpu.dimension_semantics<arbitrary>], iteration_bounds = array<i64: 1, 1>, scalar_prefetch = 0 : i64, scratch_operands = 0 : i64, tpu.core_type = #tpu.core_type<tc>, window_params = [{transform_indices = @transform_0, window_bounds = array<i64: 8, 1024>}, {transform_indices = @transform_1, window_bounds = array<i64: 1024, 128>}, {transform_indices = @transform_2, window_bounds = array<i64: 8, 128>}, {transform_indices = @transform_3, window_bounds = array<i64: 8, 128>}]} {
    %c0_i32 = arith.constant 0 : i32
    %0 = arith.cmpi eq, %arg1, %c0_i32 : i32
    %1 = arith.extui %0 : i1 to i32
    %c0_i32_0 = arith.constant 0 : i32
    %2 = arith.cmpi ne, %1, %c0_i32_0 : i32
    scf.if %2 {
      %cst_10 = arith.constant 0.000000e+00 : f32
      %12 = vector.broadcast %cst_10 : f32 to vector<8x128xf32>
      %c0_11 = arith.constant 0 : index
      %c0_12 = arith.constant 0 : index
      %13 = vector.load %arg4[%c0_11, %c0_12] : memref<8x128xf32, #tpu.memory_space<vmem>>, vector<8x128xf32>
      tpu.vector_store %arg4[%c0_11, %c0_12], %12 {strides = array<i32>} : memref<8x128xf32, #tpu.memory_space<vmem>>, vector<8x128xf32>,
    } else {
    }
    %c0 = arith.constant 0 : index
    %c0_1 = arith.constant 0 : index
    %3 = vector.load %arg4[%c0, %c0_1] : memref<8x128xf32, #tpu.memory_space<vmem>>, vector<8x128xf32>
    %c0_2 = arith.constant 0 : index
    %c0_3 = arith.constant 0 : index
    %4 = vector.load %arg2[%c0_2, %c0_3] : memref<8x1024xbf16, #tpu.memory_space<vmem>>, vector<8x1024xbf16>
    %c0_4 = arith.constant 0 : index
    %c0_5 = arith.constant 0 : index
    %5 = vector.load %arg3[%c0_4, %c0_5] : memref<1024x128xbf16, #tpu.memory_space<vmem>>, vector<1024x128xbf16>
    %cst = arith.constant dense<0.000000e+00> : vector<8x128xf32>
    %6 = tpu.matmul %4, %5, %cst {dimension_numbers = #tpu.dot_dimension_numbers<[1], [0], [0], [1], [0, 0, 1, 1], [], []>} : vector<8x1024xbf16>, vector<1024x128xbf16>, vector<8x128xf32> -> vector<8x128xf32>
    %7 = arith.addf %3, %6 : vector<8x128xf32>
    %c0_6 = arith.constant 0 : index
    %c0_7 = arith.constant 0 : index
    %8 = vector.load %arg4[%c0_6, %c0_7] : memref<8x128xf32, #tpu.memory_space<vmem>>, vector<8x128xf32>
    tpu.vector_store %arg4[%c0_6, %c0_7], %7 {strides = array<i32>} : memref<8x128xf32, #tpu.memory_space<vmem>>, vector<8x128xf32>,
    %c0_i32_8 = arith.constant 0 : i32
    %9 = arith.cmpi eq, %arg1, %c0_i32_8 : i32
    %10 = arith.extui %9 : i1 to i32
    %c0_i32_9 = arith.constant 0 : i32
    %11 = arith.cmpi ne, %10, %c0_i32_9 : i32
    scf.if %11 {
      %c0_10 = arith.constant 0 : index
      %c0_11 = arith.constant 0 : index
      %12 = vector.load %arg4[%c0_10, %c0_11] : memref<8x128xf32, #tpu.memory_space<vmem>>, vector<8x128xf32>
      %cst_12 = arith.constant dense<0.000000e+00> : vector<128xf32>
      %13 = vector.multi_reduction <add>, %12, %cst_12 [0] : vector<8x128xf32> to vector<128xf32>
      %14 = vector.shape_cast %13 : vector<128xf32> to vector<1x128xf32>
      %15 = arith.mulf %12, %12 : vector<8x128xf32>
      %cst_13 = arith.constant dense<0.000000e+00> : vector<128xf32>
      %16 = vector.multi_reduction <add>, %15, %cst_13 [0] : vector<8x128xf32> to vector<128xf32>
      %17 = vector.shape_cast %16 : vector<128xf32> to vector<1x128xf32>
      %18 = tpu.iota {dimensions = array<i32: 0>} : vector<8x128xi32>
      %c0_i32_14 = arith.constant 0 : i32
      %19 = vector.broadcast %c0_i32_14 : i32 to vector<8x128xi32>
      %20 = arith.cmpi eq, %18, %19 : vector<8x128xi32>
      %c1_i32 = arith.constant 1 : i32
      %21 = vector.broadcast %c1_i32 : i32 to vector<8x128xi32>
      %22 = arith.cmpi eq, %18, %21 : vector<8x128xi32>
      %cst_15 = arith.constant 0.000000e+00 : f32
      %23 = vector.shape_cast %17 : vector<1x128xf32> to vector<1x128xf32>
      %24 = vector.broadcast %23 : vector<1x128xf32> to vector<8x128xf32>
      %25 = vector.broadcast %cst_15 : f32 to vector<8x128xf32>
      %26 = arith.select %22, %24, %25 : vector<8x128xi1>, vector<8x128xf32>
      %27 = vector.shape_cast %14 : vector<1x128xf32> to vector<1x128xf32>
      %28 = vector.broadcast %27 : vector<1x128xf32> to vector<8x128xf32>
      %29 = arith.select %20, %28, %26 : vector<8x128xi1>, vector<8x128xf32>
      %c0_16 = arith.constant 0 : index
      %c0_17 = arith.constant 0 : index
      %30 = vector.load %arg5[%c0_16, %c0_17] : memref<8x128xf32, #tpu.memory_space<vmem>>, vector<8x128xf32>
      tpu.vector_store %arg5[%c0_16, %c0_17], %29 {strides = array<i32>} : memref<8x128xf32, #tpu.memory_space<vmem>>, vector<8x128xf32>,
    } else {
    }
    return
  }
  func.func @transform_0(%arg0: i32, %arg1: i32) -> (i32, i32) {
    %c0_i32 = arith.constant 0 : i32
    return %arg0, %arg1 : i32, i32
  }
  func.func @transform_1(%arg0: i32, %arg1: i32) -> (i32, i32) {
    %c0_i32 = arith.constant 0 : i32
    %c0_i32_0 = arith.constant 0 : i32
    return %arg1, %c0_i32 : i32, i32
  }
  func.func @transform_2(%arg0: i32, %arg1: i32) -> (i32, i32) {
    %c0_i32 = arith.constant 0 : i32
    %c0_i32_0 = arith.constant 0 : i32
    return %arg0, %c0_i32 : i32, i32
  }
  func.func @transform_3(%arg0: i32, %arg1: i32) -> (i32, i32) {
    %c0_i32 = arith.constant 0 : i32
    %c0_i32_0 = arith.constant 0 : i32
    return %arg0, %c0_i32 : i32, i32
  }
}

</mosaic_0001>

<llo_original>
// kernel: encoder_forward.11
$region0: #{encoder_forward.11}
  #allocation0 [shape = 'u32[]', space=smem, size = 0x4, offset = 0x4, fixed_abs, tag = 'smem constant byte address 0x4 - core index']
  #allocation1 [shape = 'u32[144,128]{1,0:T(1,128)}', space=vmem, size = 0x12000, scoped, tag = 'internal scratch']
  %s0 = inlined_call_operand.vmem [shape: f32[2048,128], index: 0, kind: input, shape index: {}]
  %s1 = inlined_call_operand.vmem [shape: f32[1,128], index: 1, kind: input, shape index: {}]
  %s2 = inlined_call_operand.vmem [shape: f32[1,128], index: 2, kind: input, shape index: {}]
  %s3 = inlined_call_operand.vmem [shape: f32[2048,128], index: 3, kind: output, shape index: {}]
  %s4 = sld [smem:[#allocation0]]
  $region45: #{encoder_forward.11} parent=0
    _
  %s6 = ssub.s32 1, %s4
  %s7 = scalar_select 0, %s6, %s4
  loop: start=0, step=1, limit=10
  $region2: #{encoder_forward.11} parent=0 // loop_pre_header
    _
  $region3: #{encoder_forward.11} parent=0 // loop_header
    %s9 = sphi 0, %s13
    %p10 = scmp.ge.s32.totalorder %s9, 10
    %s19 = sphi 0, %s21
    %s22 = sphi 0, %s19
    %s23 = sphi 0, %s22
    %s39 = sphi 0, %s23
    %s43 = sphi 0, %s43
    %s45 = sphi 0, %s43
    %s46 = sphi 0, %s45
    %s60 = sphi 0, %s46
    %s64 = sphi 0, %s64
    %s66 = sphi 0, %s64
    %s67 = sphi 0, %s66
    %s81 = sphi 0, %s67
    %s87 = sphi 0, %s89
    %s90 = sphi 0, %s87
    %s91 = sphi 0, %s90
    %s107 = sphi 0, %s91
  $region4: #{encoder_forward.11} parent=0 // loop_header_branch
    %12 = sbr.rel (%p10) target = $region8
  $region5: #{encoder_forward.11} parent=0 // loop_body
    %s14 = ssub.s32 %s9, 1
    %s15 = ssub.s32 %s9, 2
    %s16 = sadd.s32 %s9, 1
    %s17 = ssub.s32 %s9, %s16
    %p18 = scmp.eq.s32.totalorder %s17, 0
    %s20 = sadd.s32 %s19, 1
    %s21 = scalar_select %p18, %s19, %s20
    %p24 = pneg %p18
    %p25 = scmp.eq.s32.totalorder %s9, 7
    %p26 = por %p24, %p25
    %p27 = scmp.ne.s32.totalorder %s19, %s22
    %p28 = scmp.eq.s32.totalorder %s9, 0
    %p29 = por %p27, %p28
    %p30 = scmp.ne.s32.totalorder %s19, %s22
    %p31 = scmp.eq.s32.totalorder %s14, 7
    %p32 = por %p30, %p31
    %p33 = scmp.ne.s32.totalorder %s22, %s23
    %p34 = scmp.eq.s32.totalorder %s14, 0
    %p35 = por %p33, %p34
    %p36 = scmp.ne.s32.totalorder %s22, %s23
    %p37 = scmp.eq.s32.totalorder %s15, 7
    %p38 = por %p36, %p37
    %p40 = scmp.ne.s32.totalorder %s23, %s39
    %p41 = scmp.eq.s32.totalorder %s15, 0
    %p42 = por %p40, %p41
    %s44 = sadd.s32 %s43, 1
    %p47 = scmp.eq.s32.totalorder %s9, 7
    %p48 = scmp.ne.s32.totalorder %s43, %s45
    %p49 = scmp.eq.s32.totalorder %s9, 0
    %p50 = por %p48, %p49
    %p51 = scmp.ne.s32.totalorder %s43, %s45
    %p52 = scmp.eq.s32.totalorder %s14, 7
    %p53 = por %p51, %p52
    %p54 = scmp.ne.s32.totalorder %s45, %s46
    %p55 = scmp.eq.s32.totalorder %s14, 0
    %p56 = por %p54, %p55
    %p57 = scmp.ne.s32.totalorder %s45, %s46
    %p58 = scmp.eq.s32.totalorder %s15, 7
    %p59 = por %p57, %p58
    %p61 = scmp.ne.s32.totalorder %s46, %s60
    %p62 = scmp.eq.s32.totalorder %s15, 0
    %p63 = por %p61, %p62
    %s65 = sadd.s32 %s64, 1
    %p68 = scmp.eq.s32.totalorder %s9, 7
    %p69 = scmp.ne.s32.totalorder %s64, %s66
    %p70 = scmp.eq.s32.totalorder %s9, 0
    %p71 = por %p69, %p70
    %p72 = scmp.ne.s32.totalorder %s64, %s66
    %p73 = scmp.eq.s32.totalorder %s14, 7
    %p74 = por %p72, %p73
    %p75 = scmp.ne.s32.totalorder %s66, %s67
    %p76 = scmp.eq.s32.totalorder %s14, 0
    %p77 = por %p75, %p76
    %p78 = scmp.ne.s32.totalorder %s66, %s67
    %p79 = scmp.eq.s32.totalorder %s15, 7
    %p80 = por %p78, %p79
    %p82 = scmp.ne.s32.totalorder %s67, %s81
    %p83 = scmp.eq.s32.totalorder %s15, 0
    %p84 = por %p82, %p83
    %s85 = ssub.s32 %s9, %s16
    %p86 = scmp.eq.s32.totalorder %s85, 0
    %s88 = sadd.s32 %s87, 1
    %s89 = scalar_select %p86, %s87, %s88
    %p92 = pneg %p86
    %p93 = scmp.eq.s32.totalorder %s9, 7
    %p94 = por %p92, %p93
    %p95 = scmp.ne.s32.totalorder %s87, %s90
    %p96 = scmp.eq.s32.totalorder %s9, 0
    %p97 = por %p95, %p96
    %p98 = scmp.ne.s32.totalorder %s87, %s90
    %p99 = scmp.eq.s32.totalorder %s14, 7
    %p100 = por %p98, %p99
    %p101 = scmp.ne.s32.totalorder %s90, %s91
    %p102 = scmp.eq.s32.totalorder %s14, 0
    %p103 = por %p101, %p102
    %p104 = scmp.ne.s32.totalorder %s90, %s91
    %p105 = scmp.eq.s32.totalorder %s15, 7
    %p106 = por %p104, %p105
    %p108 = scmp.ne.s32.totalorder %s91, %s107
    %p109 = scmp.eq.s32.totalorder %s15, 0
    %p110 = por %p108, %p109
    %p111 = scmp.le.s32.totalorder 1, %s9
    %p112 = scmp.lt.s32.totalorder %s9, 9
    %p113 = pnand %p111, %p112
    %p114 = pneg %p113
    // Predicated region
    $region9: #{encoder_forward.11} parent=5 // pred_check
      _
    $region10: #{encoder_forward.11} parent=5 // pred_check_branch
      %116 = sbr.rel (%p113) target = $region12
    $region11: #{encoder_forward.11} parent=5 // pred_region
      %s117 = ssub.s32 %s9, 1
      // Predicated region
      $region13: #{encoder_forward.11} parent=11 // pred_check
        %p118 = pneg %p56
      $region14: #{encoder_forward.11} parent=11 // pred_check_branch
        %120 = sbr.rel (%p118) target = $region16
      $region15: #{encoder_forward.11} parent=11 // pred_region
        _
      $region16: #{encoder_forward.11} parent=11 // pred_fallthru
        _
      // Predicated region
      $region17: #{encoder_forward.11} parent=11 // pred_check
        %p121 = pneg %p77
      $region18: #{encoder_forward.11} parent=11 // pred_check_branch
        %123 = sbr.rel (%p121) target = $region20
      $region19: #{encoder_forward.11} parent=11 // pred_region
        _
      $region20: #{encoder_forward.11} parent=11 // pred_fallthru
        _
    $region12: #{encoder_forward.11} parent=5 // pred_fallthru
      _
    %p124 = scmp.lt.s32.totalorder %s9, 8
    // Predicated region
    $region21: #{encoder_forward.11} parent=5 // pred_check
      %p125 = pneg %p124
    $region22: #{encoder_forward.11} parent=5 // pred_check_branch
      %127 = sbr.rel (%p125) target = $region24
    $region23: #{encoder_forward.11} parent=5 // pred_region
      // Predicated region
      $region25: #{encoder_forward.11} parent=23 // pred_check
        %p128 = pneg %p29
      $region26: #{encoder_forward.11} parent=23 // pred_check_branch
        %130 = sbr.rel (%p128) target = $region28
      $region27: #{encoder_forward.11} parent=23 // pred_region
        %s131 = smul.u32 32, %s9
        %p132 = scmp.lt.s32.totalorder %s131, 255
        %s133 = scalar_select %p132, %s131, 255
        %s134 = smul.addr %s133, 8
        %s135 = scalar_lea.vmem %s0, %s134
        %s136 = smul.u32 32, %s9
      $region28: #{encoder_forward.11} parent=23 // pred_fallthru
        _
    $region24: #{encoder_forward.11} parent=5 // pred_fallthru
      _
    %p137 = scmp.le.s32.totalorder 1, %s9
    %p138 = scmp.lt.s32.totalorder %s9, 9
    %p139 = pnand %p137, %p138
    %p140 = pneg %p139
    // Predicated region
    $region29: #{encoder_forward.11} parent=5 // pred_check
      _
    $region30: #{encoder_forward.11} parent=5 // pred_check_branch
      %142 = sbr.rel (%p139) target = $region32
    $region31: #{encoder_forward.11} parent=5 // pred_region
      %s143 = ssub.s32 %s9, 1
      %s144 = smul.u32 32, %s14
      %p145 = scmp.lt.s32.totalorder %s144, 255
      %s146 = scalar_select %p145, %s144, 255
      %s147 = smul.addr %s146, 8
      %s148 = scalar_lea.vmem %s0, %s147
      %p149 = pneg %p35
      %p150 = pneg %p32
      %p151 = pneg %p56
      %p152 = pneg %p53
      %p153 = pneg %p77
      %p154 = pneg %p74
      %p155 = pneg %p103
      %p156 = pneg %p100
      %s157 = smul.u32 32, %s14
      %p158 = scmp.lt.s32.totalorder %s157, 255
      %s159 = scalar_select %p158, %s157, 255
      %s160 = smul.addr %s159, 8
      %s161 = scalar_lea.vmem %s3, %s160
      %s162 = smul.u32 32, %s14
      %p163 = scmp.lt.s32.totalorder %s162, 255
      %s164 = scalar_select %p163, %s162, 255
      %s165 = smul.addr %s164, 8
      %s166 = scalar_lea.vmem %s0, %s165
      %s167 = smul.u32 32, %s14
      %s168 = smul.u32 32, %s14
      %p169 = scmp.lt.s32.totalorder %s168, 255
      %s170 = scalar_select %p169, %s168, 255
      %s171 = smul.addr %s170, 8
      %s172 = scalar_lea.vmem %s3, %s171
      %s173 = smul.u32 32, %s14
      %v174 = vld [vmem:[%s166] sm:$0xff]
      %v175 = vld [vmem:[%s166 + $0x8] sm:$0xff]
      %v176 = vld [vmem:[%s166 + $0x10] sm:$0xff]
      %v177 = vld [vmem:[%s166 + $0x18] sm:$0xff]
      %v178 = vld [vmem:[%s166 + $0x20] sm:$0xff]
      %v179 = vld [vmem:[%s166 + $0x28] sm:$0xff]
      %v180 = vld [vmem:[%s166 + $0x30] sm:$0xff]
      %v181 = vld [vmem:[%s166 + $0x38] sm:$0xff]
      %v182 = vld [vmem:[%s166 + $0x40] sm:$0xff]
      %v183 = vld [vmem:[%s166 + $0x48] sm:$0xff]
      %v184 = vld [vmem:[%s166 + $0x50] sm:$0xff]
      %v185 = vld [vmem:[%s166 + $0x58] sm:$0xff]
      %v186 = vld [vmem:[%s166 + $0x60] sm:$0xff]
      %v187 = vld [vmem:[%s166 + $0x68] sm:$0xff]
      %v188 = vld [vmem:[%s166 + $0x70] sm:$0xff]
      %v189 = vld [vmem:[%s166 + $0x78] sm:$0xff]
      %v190 = vld [vmem:[%s166 + $0x80] sm:$0xff]
      %v191 = vld [vmem:[%s166 + $0x88] sm:$0xff]
      %v192 = vld [vmem:[%s166 + $0x90] sm:$0xff]
      %v193 = vld [vmem:[%s166 + $0x98] sm:$0xff]
      %v194 = vld [vmem:[%s166 + $0xa0] sm:$0xff]
      %v195 = vld [vmem:[%s166 + $0xa8] sm:$0xff]
      %v196 = vld [vmem:[%s166 + $0xb0] sm:$0xff]
      %v197 = vld [vmem:[%s166 + $0xb8] sm:$0xff]
      %v198 = vld [vmem:[%s166 + $0xc0] sm:$0xff]
      %v199 = vld [vmem:[%s166 + $0xc8] sm:$0xff]
      %v200 = vld [vmem:[%s166 + $0xd0] sm:$0xff]
      %v201 = vld [vmem:[%s166 + $0xd8] sm:$0xff]
      %v202 = vld [vmem:[%s166 + $0xe0] sm:$0xff]
      %v203 = vld [vmem:[%s166 + $0xe8] sm:$0xff]
      %v204 = vld [vmem:[%s166 + $0xf0] sm:$0xff]
      %v205 = vld [vmem:[%s166 + $0xf8] sm:$0xff]
      %v206 = vld [vmem:[%s1] sm:$0x1]
      %v208 = vlaneseq
      %v209 = vshrl.u32 %v208, 7
      %v210 = vsub.s32 0, %v209
      %v211 = vrot.slane %v206, %v210
      %v213 = vmul.f32 %v174, %v211
      %v214 = vmul.f32 %v175, %v211
      %v215 = vmul.f32 %v176, %v211
      %v216 = vmul.f32 %v177, %v211
      %v217 = vmul.f32 %v178, %v211
      %v218 = vmul.f32 %v179, %v211
      %v219 = vmul.f32 %v180, %v211
      %v220 = vmul.f32 %v181, %v211
      %v221 = vmul.f32 %v182, %v211
      %v222 = vmul.f32 %v183, %v211
      %v223 = vmul.f32 %v184, %v211
      %v224 = vmul.f32 %v185, %v211
      %v225 = vmul.f32 %v186, %v211
      %v226 = vmul.f32 %v187, %v211
      %v227 = vmul.f32 %v188, %v211
      %v228 = vmul.f32 %v189, %v211
      %v229 = vmul.f32 %v190, %v211
      %v230 = vmul.f32 %v191, %v211
      %v231 = vmul.f32 %v192, %v211
      %v232 = vmul.f32 %v193, %v211
      %v233 = vmul.f32 %v194, %v211
      %v234 = vmul.f32 %v195, %v211
      %v235 = vmul.f32 %v196, %v211
      %v236 = vmul.f32 %v197, %v211
      %v237 = vmul.f32 %v198, %v211
      %v238 = vmul.f32 %v199, %v211
      %v239 = vmul.f32 %v200, %v211
      %v240 = vmul.f32 %v201, %v211
      %v241 = vmul.f32 %v202, %v211
      %v242 = vmul.f32 %v203, %v211
      %v243 = vmul.f32 %v204, %v211
      %v244 = vmul.f32 %v205, %v211
      %v245 = vld [vmem:[%s2] sm:$0x1]
      %v247 = vlaneseq
      %v248 = vshrl.u32 %v247, 7
      %v249 = vsub.s32 0, %v248
      %v250 = vrot.slane %v245, %v249
      %v252 = vadd.f32 %v213, %v250
      %v253 = vadd.f32 %v214, %v250
      %v254 = vadd.f32 %v215, %v250
      %v255 = vadd.f32 %v216, %v250
      %v256 = vadd.f32 %v217, %v250
      %v257 = vadd.f32 %v218, %v250
      %v258 = vadd.f32 %v219, %v250
      %v259 = vadd.f32 %v220, %v250
      %v260 = vadd.f32 %v221, %v250
      %v261 = vadd.f32 %v222, %v250
      %v262 = vadd.f32 %v223, %v250
      %v263 = vadd.f32 %v224, %v250
      %v264 = vadd.f32 %v225, %v250
      %v265 = vadd.f32 %v226, %v250
      %v266 = vadd.f32 %v227, %v250
      %v267 = vadd.f32 %v228, %v250
      %v268 = vadd.f32 %v229, %v250
      %v269 = vadd.f32 %v230, %v250
      %v270 = vadd.f32 %v231, %v250
      %v271 = vadd.f32 %v232, %v250
      %v272 = vadd.f32 %v233, %v250
      %v273 = vadd.f32 %v234, %v250
      %v274 = vadd.f32 %v235, %v250
      %v275 = vadd.f32 %v236, %v250
      %v276 = vadd.f32 %v237, %v250
      %v277 = vadd.f32 %v238, %v250
      %v278 = vadd.f32 %v239, %v250
      %v279 = vadd.f32 %v240, %v250
      %v280 = vadd.f32 %v241, %v250
      %v281 = vadd.f32 %v242, %v250
      %v282 = vadd.f32 %v243, %v250
      %v283 = vadd.f32 %v244, %v250
      %vm284 = vcmp.ge.f32.partialorder %v252, 0.0
      %vm285 = vcmp.ge.f32.partialorder %v253, 0.0
      %vm286 = vcmp.ge.f32.partialorder %v254, 0.0
      %vm287 = vcmp.ge.f32.partialorder %v255, 0.0
      %vm288 = vcmp.ge.f32.partialorder %v256, 0.0
      %vm289 = vcmp.ge.f32.partialorder %v257, 0.0
      %vm290 = vcmp.ge.f32.partialorder %v258, 0.0
      %vm291 = vcmp.ge.f32.partialorder %v259, 0.0
      %vm292 = vcmp.ge.f32.partialorder %v260, 0.0
      %vm293 = vcmp.ge.f32.partialorder %v261, 0.0
      %vm294 = vcmp.ge.f32.partialorder %v262, 0.0
      %vm295 = vcmp.ge.f32.partialorder %v263, 0.0
      %vm296 = vcmp.ge.f32.partialorder %v264, 0.0
      %vm297 = vcmp.ge.f32.partialorder %v265, 0.0
      %vm298 = vcmp.ge.f32.partialorder %v266, 0.0
      %vm299 = vcmp.ge.f32.partialorder %v267, 0.0
      %vm300 = vcmp.ge.f32.partialorder %v268, 0.0
      %vm301 = vcmp.ge.f32.partialorder %v269, 0.0
      %vm302 = vcmp.ge.f32.partialorder %v270, 0.0
      %vm303 = vcmp.ge.f32.partialorder %v271, 0.0
      %vm304 = vcmp.ge.f32.partialorder %v272, 0.0
      %vm305 = vcmp.ge.f32.partialorder %v273, 0.0
      %vm306 = vcmp.ge.f32.partialorder %v274, 0.0
      %vm307 = vcmp.ge.f32.partialorder %v275, 0.0
      %vm308 = vcmp.ge.f32.partialorder %v276, 0.0
      %vm309 = vcmp.ge.f32.partialorder %v277, 0.0
      %vm310 = vcmp.ge.f32.partialorder %v278, 0.0
      %vm311 = vcmp.ge.f32.partialorder %v279, 0.0
      %vm312 = vcmp.ge.f32.partialorder %v280, 0.0
      %vm313 = vcmp.ge.f32.partialorder %v281, 0.0
      %vm314 = vcmp.ge.f32.partialorder %v282, 0.0
      %vm315 = vcmp.ge.f32.partialorder %v283, 0.0
      %v316 = vmul.f32 %v252, 0.2
      %v317 = vmul.f32 %v253, 0.2
      %v318 = vmul.f32 %v254, 0.2
      %v319 = vmul.f32 %v255, 0.2
      %v320 = vmul.f32 %v256, 0.2
      %v321 = vmul.f32 %v257, 0.2
      %v322 = vmul.f32 %v258, 0.2
      %v323 = vmul.f32 %v259, 0.2
      %v324 = vmul.f32 %v260, 0.2
      %v325 = vmul.f32 %v261, 0.2
      %v326 = vmul.f32 %v262, 0.2
      %v327 = vmul.f32 %v263, 0.2
      %v328 = vmul.f32 %v264, 0.2
      %v329 = vmul.f32 %v265, 0.2
      %v330 = vmul.f32 %v266, 0.2
      %v331 = vmul.f32 %v267, 0.2
      %v332 = vmul.f32 %v268, 0.2
      %v333 = vmul.f32 %v269, 0.2
      %v334 = vmul.f32 %v270, 0.2
      %v335 = vmul.f32 %v271, 0.2
      %v336 = vmul.f32 %v272, 0.2
      %v337 = vmul.f32 %v273, 0.2
      %v338 = vmul.f32 %v274, 0.2
      %v339 = vmul.f32 %v275, 0.2
      %v340 = vmul.f32 %v276, 0.2
      %v341 = vmul.f32 %v277, 0.2
      %v342 = vmul.f32 %v278, 0.2
      %v343 = vmul.f32 %v279, 0.2
      %v344 = vmul.f32 %v280, 0.2
      %v345 = vmul.f32 %v281, 0.2
      %v346 = vmul.f32 %v282, 0.2
      %v347 = vmul.f32 %v283, 0.2
      %v348 = vsel %vm284, %v252, %v316
      %v349 = vsel %vm285, %v253, %v317
      %v350 = vsel %vm286, %v254, %v318
      %v351 = vsel %vm287, %v255, %v319
      %v352 = vsel %vm288, %v256, %v320
      %v353 = vsel %vm289, %v257, %v321
      %v354 = vsel %vm290, %v258, %v322
      %v355 = vsel %vm291, %v259, %v323
      %v356 = vsel %vm292, %v260, %v324
      %v357 = vsel %vm293, %v261, %v325
      %v358 = vsel %vm294, %v262, %v326
      %v359 = vsel %vm295, %v263, %v327
      %v360 = vsel %vm296, %v264, %v328
      %v361 = vsel %vm297, %v265, %v329
      %v362 = vsel %vm298, %v266, %v330
      %v363 = vsel %vm299, %v267, %v331
      %v364 = vsel %vm300, %v268, %v332
      %v365 = vsel %vm301, %v269, %v333
      %v366 = vsel %vm302, %v270, %v334
      %v367 = vsel %vm303, %v271, %v335
      %v368 = vsel %vm304, %v272, %v336
      %v369 = vsel %vm305, %v273, %v337
      %v370 = vsel %vm306, %v274, %v338
      %v371 = vsel %vm307, %v275, %v339
      %v372 = vsel %vm308, %v276, %v340
      %v373 = vsel %vm309, %v277, %v341
      %v374 = vsel %vm310, %v278, %v342
      %v375 = vsel %vm311, %v279, %v343
      %v376 = vsel %vm312, %v280, %v344
      %v377 = vsel %vm313, %v281, %v345
      %v378 = vsel %vm314, %v282, %v346
      %v379 = vsel %vm315, %v283, %v347
      %380 = vst [vmem:[%s172] sm:$0xff] %v348
      %381 = vst [vmem:[%s172 + $0x8] sm:$0xff] %v349
      %382 = vst [vmem:[%s172 + $0x10] sm:$0xff] %v350
      %383 = vst [vmem:[%s172 + $0x18] sm:$0xff] %v351
      %384 = vst [vmem:[%s172 + $0x20] sm:$0xff] %v352
      %385 = vst [vmem:[%s172 + $0x28] sm:$0xff] %v353
      %386 = vst [vmem:[%s172 + $0x30] sm:$0xff] %v354
      %387 = vst [vmem:[%s172 + $0x38] sm:$0xff] %v355
      %388 = vst [vmem:[%s172 + $0x40] sm:$0xff] %v356
      %389 = vst [vmem:[%s172 + $0x48] sm:$0xff] %v357
      %390 = vst [vmem:[%s172 + $0x50] sm:$0xff] %v358
      %391 = vst [vmem:[%s172 + $0x58] sm:$0xff] %v359
      %392 = vst [vmem:[%s172 + $0x60] sm:$0xff] %v360
      %393 = vst [vmem:[%s172 + $0x68] sm:$0xff] %v361
      %394 = vst [vmem:[%s172 + $0x70] sm:$0xff] %v362
      %395 = vst [vmem:[%s172 + $0x78] sm:$0xff] %v363
      %396 = vst [vmem:[%s172 + $0x80] sm:$0xff] %v364
      %397 = vst [vmem:[%s172 + $0x88] sm:$0xff] %v365
      %398 = vst [vmem:[%s172 + $0x90] sm:$0xff] %v366
      %399 = vst [vmem:[%s172 + $0x98] sm:$0xff] %v367
      %400 = vst [vmem:[%s172 + $0xa0] sm:$0xff] %v368
      %401 = vst [vmem:[%s172 + $0xa8] sm:$0xff] %v369
      %402 = vst [vmem:[%s172 + $0xb0] sm:$0xff] %v370
      %403 = vst [vmem:[%s172 + $0xb8] sm:$0xff] %v371
      %404 = vst [vmem:[%s172 + $0xc0] sm:$0xff] %v372
      %405 = vst [vmem:[%s172 + $0xc8] sm:$0xff] %v373
      %406 = vst [vmem:[%s172 + $0xd0] sm:$0xff] %v374
      %407 = vst [vmem:[%s172 + $0xd8] sm:$0xff] %v375
      %408 = vst [vmem:[%s172 + $0xe0] sm:$0xff] %v376
      %409 = vst [vmem:[%s172 + $0xe8] sm:$0xff] %v377
      %410 = vst [vmem:[%s172 + $0xf0] sm:$0xff] %v378
      %411 = vst [vmem:[%s172 + $0xf8] sm:$0xff] %v379
      %s412 = smul.u32 32, %s14
      %p413 = scmp.lt.s32.totalorder %s412, 255
      %s414 = scalar_select %p413, %s412, 255
      %s415 = smul.addr %s414, 8
      %s416 = scalar_lea.vmem %s3, %s415
      // Predicated region
      $region33: #{encoder_forward.11} parent=31 // pred_check
        %p417 = pneg %p100
      $region34: #{encoder_forward.11} parent=31 // pred_check_branch
        %419 = sbr.rel (%p417) target = $region36
      $region35: #{encoder_forward.11} parent=31 // pred_region
        %s420 = smul.u32 32, %s14
      $region36: #{encoder_forward.11} parent=31 // pred_fallthru
        _
    $region32: #{encoder_forward.11} parent=5 // pred_fallthru
      _
    %p421 = scmp.le.s32.totalorder 2, %s9
    // Predicated region
    $region37: #{encoder_forward.11} parent=5 // pred_check
      %p422 = pneg %p421
    $region38: #{encoder_forward.11} parent=5 // pred_check_branch
      %424 = sbr.rel (%p422) target = $region40
    $region39: #{encoder_forward.11} parent=5 // pred_region
      %s425 = ssub.s32 %s9, 2
      // Predicated region
      $region41: #{encoder_forward.11} parent=39 // pred_check
        %p426 = pneg %p106
      $region42: #{encoder_forward.11} parent=39 // pred_check_branch
        %428 = sbr.rel (%p426) target = $region44
      $region43: #{encoder_forward.11} parent=39 // pred_region
        %s429 = smul.u32 32, %s15
        %p430 = scmp.lt.s32.totalorder %s429, 255
        %s431 = scalar_select %p430, %s429, 255
        %s432 = smul.addr %s431, 8
        %s433 = scalar_lea.vmem %s3, %s432
      $region44: #{encoder_forward.11} parent=39 // pred_fallthru
        _
    $region40: #{encoder_forward.11} parent=5 // pred_fallthru
      _
  $region6: #{encoder_forward.11} parent=0 // loop_footer
    %s13 = sadd.s32 1, %s9
  $region7: #{encoder_forward.11} parent=0 // loop_footer_branch
    %8 = sbr.rel target = $region3
  $region8: #{encoder_forward.11} parent=0 // loop_exit
    _

// kernel: encoder_forward.10
$region0: #{encoder_forward.10}
  #allocation0 [shape = 'u32[]', space=smem, size = 0x4, offset = 0x4, fixed_abs, tag = 'smem constant byte address 0x4 - core index']
  #allocation1 [shape = 'u32[144,128]{1,0:T(1,128)}', space=vmem, size = 0x12000, scoped, tag = 'internal scratch']
  %s0 = inlined_call_operand.vmem [shape: bf16[2048,16], index: 0, kind: input, shape index: {}]
  %s1 = inlined_call_operand.vmem [shape: bf16[16,128], index: 1, kind: input, shape index: {}]
  %s2 = inlined_call_operand.vmem [shape: f32[2048,128], index: 2, kind: output, shape index: {0}]
  %s3 = inlined_call_operand.vmem [shape: f32[64,128], index: 3, kind: output, shape index: {1}]
  %4 = xla_tuple %s2, %s3
  %s5 = sld [smem:[#allocation0]]
  $region57: #{encoder_forward.10} parent=0
    _
  %s7 = ssub.s32 1, %s5
  %s8 = scalar_select 0, %s7, %s5
  loop: start=0, step=1, limit=10
  $region2: #{encoder_forward.10} parent=0 // loop_pre_header
    _
  $region3: #{encoder_forward.10} parent=0 // loop_header
    %s10 = sphi 0, %s14
    %p11 = scmp.ge.s32.totalorder %s10, 10
    %s17 = sphi 0, %s29
    %s18 = sphi 0, %s25
    %s19 = sphi 0, %s17
    %s20 = sphi 0, %s18
    %s21 = sphi 0, %s19
    %s22 = sphi 0, %s20
    %s34 = sphi 0, %s36
    %s37 = sphi 0, %s34
    %s38 = sphi 0, %s37
    %s54 = sphi 0, %s38
    %s60 = sphi 0, %s62
    %s63 = sphi 0, %s60
    %s64 = sphi 0, %s63
    %s80 = sphi 0, %s64
    %s86 = sphi 0, %s88
    %s89 = sphi 0, %s86
    %s90 = sphi 0, %s89
    %s106 = sphi 0, %s90
    %s112 = sphi 0, %s114
    %s115 = sphi 0, %s112
    %s116 = sphi 0, %s115
    %s132 = sphi 0, %s116
  $region4: #{encoder_forward.10} parent=0 // loop_header_branch
    %13 = sbr.rel (%p11) target = $region8
  $region5: #{encoder_forward.10} parent=0 // loop_body
    %s15 = ssub.s32 %s10, 1
    %s16 = ssub.s32 %s10, 2
    %s23 = sadd.s32 1, %s18
    %p24 = scmp.ge.s32.totalorder %s23, 1
    %s25 = scalar_select %p24, 0, %s23
    %s26 = sadd.s32 1, %s17
    %s27 = scalar_select %p24, %s26, %s17
    %p28 = scmp.ge.s32.totalorder %s27, 8
    %s29 = scalar_select %p28, 0, %s27
    %s30 = ssub.s32 %s17, %s29
    %s31 = ssub.s32 %s18, %s25
    %s32 = sor.u32 %s30, %s31
    %p33 = scmp.eq.s32.totalorder %s32, 0
    %s35 = sadd.s32 %s34, 1
    %s36 = scalar_select %p33, %s34, %s35
    %p39 = pneg %p33
    %p40 = scmp.eq.s32.totalorder %s10, 7
    %p41 = por %p39, %p40
    %p42 = scmp.ne.s32.totalorder %s34, %s37
    %p43 = scmp.eq.s32.totalorder %s10, 0
    %p44 = por %p42, %p43
    %p45 = scmp.ne.s32.totalorder %s34, %s37
    %p46 = scmp.eq.s32.totalorder %s15, 7
    %p47 = por %p45, %p46
    %p48 = scmp.ne.s32.totalorder %s37, %s38
    %p49 = scmp.eq.s32.totalorder %s15, 0
    %p50 = por %p48, %p49
    %p51 = scmp.ne.s32.totalorder %s37, %s38
    %p52 = scmp.eq.s32.totalorder %s16, 7
    %p53 = por %p51, %p52
    %p55 = scmp.ne.s32.totalorder %s38, %s54
    %p56 = scmp.eq.s32.totalorder %s16, 0
    %p57 = por %p55, %p56
    %s58 = ssub.s32 %s18, %s25
    %p59 = scmp.eq.s32.totalorder %s58, 0
    %s61 = sadd.s32 %s60, 1
    %s62 = scalar_select %p59, %s60, %s61
    %p65 = pneg %p59
    %p66 = scmp.eq.s32.totalorder %s10, 7
    %p67 = por %p65, %p66
    %p68 = scmp.ne.s32.totalorder %s60, %s63
    %p69 = scmp.eq.s32.totalorder %s10, 0
    %p70 = por %p68, %p69
    %p71 = scmp.ne.s32.totalorder %s60, %s63
    %p72 = scmp.eq.s32.totalorder %s15, 7
    %p73 = por %p71, %p72
    %p74 = scmp.ne.s32.totalorder %s63, %s64
    %p75 = scmp.eq.s32.totalorder %s15, 0
    %p76 = por %p74, %p75
    %p77 = scmp.ne.s32.totalorder %s63, %s64
    %p78 = scmp.eq.s32.totalorder %s16, 7
    %p79 = por %p77, %p78
    %p81 = scmp.ne.s32.totalorder %s64, %s80
    %p82 = scmp.eq.s32.totalorder %s16, 0
    %p83 = por %p81, %p82
    %s84 = ssub.s32 %s17, %s29
    %p85 = scmp.eq.s32.totalorder %s84, 0
    %s87 = sadd.s32 %s86, 1
    %s88 = scalar_select %p85, %s86, %s87
    %p91 = pneg %p85
    %p92 = scmp.eq.s32.totalorder %s10, 7
    %p93 = por %p91, %p92
    %p94 = scmp.ne.s32.totalorder %s86, %s89
    %p95 = scmp.eq.s32.totalorder %s10, 0
    %p96 = por %p94, %p95
    %p97 = scmp.ne.s32.totalorder %s86, %s89
    %p98 = scmp.eq.s32.totalorder %s15, 7
    %p99 = por %p97, %p98
    %p100 = scmp.ne.s32.totalorder %s89, %s90
    %p101 = scmp.eq.s32.totalorder %s15, 0
    %p102 = por %p100, %p101
    %p103 = scmp.ne.s32.totalorder %s89, %s90
    %p104 = scmp.eq.s32.totalorder %s16, 7
    %p105 = por %p103, %p104
    %p107 = scmp.ne.s32.totalorder %s90, %s106
    %p108 = scmp.eq.s32.totalorder %s16, 0
    %p109 = por %p107, %p108
    %s110 = ssub.s32 %s17, %s29
    %p111 = scmp.eq.s32.totalorder %s110, 0
    %s113 = sadd.s32 %s112, 1
    %s114 = scalar_select %p111, %s112, %s113
    %p117 = pneg %p111
    %p118 = scmp.eq.s32.totalorder %s10, 7
    %p119 = por %p117, %p118
    %p120 = scmp.ne.s32.totalorder %s112, %s115
    %p121 = scmp.eq.s32.totalorder %s10, 0
    %p122 = por %p120, %p121
    %p123 = scmp.ne.s32.totalorder %s112, %s115
    %p124 = scmp.eq.s32.totalorder %s15, 7
    %p125 = por %p123, %p124
    %p126 = scmp.ne.s32.totalorder %s115, %s116
    %p127 = scmp.eq.s32.totalorder %s15, 0
    %p128 = por %p126, %p127
    %p129 = scmp.ne.s32.totalorder %s115, %s116
    %p130 = scmp.eq.s32.totalorder %s16, 7
    %p131 = por %p129, %p130
    %p133 = scmp.ne.s32.totalorder %s116, %s132
    %p134 = scmp.eq.s32.totalorder %s16, 0
    %p135 = por %p133, %p134
    %p136 = scmp.le.s32.totalorder 1, %s10
    %p137 = scmp.lt.s32.totalorder %s10, 9
    %p138 = pnand %p136, %p137
    %p139 = pneg %p138
    // Predicated region
    $region9: #{encoder_forward.10} parent=5 // pred_check
      _
    $region10: #{encoder_forward.10} parent=5 // pred_check_branch
      %141 = sbr.rel (%p138) target = $region12
    $region11: #{encoder_forward.10} parent=5 // pred_region
      %s142 = ssub.s32 %s10, 1
      // Predicated region
      $region13: #{encoder_forward.10} parent=11 // pred_check
        %p143 = pneg %p76
      $region14: #{encoder_forward.10} parent=11 // pred_check_branch
        %145 = sbr.rel (%p143) target = $region16
      $region15: #{encoder_forward.10} parent=11 // pred_region
        %s146 = smul.u32 2, %s20
        %p147 = scmp.lt.s32.totalorder %s146, 1
        %s148 = scalar_select %p147, %s146, 1
        %s149 = smul.addr %s148, 4
        %s150 = scalar_lea.vmem %s1, %s149
        %s151 = smul.u32 2, %s20
      $region16: #{encoder_forward.10} parent=11 // pred_fallthru
        _
    $region12: #{encoder_forward.10} parent=5 // pred_fallthru
      _
    %p152 = scmp.lt.s32.totalorder %s10, 8
    // Predicated region
    $region17: #{encoder_forward.10} parent=5 // pred_check
      %p153 = pneg %p152
    $region18: #{encoder_forward.10} parent=5 // pred_check_branch
      %155 = sbr.rel (%p153) target = $region20
    $region19: #{encoder_forward.10} parent=5 // pred_region
      // Predicated region
      $region21: #{encoder_forward.10} parent=19 // pred_check
        %p156 = pneg %p44
      $region22: #{encoder_forward.10} parent=19 // pred_check_branch
        %158 = sbr.rel (%p156) target = $region24
      $region23: #{encoder_forward.10} parent=19 // pred_region
        %s159 = smul.u32 32, %s17
        %p160 = scmp.lt.s32.totalorder %s159, 255
        %s161 = scalar_select %p160, %s159, 255
        %p162 = scmp.lt.s32.totalorder %s18, 0
        %s163 = scalar_select %p162, %s18, 0
        %s164 = sadd.s32 %s163, %s161
        %s165 = smul.addr %s164, 4
        %s166 = scalar_lea.vmem %s0, %s165
        %s167 = smul.u32 32, %s17
      $region24: #{encoder_forward.10} parent=19 // pred_fallthru
        _
    $region20: #{encoder_forward.10} parent=5 // pred_fallthru
      _
    %p168 = scmp.le.s32.totalorder 1, %s10
    %p169 = scmp.lt.s32.totalorder %s10, 9
    %p170 = pnand %p168, %p169
    %p171 = pneg %p170
    // Predicated region
    $region25: #{encoder_forward.10} parent=5 // pred_check
      _
    $region26: #{encoder_forward.10} parent=5 // pred_check_branch
      %173 = sbr.rel (%p170) target = $region28
    $region27: #{encoder_forward.10} parent=5 // pred_region
      %s174 = ssub.s32 %s10, 1
      %s175 = smul.u32 32, %s19
      %p176 = scmp.lt.s32.totalorder %s175, 255
      %s177 = scalar_select %p176, %s175, 255
      %p178 = scmp.lt.s32.totalorder %s20, 0
      %s179 = scalar_select %p178, %s20, 0
      %s180 = sadd.s32 %s179, %s177
      %s181 = smul.addr %s180, 4
      %s182 = scalar_lea.vmem %s0, %s181
      %p183 = pneg %p50
      %p184 = pneg %p47
      %s185 = smul.u32 2, %s20
      %p186 = scmp.lt.s32.totalorder %s185, 1
      %s187 = scalar_select %p186, %s185, 1
      %s188 = smul.addr %s187, 4
      %s189 = scalar_lea.vmem %s1, %s188
      %p190 = pneg %p76
      %p191 = pneg %p73
      %p192 = pneg %p102
      %p193 = pneg %p99
      %s194 = smul.u32 32, %s19
      %p195 = scmp.lt.s32.totalorder %s194, 255
      %s196 = scalar_select %p195, %s194, 255
      %s197 = smul.addr %s196, 8
      %s198 = scalar_lea.vmem %s2, %s197
      %p199 = pneg %p128
      %p200 = pneg %p125
      %p201 = scmp.lt.s32.totalorder %s19, 7
      %s202 = scalar_select %p201, %s19, 7
      %s203 = smul.addr %s202, 8
      %s204 = scalar_lea.vmem %s3, %s203
      %s205 = smul.u32 32, %s19
      %p206 = scmp.lt.s32.totalorder %s205, 255
      %s207 = scalar_select %p206, %s205, 255
      %p208 = scmp.lt.s32.totalorder %s20, 0
      %s209 = scalar_select %p208, %s20, 0
      %s210 = sadd.s32 %s209, %s207
      %s211 = smul.addr %s210, 4
      %s212 = scalar_lea.vmem %s0, %s211
      %s213 = smul.u32 32, %s19
      %s214 = smul.u32 2, %s20
      %p215 = scmp.lt.s32.totalorder %s214, 1
      %s216 = scalar_select %p215, %s214, 1
      %s217 = smul.addr %s216, 4
      %s218 = scalar_lea.vmem %s1, %s217
      %s219 = smul.u32 2, %s20
      %s220 = smul.u32 32, %s19
      %p221 = scmp.lt.s32.totalorder %s220, 255
      %s222 = scalar_select %p221, %s220, 255
      %s223 = smul.addr %s222, 8
      %s224 = scalar_lea.vmem %s2, %s223
      %s225 = smul.u32 32, %s19
      %p226 = scmp.lt.s32.totalorder %s19, 7
      %s227 = scalar_select %p226, %s19, 7
      %s228 = smul.addr %s227, 8
      %s229 = scalar_lea.vmem %s3, %s228
      %p231 = scmp.eq.s32.totalorder %s20, 0
      // Predicated region
      $region29: #{encoder_forward.10} parent=27 // pred_check
        %p232 = pneg %p231
      $region30: #{encoder_forward.10} parent=27 // pred_check_branch
        %234 = sbr.rel (%p232) target = $region32
      $region31: #{encoder_forward.10} parent=27 // pred_region
        %235 = vst [vmem:[%s224] sm:$0xff] 0.0
        %236 = vst [vmem:[%s224 + $0x8] sm:$0xff] 0.0
        %237 = vst [vmem:[%s224 + $0x10] sm:$0xff] 0.0
        %238 = vst [vmem:[%s224 + $0x18] sm:$0xff] 0.0
        %239 = vst [vmem:[%s224 + $0x20] sm:$0xff] 0.0
        %240 = vst [vmem:[%s224 + $0x28] sm:$0xff] 0.0
        %241 = vst [vmem:[%s224 + $0x30] sm:$0xff] 0.0
        %242 = vst [vmem:[%s224 + $0x38] sm:$0xff] 0.0
        %243 = vst [vmem:[%s224 + $0x40] sm:$0xff] 0.0
        %244 = vst [vmem:[%s224 + $0x48] sm:$0xff] 0.0
        %245 = vst [vmem:[%s224 + $0x50] sm:$0xff] 0.0
        %246 = vst [vmem:[%s224 + $0x58] sm:$0xff] 0.0
        %247 = vst [vmem:[%s224 + $0x60] sm:$0xff] 0.0
        %248 = vst [vmem:[%s224 + $0x68] sm:$0xff] 0.0
        %249 = vst [vmem:[%s224 + $0x70] sm:$0xff] 0.0
        %250 = vst [vmem:[%s224 + $0x78] sm:$0xff] 0.0
        %251 = vst [vmem:[%s224 + $0x80] sm:$0xff] 0.0
        %252 = vst [vmem:[%s224 + $0x88] sm:$0xff] 0.0
        %253 = vst [vmem:[%s224 + $0x90] sm:$0xff] 0.0
        %254 = vst [vmem:[%s224 + $0x98] sm:$0xff] 0.0
        %255 = vst [vmem:[%s224 + $0xa0] sm:$0xff] 0.0
        %256 = vst [vmem:[%s224 + $0xa8] sm:$0xff] 0.0
        %257 = vst [vmem:[%s224 + $0xb0] sm:$0xff] 0.0
        %258 = vst [vmem:[%s224 + $0xb8] sm:$0xff] 0.0
        %259 = vst [vmem:[%s224 + $0xc0] sm:$0xff] 0.0
        %260 = vst [vmem:[%s224 + $0xc8] sm:$0xff] 0.0
        %261 = vst [vmem:[%s224 + $0xd0] sm:$0xff] 0.0
        %262 = vst [vmem:[%s224 + $0xd8] sm:$0xff] 0.0
        %263 = vst [vmem:[%s224 + $0xe0] sm:$0xff] 0.0
        %264 = vst [vmem:[%s224 + $0xe8] sm:$0xff] 0.0
        %265 = vst [vmem:[%s224 + $0xf0] sm:$0xff] 0.0
        %266 = vst [vmem:[%s224 + $0xf8] sm:$0xff] 0.0
      $region32: #{encoder_forward.10} parent=27 // pred_fallthru
        _
      %v267 = vld [vmem:[%s224] sm:$0xff]
      %v268 = vld [vmem:[%s224 + $0x8] sm:$0xff]
      %v269 = vld [vmem:[%s224 + $0x10] sm:$0xff]
      %v270 = vld [vmem:[%s224 + $0x18] sm:$0xff]
      %v271 = vld [vmem:[%s224 + $0x20] sm:$0xff]
      %v272 = vld [vmem:[%s224 + $0x28] sm:$0xff]
      %v273 = vld [vmem:[%s224 + $0x30] sm:$0xff]
      %v274 = vld [vmem:[%s224 + $0x38] sm:$0xff]
      %v275 = vld [vmem:[%s224 + $0x40] sm:$0xff]
      %v276 = vld [vmem:[%s224 + $0x48] sm:$0xff]
      %v277 = vld [vmem:[%s224 + $0x50] sm:$0xff]
      %v278 = vld [vmem:[%s224 + $0x58] sm:$0xff]
      %v279 = vld [vmem:[%s224 + $0x60] sm:$0xff]
      %v280 = vld [vmem:[%s224 + $0x68] sm:$0xff]
      %v281 = vld [vmem:[%s224 + $0x70] sm:$0xff]
      %v282 = vld [vmem:[%s224 + $0x78] sm:$0xff]
      %v283 = vld [vmem:[%s224 + $0x80] sm:$0xff]
      %v284 = vld [vmem:[%s224 + $0x88] sm:$0xff]
      %v285 = vld [vmem:[%s224 + $0x90] sm:$0xff]
      %v286 = vld [vmem:[%s224 + $0x98] sm:$0xff]
      %v287 = vld [vmem:[%s224 + $0xa0] sm:$0xff]
      %v288 = vld [vmem:[%s224 + $0xa8] sm:$0xff]
      %v289 = vld [vmem:[%s224 + $0xb0] sm:$0xff]
      %v290 = vld [vmem:[%s224 + $0xb8] sm:$0xff]
      %v291 = vld [vmem:[%s224 + $0xc0] sm:$0xff]
      %v292 = vld [vmem:[%s224 + $0xc8] sm:$0xff]
      %v293 = vld [vmem:[%s224 + $0xd0] sm:$0xff]
      %v294 = vld [vmem:[%s224 + $0xd8] sm:$0xff]
      %v295 = vld [vmem:[%s224 + $0xe0] sm:$0xff]
      %v296 = vld [vmem:[%s224 + $0xe8] sm:$0xff]
      %v297 = vld [vmem:[%s224 + $0xf0] sm:$0xff]
      %v298 = vld [vmem:[%s224 + $0xf8] sm:$0xff]
      %v299 = vld [vmem:[%s212] sm:$0xf]
      %v300 = vld [vmem:[%s212 + $0x4] sm:$0xf]
      %v301 = vld [vmem:[%s212 + $0x8] sm:$0xf]
      %v302 = vld [vmem:[%s212 + $0xc] sm:$0xf]
      %v303 = vld [vmem:[%s212 + $0x10] sm:$0xf]
      %v304 = vld [vmem:[%s212 + $0x14] sm:$0xf]
      %v305 = vld [vmem:[%s212 + $0x18] sm:$0xf]
      %v306 = vld [vmem:[%s212 + $0x1c] sm:$0xf]
      %v307 = vld [vmem:[%s212 + $0x20] sm:$0xf]
      %v308 = vld [vmem:[%s212 + $0x24] sm:$0xf]
      %v309 = vld [vmem:[%s212 + $0x28] sm:$0xf]
      %v310 = vld [vmem:[%s212 + $0x2c] sm:$0xf]
      %v311 = vld [vmem:[%s212 + $0x30] sm:$0xf]
      %v312 = vld [vmem:[%s212 + $0x34] sm:$0xf]
      %v313 = vld [vmem:[%s212 + $0x38] sm:$0xf]
      %v314 = vld [vmem:[%s212 + $0x3c] sm:$0xf]
      %v315 = vld [vmem:[%s212 + $0x40] sm:$0xf]
      %v316 = vld [vmem:[%s212 + $0x44] sm:$0xf]
      %v317 = vld [vmem:[%s212 + $0x48] sm:$0xf]
      %v318 = vld [vmem:[%s212 + $0x4c] sm:$0xf]
      %v319 = vld [vmem:[%s212 + $0x50] sm:$0xf]
      %v320 = vld [vmem:[%s212 + $0x54] sm:$0xf]
      %v321 = vld [vmem:[%s212 + $0x58] sm:$0xf]
      %v322 = vld [vmem:[%s212 + $0x5c] sm:$0xf]
      %v323 = vld [vmem:[%s212 + $0x60] sm:$0xf]
      %v324 = vld [vmem:[%s212 + $0x64] sm:$0xf]
      %v325 = vld [vmem:[%s212 + $0x68] sm:$0xf]
      %v326 = vld [vmem:[%s212 + $0x6c] sm:$0xf]
      %v327 = vld [vmem:[%s212 + $0x70] sm:$0xf]
      %v328 = vld [vmem:[%s212 + $0x74] sm:$0xf]
      %v329 = vld [vmem:[%s212 + $0x78] sm:$0xf]
      %v330 = vld [vmem:[%s212 + $0x7c] sm:$0xf]
      %v331 = vld [vmem:[%s218] sm:$0xf]
      %v332 = vld [vmem:[%s218 + $0x4] sm:$0xf]
      %v365 = vunpack.c.l.b16 %v299
      %v366 = vunpack.c.l.b16 %v300
      %v367 = vunpack.c.l.b16 %v301
      %v368 = vunpack.c.l.b16 %v302
      %v369 = vunpack.c.l.b16 %v303
      %v370 = vunpack.c.l.b16 %v304
      %v371 = vunpack.c.l.b16 %v305
      %v372 = vunpack.c.l.b16 %v306
      %v373 = vunpack.c.l.b16 %v307
      %v374 = vunpack.c.l.b16 %v308
      %v375 = vunpack.c.l.b16 %v309
      %v376 = vunpack.c.l.b16 %v310
      %v377 = vunpack.c.l.b16 %v311
      %v378 = vunpack.c.l.b16 %v312
      %v379 = vunpack.c.l.b16 %v313
      %v380 = vunpack.c.l.b16 %v314
      %v381 = vunpack.c.l.b16 %v315
      %v382 = vunpack.c.l.b16 %v316
      %v383 = vunpack.c.l.b16 %v317
      %v384 = vunpack.c.l.b16 %v318
      %v385 = vunpack.c.l.b16 %v319
      %v386 = vunpack.c.l.b16 %v320
      %v387 = vunpack.c.l.b16 %v321
      %v388 = vunpack.c.l.b16 %v322
      %v389 = vunpack.c.l.b16 %v323
      %v390 = vunpack.c.l.b16 %v324
      %v391 = vunpack.c.l.b16 %v325
      %v392 = vunpack.c.l.b16 %v326
      %v393 = vunpack.c.l.b16 %v327
      %v394 = vunpack.c.l.b16 %v328
      %v395 = vunpack.c.l.b16 %v329
      %v396 = vunpack.c.l.b16 %v330
      %v397 = vpack.c.b16 %v366, %v365
      %v398 = vpack.c.b16 %v368, %v367
      %v399 = vpack.c.b16 %v370, %v369
      %v400 = vpack.c.b16 %v372, %v371
      %v401 = vpack.c.b16 %v374, %v373
      %v402 = vpack.c.b16 %v376, %v375
      %v403 = vpack.c.b16 %v378, %v377
      %v404 = vpack.c.b16 %v380, %v379
      %v405 = vpack.c.b16 %v382, %v381
      %v406 = vpack.c.b16 %v384, %v383
      %v407 = vpack.c.b16 %v386, %v385
      %v408 = vpack.c.b16 %v388, %v387
      %v409 = vpack.c.b16 %v390, %v389
      %v410 = vpack.c.b16 %v392, %v391
      %v411 = vpack.c.b16 %v394, %v393
      %v412 = vpack.c.b16 %v396, %v395
      %v415 = vunpack.c.l.b16 %v331
      %v416 = vunpack.c.l.b16 %v332
      %v417 = vpack.c.b16 %v416, %v415
      %vm419 = vcmask 130048
      %v421 = vsel %vm419, %v397, 0
      %v424 = vsel %vm419, %v398, 0
      %v427 = vsel %vm419, %v399, 0
      %v430 = vsel %vm419, %v400, 0
      %v433 = vsel %vm419, %v401, 0
      %v436 = vsel %vm419, %v402, 0
      %v439 = vsel %vm419, %v403, 0
      %v442 = vsel %vm419, %v404, 0
      %v445 = vsel %vm419, %v405, 0
      %v448 = vsel %vm419, %v406, 0
      %v451 = vsel %vm419, %v407, 0
      %v454 = vsel %vm419, %v408, 0
      %v457 = vsel %vm419, %v409, 0
      %v460 = vsel %vm419, %v410, 0
      %v463 = vsel %vm419, %v411, 0
      %v466 = vsel %vm419, %v412, 0
      %468 = vmatprep.subr.bf16.mxu0 0
      %469 = vmatpush1.bf16.msra.mxu0 %v417
      %470 = vmatprep.subr.bf16.mxu0 0
      %471 = vmatpush1.bf16.msra.mxu0 0
      %472 = vmatprep.subr.bf16.mxu0 0
      %473 = vmatpush1.bf16.msra.mxu0 0
      %474 = vmatprep.subr.bf16.mxu0 0
      %475 = vmatpush1.bf16.msra.mxu0 0
      %476 = vmatprep.subr.bf16.mxu0 0
      %477 = vmatpush1.bf16.msra.mxu0 0
      %478 = vmatprep.subr.bf16.mxu0 0
      %479 = vmatpush1.bf16.msra.mxu0 0
      %480 = vmatprep.subr.bf16.mxu0 0
      %481 = vmatpush1.bf16.msra.mxu0 0
      %482 = vmatprep.subr.bf16.mxu0 0
      %483 = vmatpush1.bf16.msra.mxu0 0
      %484 = vmatprep.subr.bf16.mxu0 0
      %485 = vmatpush1.bf16.msra.mxu0 0
      %486 = vmatprep.subr.bf16.mxu0 0
      %487 = vmatpush1.bf16.msra.mxu0 0
      %488 = vmatprep.subr.bf16.mxu0 0
      %489 = vmatpush1.bf16.msra.mxu0 0
      %490 = vmatprep.subr.bf16.mxu0 0
      %491 = vmatpush1.bf16.msra.mxu0 0
      %492 = vmatprep.subr.bf16.mxu0 0
      %493 = vmatpush1.bf16.msra.mxu0 0
      %494 = vmatprep.subr.bf16.mxu0 0
      %495 = vmatpush1.bf16.msra.mxu0 0
      %496 = vmatprep.subr.bf16.mxu0 0
      %497 = vmatpush1.bf16.msra.mxu0 0
      %498 = vmatprep.subr.bf16.mxu0 0
      %499 = vmatpush1.bf16.msra.mxu0 0
      %500 = vmatprep.mubr.bf16.mxu0 0
      %501 = vmatmul.mubr.bf16.gmra.mrb[0].mxu0 %v421
      %v502 = vpop.f32.mrb[0].mxu0
      %v503 = vadd.f32 0.0, %v502
      %v504 = vpop.f32.mrb[0].mxu0
      %v505 = vpop.f32.mrb[0].mxu0
      %v506 = vadd.f32 0.0, %v505
      %v507 = vpop.f32.mrb[0].mxu0
      %508 = vmatprep.mubr.bf16.mxu0 0
      %509 = vmatmul.mubr.bf16.gmra.mrb[0].mxu0 %v424
      %v510 = vpop.f32.mrb[0].mxu0
      %v511 = vadd.f32 0.0, %v510
      %v512 = vpop.f32.mrb[0].mxu0
      %v513 = vpop.f32.mrb[0].mxu0
      %v514 = vadd.f32 0.0, %v513
      %v515 = vpop.f32.mrb[0].mxu0
      %516 = vmatprep.mubr.bf16.mxu0 0
      %517 = vmatmul.mubr.bf16.gmra.mrb[0].mxu0 %v427
      %v518 = vpop.f32.mrb[0].mxu0
      %v519 = vadd.f32 0.0, %v518
      %v520 = vpop.f32.mrb[0].mxu0
      %v521 = vpop.f32.mrb[0].mxu0
      %v522 = vadd.f32 0.0, %v521
      %v523 = vpop.f32.mrb[0].mxu0
      %524 = vmatprep.mubr.bf16.mxu0 0
      %525 = vmatmul.mubr.bf16.gmra.mrb[0].mxu0 %v430
      %v526 = vpop.f32.mrb[0].mxu0
      %v527 = vadd.f32 0.0, %v526
      %v528 = vpop.f32.mrb[0].mxu0
      %v529 = vpop.f32.mrb[0].mxu0
      %v530 = vadd.f32 0.0, %v529
      %v531 = vpop.f32.mrb[0].mxu0
      %532 = vmatprep.mubr.bf16.mxu0 0
      %533 = vmatmul.mubr.bf16.gmra.mrb[0].mxu0 %v433
      %v534 = vpop.f32.mrb[0].mxu0
      %v535 = vadd.f32 0.0, %v534
      %v536 = vpop.f32.mrb[0].mxu0
      %v537 = vpop.f32.mrb[0].mxu0
      %v538 = vadd.f32 0.0, %v537
      %v539 = vpop.f32.mrb[0].mxu0
      %540 = vmatprep.mubr.bf16.mxu0 0
      %541 = vmatmul.mubr.bf16.gmra.mrb[0].mxu0 %v436
      %v542 = vpop.f32.mrb[0].mxu0
      %v543 = vadd.f32 0.0, %v542
      %v544 = vpop.f32.mrb[0].mxu0
      %v545 = vpop.f32.mrb[0].mxu0
      %v546 = vadd.f32 0.0, %v545
      %v547 = vpop.f32.mrb[0].mxu0
      %548 = vmatprep.mubr.bf16.mxu0 0
      %549 = vmatmul.mubr.bf16.gmra.mrb[0].mxu0 %v439
      %v550 = vpop.f32.mrb[0].mxu0
      %v551 = vadd.f32 0.0, %v550
      %v552 = vpop.f32.mrb[0].mxu0
      %v553 = vpop.f32.mrb[0].mxu0
      %v554 = vadd.f32 0.0, %v553
      %v555 = vpop.f32.mrb[0].mxu0
      %556 = vmatprep.mubr.bf16.mxu0 0
      %557 = vmatmul.mubr.bf16.gmra.mrb[0].mxu0 %v442
      %v558 = vpop.f32.mrb[0].mxu0
      %v559 = vadd.f32 0.0, %v558
      %v560 = vpop.f32.mrb[0].mxu0
      %v561 = vpop.f32.mrb[0].mxu0
      %v562 = vadd.f32 0.0, %v561
      %v563 = vpop.f32.mrb[0].mxu0
      %564 = vmatprep.mubr.bf16.mxu0 0
      %565 = vmatmul.mubr.bf16.gmra.mrb[0].mxu0 %v445
      %v566 = vpop.f32.mrb[0].mxu0
      %v567 = vadd.f32 0.0, %v566
      %v568 = vpop.f32.mrb[0].mxu0
      %v569 = vpop.f32.mrb[0].mxu0
      %v570 = vadd.f32 0.0, %v569
      %v571 = vpop.f32.mrb[0].mxu0
      %572 = vmatprep.mubr.bf16.mxu0 0
      %573 = vmatmul.mubr.bf16.gmra.mrb[0].mxu0 %v448
      %v574 = vpop.f32.mrb[0].mxu0
      %v575 = vadd.f32 0.0, %v574
      %v576 = vpop.f32.mrb[0].mxu0
      %v577 = vpop.f32.mrb[0].mxu0
      %v578 = vadd.f32 0.0, %v577
      %v579 = vpop.f32.mrb[0].mxu0
      %580 = vmatprep.mubr.bf16.mxu0 0
      %581 = vmatmul.mubr.bf16.gmra.mrb[0].mxu0 %v451
      %v582 = vpop.f32.mrb[0].mxu0
      %v583 = vadd.f32 0.0, %v582
      %v584 = vpop.f32.mrb[0].mxu0
      %v585 = vpop.f32.mrb[0].mxu0
      %v586 = vadd.f32 0.0, %v585
      %v587 = vpop.f32.mrb[0].mxu0
      %588 = vmatprep.mubr.bf16.mxu0 0
      %589 = vmatmul.mubr.bf16.gmra.mrb[0].mxu0 %v454
      %v590 = vpop.f32.mrb[0].mxu0
      %v591 = vadd.f32 0.0, %v590
      %v592 = vpop.f32.mrb[0].mxu0
      %v593 = vpop.f32.mrb[0].mxu0
      %v594 = vadd.f32 0.0, %v593
      %v595 = vpop.f32.mrb[0].mxu0
      %596 = vmatprep.mubr.bf16.mxu0 0
      %597 = vmatmul.mubr.bf16.gmra.mrb[0].mxu0 %v457
      %v598 = vpop.f32.mrb[0].mxu0
      %v599 = vadd.f32 0.0, %v598
      %v600 = vpop.f32.mrb[0].mxu0
      %v601 = vpop.f32.mrb[0].mxu0
      %v602 = vadd.f32 0.0, %v601
      %v603 = vpop.f32.mrb[0].mxu0
      %604 = vmatprep.mubr.bf16.mxu0 0
      %605 = vmatmul.mubr.bf16.gmra.mrb[0].mxu0 %v460
      %v606 = vpop.f32.mrb[0].mxu0
      %v607 = vadd.f32 0.0, %v606
      %v608 = vpop.f32.mrb[0].mxu0
      %v609 = vpop.f32.mrb[0].mxu0
      %v610 = vadd.f32 0.0, %v609
      %v611 = vpop.f32.mrb[0].mxu0
      %612 = vmatprep.mubr.bf16.mxu0 0
      %613 = vmatmul.mubr.bf16.gmra.mrb[0].mxu0 %v463
      %v614 = vpop.f32.mrb[0].mxu0
      %v615 = vadd.f32 0.0, %v614
      %v616 = vpop.f32.mrb[0].mxu0
      %v617 = vpop.f32.mrb[0].mxu0
      %v618 = vadd.f32 0.0, %v617
      %v619 = vpop.f32.mrb[0].mxu0
      %620 = vmatprep.mubr.bf16.mxu0 0
      %621 = vmatmul.mubr.bf16.gmra.mrb[0].mxu0 %v466
      %v622 = vpop.f32.mrb[0].mxu0
      %v623 = vadd.f32 0.0, %v622
      %v624 = vpop.f32.mrb[0].mxu0
      %v625 = vpop.f32.mrb[0].mxu0
      %v626 = vadd.f32 0.0, %v625
      %v627 = vpop.f32.mrb[0].mxu0
      %628 = vdwg.mxu0
      %v629 = vadd.f32 %v267, %v503
      %v630 = vadd.f32 %v268, %v506
      %v631 = vadd.f32 %v269, %v511
      %v632 = vadd.f32 %v270, %v514
      %v633 = vadd.f32 %v271, %v519
      %v634 = vadd.f32 %v272, %v522
      %v635 = vadd.f32 %v273, %v527
      %v636 = vadd.f32 %v274, %v530
      %v637 = vadd.f32 %v275, %v535
      %v638 = vadd.f32 %v276, %v538
      %v639 = vadd.f32 %v277, %v543
      %v640 = vadd.f32 %v278, %v546
      %v641 = vadd.f32 %v279, %v551
      %v642 = vadd.f32 %v280, %v554
      %v643 = vadd.f32 %v281, %v559
      %v644 = vadd.f32 %v282, %v562
      %v645 = vadd.f32 %v283, %v567
      %v646 = vadd.f32 %v284, %v570
      %v647 = vadd.f32 %v285, %v575
      %v648 = vadd.f32 %v286, %v578
      %v649 = vadd.f32 %v287, %v583
      %v650 = vadd.f32 %v288, %v586
      %v651 = vadd.f32 %v289, %v591
      %v652 = vadd.f32 %v290, %v594
      %v653 = vadd.f32 %v291, %v599
      %v654 = vadd.f32 %v292, %v602
      %v655 = vadd.f32 %v293, %v607
      %v656 = vadd.f32 %v294, %v610
      %v657 = vadd.f32 %v295, %v615
      %v658 = vadd.f32 %v296, %v618
      %v659 = vadd.f32 %v297, %v623
      %v660 = vadd.f32 %v298, %v626
      %661 = vst [vmem:[%s224] sm:$0xff] %v629
      %662 = vst [vmem:[%s224 + $0x8] sm:$0xff] %v630
      %663 = vst [vmem:[%s224 + $0x10] sm:$0xff] %v631
      %664 = vst [vmem:[%s224 + $0x18] sm:$0xff] %v632
      %665 = vst [vmem:[%s224 + $0x20] sm:$0xff] %v633
      %666 = vst [vmem:[%s224 + $0x28] sm:$0xff] %v634
      %667 = vst [vmem:[%s224 + $0x30] sm:$0xff] %v635
      %668 = vst [vmem:[%s224 + $0x38] sm:$0xff] %v636
      %669 = vst [vmem:[%s224 + $0x40] sm:$0xff] %v637
      %670 = vst [vmem:[%s224 + $0x48] sm:$0xff] %v638
      %671 = vst [vmem:[%s224 + $0x50] sm:$0xff] %v639
      %672 = vst [vmem:[%s224 + $0x58] sm:$0xff] %v640
      %673 = vst [vmem:[%s224 + $0x60] sm:$0xff] %v641
      %674 = vst [vmem:[%s224 + $0x68] sm:$0xff] %v642
      %675 = vst [vmem:[%s224 + $0x70] sm:$0xff] %v643
      %676 = vst [vmem:[%s224 + $0x78] sm:$0xff] %v644
      %677 = vst [vmem:[%s224 + $0x80] sm:$0xff] %v645
      %678 = vst [vmem:[%s224 + $0x88] sm:$0xff] %v646
      %679 = vst [vmem:[%s224 + $0x90] sm:$0xff] %v647
      %680 = vst [vmem:[%s224 + $0x98] sm:$0xff] %v648
      %681 = vst [vmem:[%s224 + $0xa0] sm:$0xff] %v649
      %682 = vst [vmem:[%s224 + $0xa8] sm:$0xff] %v650
      %683 = vst [vmem:[%s224 + $0xb0] sm:$0xff] %v651
      %684 = vst [vmem:[%s224 + $0xb8] sm:$0xff] %v652
      %685 = vst [vmem:[%s224 + $0xc0] sm:$0xff] %v653
      %686 = vst [vmem:[%s224 + $0xc8] sm:$0xff] %v654
      %687 = vst [vmem:[%s224 + $0xd0] sm:$0xff] %v655
      %688 = vst [vmem:[%s224 + $0xd8] sm:$0xff] %v656
      %689 = vst [vmem:[%s224 + $0xe0] sm:$0xff] %v657
      %690 = vst [vmem:[%s224 + $0xe8] sm:$0xff] %v658
      %691 = vst [vmem:[%s224 + $0xf0] sm:$0xff] %v659
      %692 = vst [vmem:[%s224 + $0xf8] sm:$0xff] %v660
      // Predicated region
      $region33: #{encoder_forward.10} parent=27 // pred_check
        %p693 = pneg %p231
      $region34: #{encoder_forward.10} parent=27 // pred_check_branch
        %695 = sbr.rel (%p693) target = $region36
      $region35: #{encoder_forward.10} parent=27 // pred_region
        %v696 = vld [vmem:[%s224] sm:$0xff]
        %v697 = vld [vmem:[%s224 + $0x8] sm:$0xff]
        %v698 = vld [vmem:[%s224 + $0x10] sm:$0xff]
        %v699 = vld [vmem:[%s224 + $0x18] sm:$0xff]
        %v700 = vld [vmem:[%s224 + $0x20] sm:$0xff]
        %v701 = vld [vmem:[%s224 + $0x28] sm:$0xff]
        %v702 = vld [vmem:[%s224 + $0x30] sm:$0xff]
        %v703 = vld [vmem:[%s224 + $0x38] sm:$0xff]
        %v704 = vld [vmem:[%s224 + $0x40] sm:$0xff]
        %v705 = vld [vmem:[%s224 + $0x48] sm:$0xff]
        %v706 = vld [vmem:[%s224 + $0x50] sm:$0xff]
        %v707 = vld [vmem:[%s224 + $0x58] sm:$0xff]
        %v708 = vld [vmem:[%s224 + $0x60] sm:$0xff]
        %v709 = vld [vmem:[%s224 + $0x68] sm:$0xff]
        %v710 = vld [vmem:[%s224 + $0x70] sm:$0xff]
        %v711 = vld [vmem:[%s224 + $0x78] sm:$0xff]
        %v712 = vld [vmem:[%s224 + $0x80] sm:$0xff]
        %v713 = vld [vmem:[%s224 + $0x88] sm:$0xff]
        %v714 = vld [vmem:[%s224 + $0x90] sm:$0xff]
        %v715 = vld [vmem:[%s224 + $0x98] sm:$0xff]
        %v716 = vld [vmem:[%s224 + $0xa0] sm:$0xff]
        %v717 = vld [vmem:[%s224 + $0xa8] sm:$0xff]
        %v718 = vld [vmem:[%s224 + $0xb0] sm:$0xff]
        %v719 = vld [vmem:[%s224 + $0xb8] sm:$0xff]
        %v720 = vld [vmem:[%s224 + $0xc0] sm:$0xff]
        %v721 = vld [vmem:[%s224 + $0xc8] sm:$0xff]
        %v722 = vld [vmem:[%s224 + $0xd0] sm:$0xff]
        %v723 = vld [vmem:[%s224 + $0xd8] sm:$0xff]
        %v724 = vld [vmem:[%s224 + $0xe0] sm:$0xff]
        %v725 = vld [vmem:[%s224 + $0xe8] sm:$0xff]
        %v726 = vld [vmem:[%s224 + $0xf0] sm:$0xff]
        %v727 = vld [vmem:[%s224 + $0xf8] sm:$0xff]
        %v728 = vadd.f32 %v696, %v697
        %v729 = vadd.f32 %v728, %v698
        %v730 = vadd.f32 %v729, %v699
        %v731 = vadd.f32 %v730, %v700
        %v732 = vadd.f32 %v731, %v701
        %v733 = vadd.f32 %v732, %v702
        %v734 = vadd.f32 %v733, %v703
        %v735 = vadd.f32 %v734, %v704
        %v736 = vadd.f32 %v735, %v705
        %v737 = vadd.f32 %v736, %v706
        %v738 = vadd.f32 %v737, %v707
        %v739 = vadd.f32 %v738, %v708
        %v740 = vadd.f32 %v739, %v709
        %v741 = vadd.f32 %v740, %v710
        %v742 = vadd.f32 %v741, %v711
        %v743 = vadd.f32 %v742, %v712
        %v744 = vadd.f32 %v743, %v713
        %v745 = vadd.f32 %v744, %v714
        %v746 = vadd.f32 %v745, %v715
        %v747 = vadd.f32 %v746, %v716
        %v748 = vadd.f32 %v747, %v717
        %v749 = vadd.f32 %v748, %v718
        %v750 = vadd.f32 %v749, %v719
        %v751 = vadd.f32 %v750, %v720
        %v752 = vadd.f32 %v751, %v721
        %v753 = vadd.f32 %v752, %v722
        %v754 = vadd.f32 %v753, %v723
        %v755 = vadd.f32 %v754, %v724
        %v756 = vadd.f32 %v755, %v725
        %v757 = vadd.f32 %v756, %v726
        %v758 = vadd.f32 %v757, %v727
        %v759 = vrot.slane %v758, 4
        %v760 = vadd.f32 %v758, %v759
        %v761 = vrot.slane %v760, 2
        %v762 = vadd.f32 %v760, %v761
        %v763 = vrot.slane %v762, 1
        %v764 = vadd.f32 %v762, %v763
        %v765 = vmul.f32 %v696, %v696
        %v766 = vmul.f32 %v697, %v697
        %v767 = vmul.f32 %v698, %v698
        %v768 = vmul.f32 %v699, %v699
        %v769 = vmul.f32 %v700, %v700
        %v770 = vmul.f32 %v701, %v701
        %v771 = vmul.f32 %v702, %v702
        %v772 = vmul.f32 %v703, %v703
        %v773 = vmul.f32 %v704, %v704
        %v774 = vmul.f32 %v705, %v705
        %v775 = vmul.f32 %v706, %v706
        %v776 = vmul.f32 %v707, %v707
        %v777 = vmul.f32 %v708, %v708
        %v778 = vmul.f32 %v709, %v709
        %v779 = vmul.f32 %v710, %v710
        %v780 = vmul.f32 %v711, %v711
        %v781 = vmul.f32 %v712, %v712
        %v782 = vmul.f32 %v713, %v713
        %v783 = vmul.f32 %v714, %v714
        %v784 = vmul.f32 %v715, %v715
        %v785 = vmul.f32 %v716, %v716
        %v786 = vmul.f32 %v717, %v717
        %v787 = vmul.f32 %v718, %v718
        %v788 = vmul.f32 %v719, %v719
        %v789 = vmul.f32 %v720, %v720
        %v790 = vmul.f32 %v721, %v721
        %v791 = vmul.f32 %v722, %v722
        %v792 = vmul.f32 %v723, %v723
        %v793 = vmul.f32 %v724, %v724
        %v794 = vmul.f32 %v725, %v725
        %v795 = vmul.f32 %v726, %v726
        %v796 = vmul.f32 %v727, %v727
        %v797 = vadd.f32 %v765, %v766
        %v798 = vadd.f32 %v797, %v767
        %v799 = vadd.f32 %v798, %v768
        %v800 = vadd.f32 %v799, %v769
        %v801 = vadd.f32 %v800, %v770
        %v802 = vadd.f32 %v801, %v771
        %v803 = vadd.f32 %v802, %v772
        %v804 = vadd.f32 %v803, %v773
        %v805 = vadd.f32 %v804, %v774
        %v806 = vadd.f32 %v805, %v775
        %v807 = vadd.f32 %v806, %v776
        %v808 = vadd.f32 %v807, %v777
        %v809 = vadd.f32 %v808, %v778
        %v810 = vadd.f32 %v809, %v779
        %v811 = vadd.f32 %v810, %v780
        %v812 = vadd.f32 %v811, %v781
        %v813 = vadd.f32 %v812, %v782
        %v814 = vadd.f32 %v813, %v783
        %v815 = vadd.f32 %v814, %v784
        %v816 = vadd.f32 %v815, %v785
        %v817 = vadd.f32 %v816, %v786
        %v818 = vadd.f32 %v817, %v787
        %v819 = vadd.f32 %v818, %v788
        %v820 = vadd.f32 %v819, %v789
        %v821 = vadd.f32 %v820, %v790
        %v822 = vadd.f32 %v821, %v791
        %v823 = vadd.f32 %v822, %v792
        %v824 = vadd.f32 %v823, %v793
        %v825 = vadd.f32 %v824, %v794
        %v826 = vadd.f32 %v825, %v795
        %v827 = vadd.f32 %v826, %v796
        %v828 = vrot.slane %v827, 4
        %v829 = vadd.f32 %v827, %v828
        %v830 = vrot.slane %v829, 2
        %v831 = vadd.f32 %v829, %v830
        %v832 = vrot.slane %v831, 1
        %v833 = vadd.f32 %v831, %v832
        %v834 = vlaneseq
        %v835 = vshrl.u32 %v834, 7
        %vm836 = vcmp.eq.s32.totalorder %v835, 0
        %vm837 = vcmp.eq.s32.totalorder %v835, 1
        %v838 = vsel %vm837, %v833, 0.0
        %v839 = vsel %vm836, %v764, %v838
        %840 = vst [vmem:[%s229] sm:$0xff] %v839
      $region36: #{encoder_forward.10} parent=27 // pred_fallthru
        _
      %s841 = smul.u32 32, %s19
      %p842 = scmp.lt.s32.totalorder %s841, 255
      %s843 = scalar_select %p842, %s841, 255
      %s844 = smul.addr %s843, 8
      %s845 = scalar_lea.vmem %s2, %s844
      %p846 = scmp.lt.s32.totalorder %s19, 7
      %s847 = scalar_select %p846, %s19, 7
      %s848 = smul.addr %s847, 8
      %s849 = scalar_lea.vmem %s3, %s848
      // Predicated region
      $region37: #{encoder_forward.10} parent=27 // pred_check
        %p850 = pneg %p99
      $region38: #{encoder_forward.10} parent=27 // pred_check_branch
        %852 = sbr.rel (%p850) target = $region40
      $region39: #{encoder_forward.10} parent=27 // pred_region
        %s853 = smul.u32 32, %s19
      $region40: #{encoder_forward.10} parent=27 // pred_fallthru
        _
      // Predicated region
      $region41: #{encoder_forward.10} parent=27 // pred_check
        %p854 = pneg %p125
      $region42: #{encoder_forward.10} parent=27 // pred_check_branch
        %856 = sbr.rel (%p854) target = $region44
      $region43: #{encoder_forward.10} parent=27 // pred_region
        _
      $region44: #{encoder_forward.10} parent=27 // pred_fallthru
        _
    $region28: #{encoder_forward.10} parent=5 // pred_fallthru
      _
    %p857 = scmp.le.s32.totalorder 2, %s10
    // Predicated region
    $region45: #{encoder_forward.10} parent=5 // pred_check
      %p858 = pneg %p857
    $region46: #{encoder_forward.10} parent=5 // pred_check_branch
      %860 = sbr.rel (%p858) target = $region48
    $region47: #{encoder_forward.10} parent=5 // pred_region
      %s861 = ssub.s32 %s10, 2
      // Predicated region
      $region49: #{encoder_forward.10} parent=47 // pred_check
        %p862 = pneg %p105
      $region50: #{encoder_forward.10} parent=47 // pred_check_branch
        %864 = sbr.rel (%p862) target = $region52
      $region51: #{encoder_forward.10} parent=47 // pred_region
        %s865 = smul.u32 32, %s21
        %p866 = scmp.lt.s32.totalorder %s865, 255
        %s867 = scalar_select %p866, %s865, 255
        %s868 = smul.addr %s867, 8
        %s869 = scalar_lea.vmem %s2, %s868
      $region52: #{encoder_forward.10} parent=47 // pred_fallthru
        _
      // Predicated region
      $region53: #{encoder_forward.10} parent=47 // pred_check
        %p870 = pneg %p131
      $region54: #{encoder_forward.10} parent=47 // pred_check_branch
        %872 = sbr.rel (%p870) target = $region56
      $region55: #{encoder_forward.10} parent=47 // pred_region
        %p873 = scmp.lt.s32.totalorder %s21, 7
        %s874 = scalar_select %p873, %s21, 7
        %s875 = smul.addr %s874, 8
        %s876 = scalar_lea.vmem %s3, %s875
      $region56: #{encoder_forward.10} parent=47 // pred_fallthru
        _
    $region48: #{encoder_forward.10} parent=5 // pred_fallthru
      _
  $region6: #{encoder_forward.10} parent=0 // loop_footer
    %s14 = sadd.s32 1, %s10
  $region7: #{encoder_forward.10} parent=0 // loop_footer_branch
    %9 = sbr.rel target = $region3
  $region8: #{encoder_forward.10} parent=0 // loop_exit
    _

// kernel: encoder_forward.12
$region0: #{encoder_forward.12}
  #allocation0 [shape = 'u32[]', space=smem, size = 0x4, offset = 0x4, fixed_abs, tag = 'smem constant byte address 0x4 - core index']
  #allocation1 [shape = 'u32[144,128]{1,0:T(1,128)}', space=vmem, size = 0x12000, scoped, tag = 'internal scratch']
  %s0 = inlined_call_operand.vmem [shape: bf16[512,128], index: 0, kind: input, shape index: {}]
  %s1 = inlined_call_operand.vmem [shape: bf16[128,128], index: 1, kind: input, shape index: {}]
  %s2 = inlined_call_operand.vmem [shape: f32[512,128], index: 2, kind: output, shape index: {0}]
  %s3 = inlined_call_operand.vmem [shape: f32[16,128], index: 3, kind: output, shape index: {1}]
  %4 = xla_tuple %s2, %s3
  %s5 = sld [smem:[#allocation0]]
  $region57: #{encoder_forward.12} parent=0
    _
  %s7 = ssub.s32 1, %s5
  %s8 = scalar_select 0, %s7, %s5
  loop: start=0, step=1, limit=4
  $region2: #{encoder_forward.12} parent=0 // loop_pre_header
    _
  $region3: #{encoder_forward.12} parent=0 // loop_header
    %s10 = sphi 0, %s14
    %p11 = scmp.ge.s32.totalorder %s10, 4
    %s17 = sphi 0, %s29
    %s18 = sphi 0, %s25
    %s19 = sphi 0, %s17
    %s20 = sphi 0, %s18
    %s21 = sphi 0, %s19
    %s22 = sphi 0, %s20
    %s34 = sphi 0, %s36
    %s37 = sphi 0, %s34
    %s38 = sphi 0, %s37
    %s54 = sphi 0, %s38
    %s60 = sphi 0, %s62
    %s63 = sphi 0, %s60
    %s64 = sphi 0, %s63
    %s80 = sphi 0, %s64
    %s86 = sphi 0, %s88
    %s89 = sphi 0, %s86
    %s90 = sphi 0, %s89
    %s106 = sphi 0, %s90
    %s112 = sphi 0, %s114
    %s115 = sphi 0, %s112
    %s116 = sphi 0, %s115
    %s132 = sphi 0, %s116
  $region4: #{encoder_forward.12} parent=0 // loop_header_branch
    %13 = sbr.rel (%p11) target = $region8
  $region5: #{encoder_forward.12} parent=0 // loop_body
    %s15 = ssub.s32 %s10, 1
    %s16 = ssub.s32 %s10, 2
    %s23 = sadd.s32 1, %s18
    %p24 = scmp.ge.s32.totalorder %s23, 1
    %s25 = scalar_select %p24, 0, %s23
    %s26 = sadd.s32 1, %s17
    %s27 = scalar_select %p24, %s26, %s17
    %p28 = scmp.ge.s32.totalorder %s27, 2
    %s29 = scalar_select %p28, 0, %s27
    %s30 = ssub.s32 %s17, %s29
    %s31 = ssub.s32 %s18, %s25
    %s32 = sor.u32 %s30, %s31
    %p33 = scmp.eq.s32.totalorder %s32, 0
    %s35 = sadd.s32 %s34, 1
    %s36 = scalar_select %p33, %s34, %s35
    %p39 = pneg %p33
    %p40 = scmp.eq.s32.totalorder %s10, 1
    %p41 = por %p39, %p40
    %p42 = scmp.ne.s32.totalorder %s34, %s37
    %p43 = scmp.eq.s32.totalorder %s10, 0
    %p44 = por %p42, %p43
    %p45 = scmp.ne.s32.totalorder %s34, %s37
    %p46 = scmp.eq.s32.totalorder %s15, 1
    %p47 = por %p45, %p46
    %p48 = scmp.ne.s32.totalorder %s37, %s38
    %p49 = scmp.eq.s32.totalorder %s15, 0
    %p50 = por %p48, %p49
    %p51 = scmp.ne.s32.totalorder %s37, %s38
    %p52 = scmp.eq.s32.totalorder %s16, 1
    %p53 = por %p51, %p52
    %p55 = scmp.ne.s32.totalorder %s38, %s54
    %p56 = scmp.eq.s32.totalorder %s16, 0
    %p57 = por %p55, %p56
    %s58 = ssub.s32 %s18, %s25
    %p59 = scmp.eq.s32.totalorder %s58, 0
    %s61 = sadd.s32 %s60, 1
    %s62 = scalar_select %p59, %s60, %s61
    %p65 = pneg %p59
    %p66 = scmp.eq.s32.totalorder %s10, 1
    %p67 = por %p65, %p66
    %p68 = scmp.ne.s32.totalorder %s60, %s63
    %p69 = scmp.eq.s32.totalorder %s10, 0
    %p70 = por %p68, %p69
    %p71 = scmp.ne.s32.totalorder %s60, %s63
    %p72 = scmp.eq.s32.totalorder %s15, 1
    %p73 = por %p71, %p72
    %p74 = scmp.ne.s32.totalorder %s63, %s64
    %p75 = scmp.eq.s32.totalorder %s15, 0
    %p76 = por %p74, %p75
    %p77 = scmp.ne.s32.totalorder %s63, %s64
    %p78 = scmp.eq.s32.totalorder %s16, 1
    %p79 = por %p77, %p78
    %p81 = scmp.ne.s32.totalorder %s64, %s80
    %p82 = scmp.eq.s32.totalorder %s16, 0
    %p83 = por %p81, %p82
    %s84 = ssub.s32 %s17, %s29
    %p85 = scmp.eq.s32.totalorder %s84, 0
    %s87 = sadd.s32 %s86, 1
    %s88 = scalar_select %p85, %s86, %s87
    %p91 = pneg %p85
    %p92 = scmp.eq.s32.totalorder %s10, 1
    %p93 = por %p91, %p92
    %p94 = scmp.ne.s32.totalorder %s86, %s89
    %p95 = scmp.eq.s32.totalorder %s10, 0
    %p96 = por %p94, %p95
    %p97 = scmp.ne.s32.totalorder %s86, %s89
    %p98 = scmp.eq.s32.totalorder %s15, 1
    %p99 = por %p97, %p98
    %p100 = scmp.ne.s32.totalorder %s89, %s90
    %p101 = scmp.eq.s32.totalorder %s15, 0
    %p102 = por %p100, %p101
    %p103 = scmp.ne.s32.totalorder %s89, %s90
    %p104 = scmp.eq.s32.totalorder %s16, 1
    %p105 = por %p103, %p104
    %p107 = scmp.ne.s32.totalorder %s90, %s106
    %p108 = scmp.eq.s32.totalorder %s16, 0
    %p109 = por %p107, %p108
    %s110 = ssub.s32 %s17, %s29
    %p111 = scmp.eq.s32.totalorder %s110, 0
    %s113 = sadd.s32 %s112, 1
    %s114 = scalar_select %p111, %s112, %s113
    %p117 = pneg %p111
    %p118 = scmp.eq.s32.totalorder %s10, 1
    %p119 = por %p117, %p118
    %p120 = scmp.ne.s32.totalorder %s112, %s115
    %p121 = scmp.eq.s32.totalorder %s10, 0
    %p122 = por %p120, %p121
    %p123 = scmp.ne.s32.totalorder %s112, %s115
    %p124 = scmp.eq.s32.totalorder %s15, 1
    %p125 = por %p123, %p124
    %p126 = scmp.ne.s32.totalorder %s115, %s116
    %p127 = scmp.eq.s32.totalorder %s15, 0
    %p128 = por %p126, %p127
    %p129 = scmp.ne.s32.totalorder %s115, %s116
    %p130 = scmp.eq.s32.totalorder %s16, 1
    %p131 = por %p129, %p130
    %p133 = scmp.ne.s32.totalorder %s116, %s132
    %p134 = scmp.eq.s32.totalorder %s16, 0
    %p135 = por %p133, %p134
    %p136 = scmp.le.s32.totalorder 1, %s10
    %p137 = scmp.lt.s32.totalorder %s10, 3
    %p138 = pnand %p136, %p137
    %p139 = pneg %p138
    // Predicated region
    $region9: #{encoder_forward.12} parent=5 // pred_check
      _
    $region10: #{encoder_forward.12} parent=5 // pred_check_branch
      %141 = sbr.rel (%p138) target = $region12
    $region11: #{encoder_forward.12} parent=5 // pred_region
      %s142 = ssub.s32 %s10, 1
      // Predicated region
      $region13: #{encoder_forward.12} parent=11 // pred_check
        %p143 = pneg %p76
      $region14: #{encoder_forward.12} parent=11 // pred_check_branch
        %145 = sbr.rel (%p143) target = $region16
      $region15: #{encoder_forward.12} parent=11 // pred_region
        %s146 = smul.u32 16, %s20
        %p147 = scmp.lt.s32.totalorder %s146, 15
        %s148 = scalar_select %p147, %s146, 15
        %s149 = smul.addr %s148, 4
        %s150 = scalar_lea.vmem %s1, %s149
        %s151 = smul.u32 16, %s20
      $region16: #{encoder_forward.12} parent=11 // pred_fallthru
        _
    $region12: #{encoder_forward.12} parent=5 // pred_fallthru
      _
    %p152 = scmp.lt.s32.totalorder %s10, 2
    // Predicated region
    $region17: #{encoder_forward.12} parent=5 // pred_check
      %p153 = pneg %p152
    $region18: #{encoder_forward.12} parent=5 // pred_check_branch
      %155 = sbr.rel (%p153) target = $region20
    $region19: #{encoder_forward.12} parent=5 // pred_region
      // Predicated region
      $region21: #{encoder_forward.12} parent=19 // pred_check
        %p156 = pneg %p44
      $region22: #{encoder_forward.12} parent=19 // pred_check_branch
        %158 = sbr.rel (%p156) target = $region24
      $region23: #{encoder_forward.12} parent=19 // pred_region
        %s159 = smul.u32 32, %s17
        %p160 = scmp.lt.s32.totalorder %s159, 63
        %s161 = scalar_select %p160, %s159, 63
        %p162 = scmp.lt.s32.totalorder %s18, 0
        %s163 = scalar_select %p162, %s18, 0
        %s164 = sadd.s32 %s163, %s161
        %s165 = smul.addr %s164, 4
        %s166 = scalar_lea.vmem %s0, %s165
        %s167 = smul.u32 32, %s17
      $region24: #{encoder_forward.12} parent=19 // pred_fallthru
        _
    $region20: #{encoder_forward.12} parent=5 // pred_fallthru
      _
    %p168 = scmp.le.s32.totalorder 1, %s10
    %p169 = scmp.lt.s32.totalorder %s10, 3
    %p170 = pnand %p168, %p169
    %p171 = pneg %p170
    // Predicated region
    $region25: #{encoder_forward.12} parent=5 // pred_check
      _
    $region26: #{encoder_forward.12} parent=5 // pred_check_branch
      %173 = sbr.rel (%p170) target = $region28
    $region27: #{encoder_forward.12} parent=5 // pred_region
      %s174 = ssub.s32 %s10, 1
      %s175 = smul.u32 32, %s19
      %p176 = scmp.lt.s32.totalorder %s175, 63
      %s177 = scalar_select %p176, %s175, 63
      %p178 = scmp.lt.s32.totalorder %s20, 0
      %s179 = scalar_select %p178, %s20, 0
      %s180 = sadd.s32 %s179, %s177
      %s181 = smul.addr %s180, 4
      %s182 = scalar_lea.vmem %s0, %s181
      %p183 = pneg %p50
      %p184 = pneg %p47
      %s185 = smul.u32 16, %s20
      %p186 = scmp.lt.s32.totalorder %s185, 15
      %s187 = scalar_select %p186, %s185, 15
      %s188 = smul.addr %s187, 4
      %s189 = scalar_lea.vmem %s1, %s188
      %p190 = pneg %p76
      %p191 = pneg %p73
      %p192 = pneg %p102
      %p193 = pneg %p99
      %s194 = smul.u32 32, %s19
      %p195 = scmp.lt.s32.totalorder %s194, 63
      %s196 = scalar_select %p195, %s194, 63
      %s197 = smul.addr %s196, 8
      %s198 = scalar_lea.vmem %s2, %s197
      %p199 = pneg %p128
      %p200 = pneg %p125
      %p201 = scmp.lt.s32.totalorder %s19, 1
      %s202 = scalar_select %p201, %s19, 1
      %s203 = smul.addr %s202, 8
      %s204 = scalar_lea.vmem %s3, %s203
      %s205 = smul.u32 32, %s19
      %p206 = scmp.lt.s32.totalorder %s205, 63
      %s207 = scalar_select %p206, %s205, 63
      %p208 = scmp.lt.s32.totalorder %s20, 0
      %s209 = scalar_select %p208, %s20, 0
      %s210 = sadd.s32 %s209, %s207
      %s211 = smul.addr %s210, 4
      %s212 = scalar_lea.vmem %s0, %s211
      %s213 = smul.u32 32, %s19
      %s214 = smul.u32 16, %s20
      %p215 = scmp.lt.s32.totalorder %s214, 15
      %s216 = scalar_select %p215, %s214, 15
      %s217 = smul.addr %s216, 4
      %s218 = scalar_lea.vmem %s1, %s217
      %s219 = smul.u32 16, %s20
      %s220 = smul.u32 32, %s19
      %p221 = scmp.lt.s32.totalorder %s220, 63
      %s222 = scalar_select %p221, %s220, 63
      %s223 = smul.addr %s222, 8
      %s224 = scalar_lea.vmem %s2, %s223
      %s225 = smul.u32 32, %s19
      %p226 = scmp.lt.s32.totalorder %s19, 1
      %s227 = scalar_select %p226, %s19, 1
      %s228 = smul.addr %s227, 8
      %s229 = scalar_lea.vmem %s3, %s228
      %p231 = scmp.eq.s32.totalorder %s20, 0
      // Predicated region
      $region29: #{encoder_forward.12} parent=27 // pred_check
        %p232 = pneg %p231
      $region30: #{encoder_forward.12} parent=27 // pred_check_branch
        %234 = sbr.rel (%p232) target = $region32
      $region31: #{encoder_forward.12} parent=27 // pred_region
        %235 = vst [vmem:[%s224] sm:$0xff] 0.0
        %236 = vst [vmem:[%s224 + $0x8] sm:$0xff] 0.0
        %237 = vst [vmem:[%s224 + $0x10] sm:$0xff] 0.0
        %238 = vst [vmem:[%s224 + $0x18] sm:$0xff] 0.0
        %239 = vst [vmem:[%s224 + $0x20] sm:$0xff] 0.0
        %240 = vst [vmem:[%s224 + $0x28] sm:$0xff] 0.0
        %241 = vst [vmem:[%s224 + $0x30] sm:$0xff] 0.0
        %242 = vst [vmem:[%s224 + $0x38] sm:$0xff] 0.0
        %243 = vst [vmem:[%s224 + $0x40] sm:$0xff] 0.0
        %244 = vst [vmem:[%s224 + $0x48] sm:$0xff] 0.0
        %245 = vst [vmem:[%s224 + $0x50] sm:$0xff] 0.0
        %246 = vst [vmem:[%s224 + $0x58] sm:$0xff] 0.0
        %247 = vst [vmem:[%s224 + $0x60] sm:$0xff] 0.0
        %248 = vst [vmem:[%s224 + $0x68] sm:$0xff] 0.0
        %249 = vst [vmem:[%s224 + $0x70] sm:$0xff] 0.0
        %250 = vst [vmem:[%s224 + $0x78] sm:$0xff] 0.0
        %251 = vst [vmem:[%s224 + $0x80] sm:$0xff] 0.0
        %252 = vst [vmem:[%s224 + $0x88] sm:$0xff] 0.0
        %253 = vst [vmem:[%s224 + $0x90] sm:$0xff] 0.0
        %254 = vst [vmem:[%s224 + $0x98] sm:$0xff] 0.0
        %255 = vst [vmem:[%s224 + $0xa0] sm:$0xff] 0.0
        %256 = vst [vmem:[%s224 + $0xa8] sm:$0xff] 0.0
        %257 = vst [vmem:[%s224 + $0xb0] sm:$0xff] 0.0
        %258 = vst [vmem:[%s224 + $0xb8] sm:$0xff] 0.0
        %259 = vst [vmem:[%s224 + $0xc0] sm:$0xff] 0.0
        %260 = vst [vmem:[%s224 + $0xc8] sm:$0xff] 0.0
        %261 = vst [vmem:[%s224 + $0xd0] sm:$0xff] 0.0
        %262 = vst [vmem:[%s224 + $0xd8] sm:$0xff] 0.0
        %263 = vst [vmem:[%s224 + $0xe0] sm:$0xff] 0.0
        %264 = vst [vmem:[%s224 + $0xe8] sm:$0xff] 0.0
        %265 = vst [vmem:[%s224 + $0xf0] sm:$0xff] 0.0
        %266 = vst [vmem:[%s224 + $0xf8] sm:$0xff] 0.0
      $region32: #{encoder_forward.12} parent=27 // pred_fallthru
        _
      %v267 = vld [vmem:[%s224] sm:$0xff]
      %v268 = vld [vmem:[%s224 + $0x8] sm:$0xff]
      %v269 = vld [vmem:[%s224 + $0x10] sm:$0xff]
      %v270 = vld [vmem:[%s224 + $0x18] sm:$0xff]
      %v271 = vld [vmem:[%s224 + $0x20] sm:$0xff]
      %v272 = vld [vmem:[%s224 + $0x28] sm:$0xff]
      %v273 = vld [vmem:[%s224 + $0x30] sm:$0xff]
      %v274 = vld [vmem:[%s224 + $0x38] sm:$0xff]
      %v275 = vld [vmem:[%s224 + $0x40] sm:$0xff]
      %v276 = vld [vmem:[%s224 + $0x48] sm:$0xff]
      %v277 = vld [vmem:[%s224 + $0x50] sm:$0xff]
      %v278 = vld [vmem:[%s224 + $0x58] sm:$0xff]
      %v279 = vld [vmem:[%s224 + $0x60] sm:$0xff]
      %v280 = vld [vmem:[%s224 + $0x68] sm:$0xff]
      %v281 = vld [vmem:[%s224 + $0x70] sm:$0xff]
      %v282 = vld [vmem:[%s224 + $0x78] sm:$0xff]
      %v283 = vld [vmem:[%s224 + $0x80] sm:$0xff]
      %v284 = vld [vmem:[%s224 + $0x88] sm:$0xff]
      %v285 = vld [vmem:[%s224 + $0x90] sm:$0xff]
      %v286 = vld [vmem:[%s224 + $0x98] sm:$0xff]
      %v287 = vld [vmem:[%s224 + $0xa0] sm:$0xff]
      %v288 = vld [vmem:[%s224 + $0xa8] sm:$0xff]
      %v289 = vld [vmem:[%s224 + $0xb0] sm:$0xff]
      %v290 = vld [vmem:[%s224 + $0xb8] sm:$0xff]
      %v291 = vld [vmem:[%s224 + $0xc0] sm:$0xff]
      %v292 = vld [vmem:[%s224 + $0xc8] sm:$0xff]
      %v293 = vld [vmem:[%s224 + $0xd0] sm:$0xff]
      %v294 = vld [vmem:[%s224 + $0xd8] sm:$0xff]
      %v295 = vld [vmem:[%s224 + $0xe0] sm:$0xff]
      %v296 = vld [vmem:[%s224 + $0xe8] sm:$0xff]
      %v297 = vld [vmem:[%s224 + $0xf0] sm:$0xff]
      %v298 = vld [vmem:[%s224 + $0xf8] sm:$0xff]
      %v299 = vld [vmem:[%s212] sm:$0xf]
      %v300 = vld [vmem:[%s212 + $0x4] sm:$0xf]
      %v301 = vld [vmem:[%s212 + $0x8] sm:$0xf]
      %v302 = vld [vmem:[%s212 + $0xc] sm:$0xf]
      %v303 = vld [vmem:[%s212 + $0x10] sm:$0xf]
      %v304 = vld [vmem:[%s212 + $0x14] sm:$0xf]
      %v305 = vld [vmem:[%s212 + $0x18] sm:$0xf]
      %v306 = vld [vmem:[%s212 + $0x1c] sm:$0xf]
      %v307 = vld [vmem:[%s212 + $0x20] sm:$0xf]
      %v308 = vld [vmem:[%s212 + $0x24] sm:$0xf]
      %v309 = vld [vmem:[%s212 + $0x28] sm:$0xf]
      %v310 = vld [vmem:[%s212 + $0x2c] sm:$0xf]
      %v311 = vld [vmem:[%s212 + $0x30] sm:$0xf]
      %v312 = vld [vmem:[%s212 + $0x34] sm:$0xf]
      %v313 = vld [vmem:[%s212 + $0x38] sm:$0xf]
      %v314 = vld [vmem:[%s212 + $0x3c] sm:$0xf]
      %v315 = vld [vmem:[%s212 + $0x40] sm:$0xf]
      %v316 = vld [vmem:[%s212 + $0x44] sm:$0xf]
      %v317 = vld [vmem:[%s212 + $0x48] sm:$0xf]
      %v318 = vld [vmem:[%s212 + $0x4c] sm:$0xf]
      %v319 = vld [vmem:[%s212 + $0x50] sm:$0xf]
      %v320 = vld [vmem:[%s212 + $0x54] sm:$0xf]
      %v321 = vld [vmem:[%s212 + $0x58] sm:$0xf]
      %v322 = vld [vmem:[%s212 + $0x5c] sm:$0xf]
      %v323 = vld [vmem:[%s212 + $0x60] sm:$0xf]
      %v324 = vld [vmem:[%s212 + $0x64] sm:$0xf]
      %v325 = vld [vmem:[%s212 + $0x68] sm:$0xf]
      %v326 = vld [vmem:[%s212 + $0x6c] sm:$0xf]
      %v327 = vld [vmem:[%s212 + $0x70] sm:$0xf]
      %v328 = vld [vmem:[%s212 + $0x74] sm:$0xf]
      %v329 = vld [vmem:[%s212 + $0x78] sm:$0xf]
      %v330 = vld [vmem:[%s212 + $0x7c] sm:$0xf]
      %v331 = vld [vmem:[%s218] sm:$0xf]
      %v332 = vld [vmem:[%s218 + $0x4] sm:$0xf]
      %v333 = vld [vmem:[%s218 + $0x8] sm:$0xf]
      %v334 = vld [vmem:[%s218 + $0xc] sm:$0xf]
      %v335 = vld [vmem:[%s218 + $0x10] sm:$0xf]
      %v336 = vld [vmem:[%s218 + $0x14] sm:$0xf]
      %v337 = vld [vmem:[%s218 + $0x18] sm:$0xf]
      %v338 = vld [vmem:[%s218 + $0x1c] sm:$0xf]
      %v339 = vld [vmem:[%s218 + $0x20] sm:$0xf]
      %v340 = vld [vmem:[%s218 + $0x24] sm:$0xf]
      %v341 = vld [vmem:[%s218 + $0x28] sm:$0xf]
      %v342 = vld [vmem:[%s218 + $0x2c] sm:$0xf]
      %v343 = vld [vmem:[%s218 + $0x30] sm:$0xf]
      %v344 = vld [vmem:[%s218 + $0x34] sm:$0xf]
      %v345 = vld [vmem:[%s218 + $0x38] sm:$0xf]
      %v346 = vld [vmem:[%s218 + $0x3c] sm:$0xf]
      %v379 = vunpack.c.l.b16 %v299
      %v380 = vunpack.c.l.b16 %v300
      %v381 = vunpack.c.l.b16 %v301
      %v382 = vunpack.c.l.b16 %v302
      %v383 = vunpack.c.l.b16 %v303
      %v384 = vunpack.c.l.b16 %v304
      %v385 = vunpack.c.l.b16 %v305
      %v386 = vunpack.c.l.b16 %v306
      %v387 = vunpack.c.l.b16 %v307
      %v388 = vunpack.c.l.b16 %v308
      %v389 = vunpack.c.l.b16 %v309
      %v390 = vunpack.c.l.b16 %v310
      %v391 = vunpack.c.l.b16 %v311
      %v392 = vunpack.c.l.b16 %v312
      %v393 = vunpack.c.l.b16 %v313
      %v394 = vunpack.c.l.b16 %v314
      %v395 = vunpack.c.l.b16 %v315
      %v396 = vunpack.c.l.b16 %v316
      %v397 = vunpack.c.l.b16 %v317
      %v398 = vunpack.c.l.b16 %v318
      %v399 = vunpack.c.l.b16 %v319
      %v400 = vunpack.c.l.b16 %v320
      %v401 = vunpack.c.l.b16 %v321
      %v402 = vunpack.c.l.b16 %v322
      %v403 = vunpack.c.l.b16 %v323
      %v404 = vunpack.c.l.b16 %v324
      %v405 = vunpack.c.l.b16 %v325
      %v406 = vunpack.c.l.b16 %v326
      %v407 = vunpack.c.l.b16 %v327
      %v408 = vunpack.c.l.b16 %v328
      %v409 = vunpack.c.l.b16 %v329
      %v410 = vunpack.c.l.b16 %v330
      %v411 = vpack.c.b16 %v380, %v379
      %v412 = vpack.c.b16 %v382, %v381
      %v413 = vpack.c.b16 %v384, %v383
      %v414 = vpack.c.b16 %v386, %v385
      %v415 = vpack.c.b16 %v388, %v387
      %v416 = vpack.c.b16 %v390, %v389
      %v417 = vpack.c.b16 %v392, %v391
      %v418 = vpack.c.b16 %v394, %v393
      %v419 = vpack.c.b16 %v396, %v395
      %v420 = vpack.c.b16 %v398, %v397
      %v421 = vpack.c.b16 %v400, %v399
      %v422 = vpack.c.b16 %v402, %v401
      %v423 = vpack.c.b16 %v404, %v403
      %v424 = vpack.c.b16 %v406, %v405
      %v425 = vpack.c.b16 %v408, %v407
      %v426 = vpack.c.b16 %v410, %v409
      %v459 = vunpack.c.l.b16 %v331
      %v460 = vunpack.c.l.b16 %v332
      %v461 = vunpack.c.l.b16 %v333
      %v462 = vunpack.c.l.b16 %v334
      %v463 = vunpack.c.l.b16 %v335
      %v464 = vunpack.c.l.b16 %v336
      %v465 = vunpack.c.l.b16 %v337
      %v466 = vunpack.c.l.b16 %v338
      %v467 = vunpack.c.l.b16 %v339
      %v468 = vunpack.c.l.b16 %v340
      %v469 = vunpack.c.l.b16 %v341
      %v470 = vunpack.c.l.b16 %v342
      %v471 = vunpack.c.l.b16 %v343
      %v472 = vunpack.c.l.b16 %v344
      %v473 = vunpack.c.l.b16 %v345
      %v474 = vunpack.c.l.b16 %v346
      %v475 = vpack.c.b16 %v460, %v459
      %v476 = vpack.c.b16 %v462, %v461
      %v477 = vpack.c.b16 %v464, %v463
      %v478 = vpack.c.b16 %v466, %v465
      %v479 = vpack.c.b16 %v468, %v467
      %v480 = vpack.c.b16 %v470, %v469
      %v481 = vpack.c.b16 %v472, %v471
      %v482 = vpack.c.b16 %v474, %v473
      %491 = vmatprep.subr.bf16.mxu0 0
      %492 = vmatpush1.bf16.msra.mxu0 %v475
      %493 = vmatprep.subr.bf16.mxu0 0
      %494 = vmatpush1.bf16.msra.mxu0 %v476
      %495 = vmatprep.subr.bf16.mxu0 0
      %496 = vmatpush1.bf16.msra.mxu0 %v477
      %497 = vmatprep.subr.bf16.mxu0 0
      %498 = vmatpush1.bf16.msra.mxu0 %v478
      %499 = vmatprep.subr.bf16.mxu0 0
      %500 = vmatpush1.bf16.msra.mxu0 %v479
      %501 = vmatprep.subr.bf16.mxu0 0
      %502 = vmatpush1.bf16.msra.mxu0 %v480
      %503 = vmatprep.subr.bf16.mxu0 0
      %504 = vmatpush1.bf16.msra.mxu0 %v481
      %505 = vmatprep.subr.bf16.mxu0 0
      %506 = vmatpush1.bf16.msra.mxu0 %v482
      %507 = vmatprep.subr.bf16.mxu0 0
      %508 = vmatpush1.bf16.msra.mxu0 0
      %509 = vmatprep.subr.bf16.mxu0 0
      %510 = vmatpush1.bf16.msra.mxu0 0
      %511 = vmatprep.subr.bf16.mxu0 0
      %512 = vmatpush1.bf16.msra.mxu0 0
      %513 = vmatprep.subr.bf16.mxu0 0
      %514 = vmatpush1.bf16.msra.mxu0 0
      %515 = vmatprep.subr.bf16.mxu0 0
      %516 = vmatpush1.bf16.msra.mxu0 0
      %517 = vmatprep.subr.bf16.mxu0 0
      %518 = vmatpush1.bf16.msra.mxu0 0
      %519 = vmatprep.subr.bf16.mxu0 0
      %520 = vmatpush1.bf16.msra.mxu0 0
      %521 = vmatprep.subr.bf16.mxu0 0
      %522 = vmatpush1.bf16.msra.mxu0 0
      %523 = vmatprep.mubr.bf16.mxu0 0
      %524 = vmatmul.mubr.bf16.gmra.mrb[0].mxu0 %v411
      %v525 = vpop.f32.mrb[0].mxu0
      %v526 = vadd.f32 0.0, %v525
      %v527 = vpop.f32.mrb[0].mxu0
      %v528 = vpop.f32.mrb[0].mxu0
      %v529 = vadd.f32 0.0, %v528
      %v530 = vpop.f32.mrb[0].mxu0
      %531 = vmatprep.mubr.bf16.mxu0 0
      %532 = vmatmul.mubr.bf16.gmra.mrb[0].mxu0 %v412
      %v533 = vpop.f32.mrb[0].mxu0
      %v534 = vadd.f32 0.0, %v533
      %v535 = vpop.f32.mrb[0].mxu0
      %v536 = vpop.f32.mrb[0].mxu0
      %v537 = vadd.f32 0.0, %v536
      %v538 = vpop.f32.mrb[0].mxu0
      %539 = vmatprep.mubr.bf16.mxu0 0
      %540 = vmatmul.mubr.bf16.gmra.mrb[0].mxu0 %v413
      %v541 = vpop.f32.mrb[0].mxu0
      %v542 = vadd.f32 0.0, %v541
      %v543 = vpop.f32.mrb[0].mxu0
      %v544 = vpop.f32.mrb[0].mxu0
      %v545 = vadd.f32 0.0, %v544
      %v546 = vpop.f32.mrb[0].mxu0
      %547 = vmatprep.mubr.bf16.mxu0 0
      %548 = vmatmul.mubr.bf16.gmra.mrb[0].mxu0 %v414
      %v549 = vpop.f32.mrb[0].mxu0
      %v550 = vadd.f32 0.0, %v549
      %v551 = vpop.f32.mrb[0].mxu0
      %v552 = vpop.f32.mrb[0].mxu0
      %v553 = vadd.f32 0.0, %v552
      %v554 = vpop.f32.mrb[0].mxu0
      %555 = vmatprep.mubr.bf16.mxu0 0
      %556 = vmatmul.mubr.bf16.gmra.mrb[0].mxu0 %v415
      %v557 = vpop.f32.mrb[0].mxu0
      %v558 = vadd.f32 0.0, %v557
      %v559 = vpop.f32.mrb[0].mxu0
      %v560 = vpop.f32.mrb[0].mxu0
      %v561 = vadd.f32 0.0, %v560
      %v562 = vpop.f32.mrb[0].mxu0
      %563 = vmatprep.mubr.bf16.mxu0 0
      %564 = vmatmul.mubr.bf16.gmra.mrb[0].mxu0 %v416
      %v565 = vpop.f32.mrb[0].mxu0
      %v566 = vadd.f32 0.0, %v565
      %v567 = vpop.f32.mrb[0].mxu0
      %v568 = vpop.f32.mrb[0].mxu0
      %v569 = vadd.f32 0.0, %v568
      %v570 = vpop.f32.mrb[0].mxu0
      %571 = vmatprep.mubr.bf16.mxu0 0
      %572 = vmatmul.mubr.bf16.gmra.mrb[0].mxu0 %v417
      %v573 = vpop.f32.mrb[0].mxu0
      %v574 = vadd.f32 0.0, %v573
      %v575 = vpop.f32.mrb[0].mxu0
      %v576 = vpop.f32.mrb[0].mxu0
      %v577 = vadd.f32 0.0, %v576
      %v578 = vpop.f32.mrb[0].mxu0
      %579 = vmatprep.mubr.bf16.mxu0 0
      %580 = vmatmul.mubr.bf16.gmra.mrb[0].mxu0 %v418
      %v581 = vpop.f32.mrb[0].mxu0
      %v582 = vadd.f32 0.0, %v581
      %v583 = vpop.f32.mrb[0].mxu0
      %v584 = vpop.f32.mrb[0].mxu0
      %v585 = vadd.f32 0.0, %v584
      %v586 = vpop.f32.mrb[0].mxu0
      %587 = vmatprep.mubr.bf16.mxu0 0
      %588 = vmatmul.mubr.bf16.gmra.mrb[0].mxu0 %v419
      %v589 = vpop.f32.mrb[0].mxu0
      %v590 = vadd.f32 0.0, %v589
      %v591 = vpop.f32.mrb[0].mxu0
      %v592 = vpop.f32.mrb[0].mxu0
      %v593 = vadd.f32 0.0, %v592
      %v594 = vpop.f32.mrb[0].mxu0
      %595 = vmatprep.mubr.bf16.mxu0 0
      %596 = vmatmul.mubr.bf16.gmra.mrb[0].mxu0 %v420
      %v597 = vpop.f32.mrb[0].mxu0
      %v598 = vadd.f32 0.0, %v597
      %v599 = vpop.f32.mrb[0].mxu0
      %v600 = vpop.f32.mrb[0].mxu0
      %v601 = vadd.f32 0.0, %v600
      %v602 = vpop.f32.mrb[0].mxu0
      %603 = vmatprep.mubr.bf16.mxu0 0
      %604 = vmatmul.mubr.bf16.gmra.mrb[0].mxu0 %v421
      %v605 = vpop.f32.mrb[0].mxu0
      %v606 = vadd.f32 0.0, %v605
      %v607 = vpop.f32.mrb[0].mxu0
      %v608 = vpop.f32.mrb[0].mxu0
      %v609 = vadd.f32 0.0, %v608
      %v610 = vpop.f32.mrb[0].mxu0
      %611 = vmatprep.mubr.bf16.mxu0 0
      %612 = vmatmul.mubr.bf16.gmra.mrb[0].mxu0 %v422
      %v613 = vpop.f32.mrb[0].mxu0
      %v614 = vadd.f32 0.0, %v613
      %v615 = vpop.f32.mrb[0].mxu0
      %v616 = vpop.f32.mrb[0].mxu0
      %v617 = vadd.f32 0.0, %v616
      %v618 = vpop.f32.mrb[0].mxu0
      %619 = vmatprep.mubr.bf16.mxu0 0
      %620 = vmatmul.mubr.bf16.gmra.mrb[0].mxu0 %v423
      %v621 = vpop.f32.mrb[0].mxu0
      %v622 = vadd.f32 0.0, %v621
      %v623 = vpop.f32.mrb[0].mxu0
      %v624 = vpop.f32.mrb[0].mxu0
      %v625 = vadd.f32 0.0, %v624
      %v626 = vpop.f32.mrb[0].mxu0
      %627 = vmatprep.mubr.bf16.mxu0 0
      %628 = vmatmul.mubr.bf16.gmra.mrb[0].mxu0 %v424
      %v629 = vpop.f32.mrb[0].mxu0
      %v630 = vadd.f32 0.0, %v629
      %v631 = vpop.f32.mrb[0].mxu0
      %v632 = vpop.f32.mrb[0].mxu0
      %v633 = vadd.f32 0.0, %v632
      %v634 = vpop.f32.mrb[0].mxu0
      %635 = vmatprep.mubr.bf16.mxu0 0
      %636 = vmatmul.mubr.bf16.gmra.mrb[0].mxu0 %v425
      %v637 = vpop.f32.mrb[0].mxu0
      %v638 = vadd.f32 0.0, %v637
      %v639 = vpop.f32.mrb[0].mxu0
      %v640 = vpop.f32.mrb[0].mxu0
      %v641 = vadd.f32 0.0, %v640
      %v642 = vpop.f32.mrb[0].mxu0
      %643 = vmatprep.mubr.bf16.mxu0 0
      %644 = vmatmul.mubr.bf16.gmra.mrb[0].mxu0 %v426
      %v645 = vpop.f32.mrb[0].mxu0
      %v646 = vadd.f32 0.0, %v645
      %v647 = vpop.f32.mrb[0].mxu0
      %v648 = vpop.f32.mrb[0].mxu0
      %v649 = vadd.f32 0.0, %v648
      %v650 = vpop.f32.mrb[0].mxu0
      %651 = vdwg.mxu0
      %v652 = vadd.f32 %v267, %v526
      %v653 = vadd.f32 %v268, %v529
      %v654 = vadd.f32 %v269, %v534
      %v655 = vadd.f32 %v270, %v537
      %v656 = vadd.f32 %v271, %v542
      %v657 = vadd.f32 %v272, %v545
      %v658 = vadd.f32 %v273, %v550
      %v659 = vadd.f32 %v274, %v553
      %v660 = vadd.f32 %v275, %v558
      %v661 = vadd.f32 %v276, %v561
      %v662 = vadd.f32 %v277, %v566
      %v663 = vadd.f32 %v278, %v569
      %v664 = vadd.f32 %v279, %v574
      %v665 = vadd.f32 %v280, %v577
      %v666 = vadd.f32 %v281, %v582
      %v667 = vadd.f32 %v282, %v585
      %v668 = vadd.f32 %v283, %v590
      %v669 = vadd.f32 %v284, %v593
      %v670 = vadd.f32 %v285, %v598
      %v671 = vadd.f32 %v286, %v601
      %v672 = vadd.f32 %v287, %v606
      %v673 = vadd.f32 %v288, %v609
      %v674 = vadd.f32 %v289, %v614
      %v675 = vadd.f32 %v290, %v617
      %v676 = vadd.f32 %v291, %v622
      %v677 = vadd.f32 %v292, %v625
      %v678 = vadd.f32 %v293, %v630
      %v679 = vadd.f32 %v294, %v633
      %v680 = vadd.f32 %v295, %v638
      %v681 = vadd.f32 %v296, %v641
      %v682 = vadd.f32 %v297, %v646
      %v683 = vadd.f32 %v298, %v649
      %684 = vst [vmem:[%s224] sm:$0xff] %v652
      %685 = vst [vmem:[%s224 + $0x8] sm:$0xff] %v653
      %686 = vst [vmem:[%s224 + $0x10] sm:$0xff] %v654
      %687 = vst [vmem:[%s224 + $0x18] sm:$0xff] %v655
      %688 = vst [vmem:[%s224 + $0x20] sm:$0xff] %v656
      %689 = vst [vmem:[%s224 + $0x28] sm:$0xff] %v657
      %690 = vst [vmem:[%s224 + $0x30] sm:$0xff] %v658
      %691 = vst [vmem:[%s224 + $0x38] sm:$0xff] %v659
      %692 = vst [vmem:[%s224 + $0x40] sm:$0xff] %v660
      %693 = vst [vmem:[%s224 + $0x48] sm:$0xff] %v661
      %694 = vst [vmem:[%s224 + $0x50] sm:$0xff] %v662
      %695 = vst [vmem:[%s224 + $0x58] sm:$0xff] %v663
      %696 = vst [vmem:[%s224 + $0x60] sm:$0xff] %v664
      %697 = vst [vmem:[%s224 + $0x68] sm:$0xff] %v665
      %698 = vst [vmem:[%s224 + $0x70] sm:$0xff] %v666
      %699 = vst [vmem:[%s224 + $0x78] sm:$0xff] %v667
      %700 = vst [vmem:[%s224 + $0x80] sm:$0xff] %v668
      %701 = vst [vmem:[%s224 + $0x88] sm:$0xff] %v669
      %702 = vst [vmem:[%s224 + $0x90] sm:$0xff] %v670
      %703 = vst [vmem:[%s224 + $0x98] sm:$0xff] %v671
      %704 = vst [vmem:[%s224 + $0xa0] sm:$0xff] %v672
      %705 = vst [vmem:[%s224 + $0xa8] sm:$0xff] %v673
      %706 = vst [vmem:[%s224 + $0xb0] sm:$0xff] %v674
      %707 = vst [vmem:[%s224 + $0xb8] sm:$0xff] %v675
      %708 = vst [vmem:[%s224 + $0xc0] sm:$0xff] %v676
      %709 = vst [vmem:[%s224 + $0xc8] sm:$0xff] %v677
      %710 = vst [vmem:[%s224 + $0xd0] sm:$0xff] %v678
      %711 = vst [vmem:[%s224 + $0xd8] sm:$0xff] %v679
      %712 = vst [vmem:[%s224 + $0xe0] sm:$0xff] %v680
      %713 = vst [vmem:[%s224 + $0xe8] sm:$0xff] %v681
      %714 = vst [vmem:[%s224 + $0xf0] sm:$0xff] %v682
      %715 = vst [vmem:[%s224 + $0xf8] sm:$0xff] %v683
      // Predicated region
      $region33: #{encoder_forward.12} parent=27 // pred_check
        %p716 = pneg %p231
      $region34: #{encoder_forward.12} parent=27 // pred_check_branch
        %718 = sbr.rel (%p716) target = $region36
      $region35: #{encoder_forward.12} parent=27 // pred_region
        %v719 = vld [vmem:[%s224] sm:$0xff]
        %v720 = vld [vmem:[%s224 + $0x8] sm:$0xff]
        %v721 = vld [vmem:[%s224 + $0x10] sm:$0xff]
        %v722 = vld [vmem:[%s224 + $0x18] sm:$0xff]
        %v723 = vld [vmem:[%s224 + $0x20] sm:$0xff]
        %v724 = vld [vmem:[%s224 + $0x28] sm:$0xff]
        %v725 = vld [vmem:[%s224 + $0x30] sm:$0xff]
        %v726 = vld [vmem:[%s224 + $0x38] sm:$0xff]
        %v727 = vld [vmem:[%s224 + $0x40] sm:$0xff]
        %v728 = vld [vmem:[%s224 + $0x48] sm:$0xff]
        %v729 = vld [vmem:[%s224 + $0x50] sm:$0xff]
        %v730 = vld [vmem:[%s224 + $0x58] sm:$0xff]
        %v731 = vld [vmem:[%s224 + $0x60] sm:$0xff]
        %v732 = vld [vmem:[%s224 + $0x68] sm:$0xff]
        %v733 = vld [vmem:[%s224 + $0x70] sm:$0xff]
        %v734 = vld [vmem:[%s224 + $0x78] sm:$0xff]
        %v735 = vld [vmem:[%s224 + $0x80] sm:$0xff]
        %v736 = vld [vmem:[%s224 + $0x88] sm:$0xff]
        %v737 = vld [vmem:[%s224 + $0x90] sm:$0xff]
        %v738 = vld [vmem:[%s224 + $0x98] sm:$0xff]
        %v739 = vld [vmem:[%s224 + $0xa0] sm:$0xff]
        %v740 = vld [vmem:[%s224 + $0xa8] sm:$0xff]
        %v741 = vld [vmem:[%s224 + $0xb0] sm:$0xff]
        %v742 = vld [vmem:[%s224 + $0xb8] sm:$0xff]
        %v743 = vld [vmem:[%s224 + $0xc0] sm:$0xff]
        %v744 = vld [vmem:[%s224 + $0xc8] sm:$0xff]
        %v745 = vld [vmem:[%s224 + $0xd0] sm:$0xff]
        %v746 = vld [vmem:[%s224 + $0xd8] sm:$0xff]
        %v747 = vld [vmem:[%s224 + $0xe0] sm:$0xff]
        %v748 = vld [vmem:[%s224 + $0xe8] sm:$0xff]
        %v749 = vld [vmem:[%s224 + $0xf0] sm:$0xff]
        %v750 = vld [vmem:[%s224 + $0xf8] sm:$0xff]
        %v751 = vadd.f32 %v719, %v720
        %v752 = vadd.f32 %v751, %v721
        %v753 = vadd.f32 %v752, %v722
        %v754 = vadd.f32 %v753, %v723
        %v755 = vadd.f32 %v754, %v724
        %v756 = vadd.f32 %v755, %v725
        %v757 = vadd.f32 %v756, %v726
        %v758 = vadd.f32 %v757, %v727
        %v759 = vadd.f32 %v758, %v728
        %v760 = vadd.f32 %v759, %v729
        %v761 = vadd.f32 %v760, %v730
        %v762 = vadd.f32 %v761, %v731
        %v763 = vadd.f32 %v762, %v732
        %v764 = vadd.f32 %v763, %v733
        %v765 = vadd.f32 %v764, %v734
        %v766 = vadd.f32 %v765, %v735
        %v767 = vadd.f32 %v766, %v736
        %v768 = vadd.f32 %v767, %v737
        %v769 = vadd.f32 %v768, %v738
        %v770 = vadd.f32 %v769, %v739
        %v771 = vadd.f32 %v770, %v740
        %v772 = vadd.f32 %v771, %v741
        %v773 = vadd.f32 %v772, %v742
        %v774 = vadd.f32 %v773, %v743
        %v775 = vadd.f32 %v774, %v744
        %v776 = vadd.f32 %v775, %v745
        %v777 = vadd.f32 %v776, %v746
        %v778 = vadd.f32 %v777, %v747
        %v779 = vadd.f32 %v778, %v748
        %v780 = vadd.f32 %v779, %v749
        %v781 = vadd.f32 %v780, %v750
        %v782 = vrot.slane %v781, 4
        %v783 = vadd.f32 %v781, %v782
        %v784 = vrot.slane %v783, 2
        %v785 = vadd.f32 %v783, %v784
        %v786 = vrot.slane %v785, 1
        %v787 = vadd.f32 %v785, %v786
        %v788 = vmul.f32 %v719, %v719
        %v789 = vmul.f32 %v720, %v720
        %v790 = vmul.f32 %v721, %v721
        %v791 = vmul.f32 %v722, %v722
        %v792 = vmul.f32 %v723, %v723
        %v793 = vmul.f32 %v724, %v724
        %v794 = vmul.f32 %v725, %v725
        %v795 = vmul.f32 %v726, %v726
        %v796 = vmul.f32 %v727, %v727
        %v797 = vmul.f32 %v728, %v728
        %v798 = vmul.f32 %v729, %v729
        %v799 = vmul.f32 %v730, %v730
        %v800 = vmul.f32 %v731, %v731
        %v801 = vmul.f32 %v732, %v732
        %v802 = vmul.f32 %v733, %v733
        %v803 = vmul.f32 %v734, %v734
        %v804 = vmul.f32 %v735, %v735
        %v805 = vmul.f32 %v736, %v736
        %v806 = vmul.f32 %v737, %v737
        %v807 = vmul.f32 %v738, %v738
        %v808 = vmul.f32 %v739, %v739
        %v809 = vmul.f32 %v740, %v740
        %v810 = vmul.f32 %v741, %v741
        %v811 = vmul.f32 %v742, %v742
        %v812 = vmul.f32 %v743, %v743
        %v813 = vmul.f32 %v744, %v744
        %v814 = vmul.f32 %v745, %v745
        %v815 = vmul.f32 %v746, %v746
        %v816 = vmul.f32 %v747, %v747
        %v817 = vmul.f32 %v748, %v748
        %v818 = vmul.f32 %v749, %v749
        %v819 = vmul.f32 %v750, %v750
        %v820 = vadd.f32 %v788, %v789
        %v821 = vadd.f32 %v820, %v790
        %v822 = vadd.f32 %v821, %v791
        %v823 = vadd.f32 %v822, %v792
        %v824 = vadd.f32 %v823, %v793
        %v825 = vadd.f32 %v824, %v794
        %v826 = vadd.f32 %v825, %v795
        %v827 = vadd.f32 %v826, %v796
        %v828 = vadd.f32 %v827, %v797
        %v829 = vadd.f32 %v828, %v798
        %v830 = vadd.f32 %v829, %v799
        %v831 = vadd.f32 %v830, %v800
        %v832 = vadd.f32 %v831, %v801
        %v833 = vadd.f32 %v832, %v802
        %v834 = vadd.f32 %v833, %v803
        %v835 = vadd.f32 %v834, %v804
        %v836 = vadd.f32 %v835, %v805
        %v837 = vadd.f32 %v836, %v806
        %v838 = vadd.f32 %v837, %v807
        %v839 = vadd.f32 %v838, %v808
        %v840 = vadd.f32 %v839, %v809
        %v841 = vadd.f32 %v840, %v810
        %v842 = vadd.f32 %v841, %v811
        %v843 = vadd.f32 %v842, %v812
        %v844 = vadd.f32 %v843, %v813
        %v845 = vadd.f32 %v844, %v814
        %v846 = vadd.f32 %v845, %v815
        %v847 = vadd.f32 %v846, %v816
        %v848 = vadd.f32 %v847, %v817
        %v849 = vadd.f32 %v848, %v818
        %v850 = vadd.f32 %v849, %v819
        %v851 = vrot.slane %v850, 4
        %v852 = vadd.f32 %v850, %v851
        %v853 = vrot.slane %v852, 2
        %v854 = vadd.f32 %v852, %v853
        %v855 = vrot.slane %v854, 1
        %v856 = vadd.f32 %v854, %v855
        %v857 = vlaneseq
        %v858 = vshrl.u32 %v857, 7
        %vm859 = vcmp.eq.s32.totalorder %v858, 0
        %vm860 = vcmp.eq.s32.totalorder %v858, 1
        %v861 = vsel %vm860, %v856, 0.0
        %v862 = vsel %vm859, %v787, %v861
        %863 = vst [vmem:[%s229] sm:$0xff] %v862
      $region36: #{encoder_forward.12} parent=27 // pred_fallthru
        _
      %s864 = smul.u32 32, %s19
      %p865 = scmp.lt.s32.totalorder %s864, 63
      %s866 = scalar_select %p865, %s864, 63
      %s867 = smul.addr %s866, 8
      %s868 = scalar_lea.vmem %s2, %s867
      %p869 = scmp.lt.s32.totalorder %s19, 1
      %s870 = scalar_select %p869, %s19, 1
      %s871 = smul.addr %s870, 8
      %s872 = scalar_lea.vmem %s3, %s871
      // Predicated region
      $region37: #{encoder_forward.12} parent=27 // pred_check
        %p873 = pneg %p99
      $region38: #{encoder_forward.12} parent=27 // pred_check_branch
        %875 = sbr.rel (%p873) target = $region40
      $region39: #{encoder_forward.12} parent=27 // pred_region
        %s876 = smul.u32 32, %s19
      $region40: #{encoder_forward.12} parent=27 // pred_fallthru
        _
      // Predicated region
      $region41: #{encoder_forward.12} parent=27 // pred_check
        %p877 = pneg %p125
      $region42: #{encoder_forward.12} parent=27 // pred_check_branch
        %879 = sbr.rel (%p877) target = $region44
      $region43: #{encoder_forward.12} parent=27 // pred_region
        _
      $region44: #{encoder_forward.12} parent=27 // pred_fallthru
        _
    $region28: #{encoder_forward.12} parent=5 // pred_fallthru
      _
    %p880 = scmp.le.s32.totalorder 2, %s10
    // Predicated region
    $region45: #{encoder_forward.12} parent=5 // pred_check
      %p881 = pneg %p880
    $region46: #{encoder_forward.12} parent=5 // pred_check_branch
      %883 = sbr.rel (%p881) target = $region48
    $region47: #{encoder_forward.12} parent=5 // pred_region
      %s884 = ssub.s32 %s10, 2
      // Predicated region
      $region49: #{encoder_forward.12} parent=47 // pred_check
        %p885 = pneg %p105
      $region50: #{encoder_forward.12} parent=47 // pred_check_branch
        %887 = sbr.rel (%p885) target = $region52
      $region51: #{encoder_forward.12} parent=47 // pred_region
        %s888 = smul.u32 32, %s21
        %p889 = scmp.lt.s32.totalorder %s888, 63
        %s890 = scalar_select %p889, %s888, 63
        %s891 = smul.addr %s890, 8
        %s892 = scalar_lea.vmem %s2, %s891
      $region52: #{encoder_forward.12} parent=47 // pred_fallthru
        _
      // Predicated region
      $region53: #{encoder_forward.12} parent=47 // pred_check
        %p893 = pneg %p131
      $region54: #{encoder_forward.12} parent=47 // pred_check_branch
        %895 = sbr.rel (%p893) target = $region56
      $region55: #{encoder_forward.12} parent=47 // pred_region
        %p896 = scmp.lt.s32.totalorder %s21, 1
        %s897 = scalar_select %p896, %s21, 1
        %s898 = smul.addr %s897, 8
        %s899 = scalar_lea.vmem %s3, %s898
      $region56: #{encoder_forward.12} parent=47 // pred_fallthru
        _
    $region48: #{encoder_forward.12} parent=5 // pred_fallthru
      _
  $region6: #{encoder_forward.12} parent=0 // loop_footer
    %s14 = sadd.s32 1, %s10
  $region7: #{encoder_forward.12} parent=0 // loop_footer_branch
    %9 = sbr.rel target = $region3
  $region8: #{encoder_forward.12} parent=0 // loop_exit
    _

// kernel: encoder_forward.13
$region0: #{encoder_forward.13}
  #allocation0 [shape = 'u32[]', space=smem, size = 0x4, offset = 0x4, fixed_abs, tag = 'smem constant byte address 0x4 - core index']
  #allocation1 [shape = 'u32[144,128]{1,0:T(1,128)}', space=vmem, size = 0x12000, scoped, tag = 'internal scratch']
  %s0 = inlined_call_operand.vmem [shape: f32[512,128], index: 0, kind: input, shape index: {}]
  %s1 = inlined_call_operand.vmem [shape: f32[1,128], index: 1, kind: input, shape index: {}]
  %s2 = inlined_call_operand.vmem [shape: f32[1,128], index: 2, kind: input, shape index: {}]
  %s3 = inlined_call_operand.vmem [shape: f32[512,128], index: 3, kind: output, shape index: {}]
  %s4 = sld [smem:[#allocation0]]
  $region45: #{encoder_forward.13} parent=0
    _
  %s6 = ssub.s32 1, %s4
  %s7 = scalar_select 0, %s6, %s4
  loop: start=0, step=1, limit=4
  $region2: #{encoder_forward.13} parent=0 // loop_pre_header
    _
  $region3: #{encoder_forward.13} parent=0 // loop_header
    %s9 = sphi 0, %s13
    %p10 = scmp.ge.s32.totalorder %s9, 4
    %s19 = sphi 0, %s21
    %s22 = sphi 0, %s19
    %s23 = sphi 0, %s22
    %s39 = sphi 0, %s23
    %s43 = sphi 0, %s43
    %s45 = sphi 0, %s43
    %s46 = sphi 0, %s45
    %s60 = sphi 0, %s46
    %s64 = sphi 0, %s64
    %s66 = sphi 0, %s64
    %s67 = sphi 0, %s66
    %s81 = sphi 0, %s67
    %s87 = sphi 0, %s89
    %s90 = sphi 0, %s87
    %s91 = sphi 0, %s90
    %s107 = sphi 0, %s91
  $region4: #{encoder_forward.13} parent=0 // loop_header_branch
    %12 = sbr.rel (%p10) target = $region8
  $region5: #{encoder_forward.13} parent=0 // loop_body
    %s14 = ssub.s32 %s9, 1
    %s15 = ssub.s32 %s9, 2
    %s16 = sadd.s32 %s9, 1
    %s17 = ssub.s32 %s9, %s16
    %p18 = scmp.eq.s32.totalorder %s17, 0
    %s20 = sadd.s32 %s19, 1
    %s21 = scalar_select %p18, %s19, %s20
    %p24 = pneg %p18
    %p25 = scmp.eq.s32.totalorder %s9, 1
    %p26 = por %p24, %p25
    %p27 = scmp.ne.s32.totalorder %s19, %s22
    %p28 = scmp.eq.s32.totalorder %s9, 0
    %p29 = por %p27, %p28
    %p30 = scmp.ne.s32.totalorder %s19, %s22
    %p31 = scmp.eq.s32.totalorder %s14, 1
    %p32 = por %p30, %p31
    %p33 = scmp.ne.s32.totalorder %s22, %s23
    %p34 = scmp.eq.s32.totalorder %s14, 0
    %p35 = por %p33, %p34
    %p36 = scmp.ne.s32.totalorder %s22, %s23
    %p37 = scmp.eq.s32.totalorder %s15, 1
    %p38 = por %p36, %p37
    %p40 = scmp.ne.s32.totalorder %s23, %s39
    %p41 = scmp.eq.s32.totalorder %s15, 0
    %p42 = por %p40, %p41
    %s44 = sadd.s32 %s43, 1
    %p47 = scmp.eq.s32.totalorder %s9, 1
    %p48 = scmp.ne.s32.totalorder %s43, %s45
    %p49 = scmp.eq.s32.totalorder %s9, 0
    %p50 = por %p48, %p49
    %p51 = scmp.ne.s32.totalorder %s43, %s45
    %p52 = scmp.eq.s32.totalorder %s14, 1
    %p53 = por %p51, %p52
    %p54 = scmp.ne.s32.totalorder %s45, %s46
    %p55 = scmp.eq.s32.totalorder %s14, 0
    %p56 = por %p54, %p55
    %p57 = scmp.ne.s32.totalorder %s45, %s46
    %p58 = scmp.eq.s32.totalorder %s15, 1
    %p59 = por %p57, %p58
    %p61 = scmp.ne.s32.totalorder %s46, %s60
    %p62 = scmp.eq.s32.totalorder %s15, 0
    %p63 = por %p61, %p62
    %s65 = sadd.s32 %s64, 1
    %p68 = scmp.eq.s32.totalorder %s9, 1
    %p69 = scmp.ne.s32.totalorder %s64, %s66
    %p70 = scmp.eq.s32.totalorder %s9, 0
    %p71 = por %p69, %p70
    %p72 = scmp.ne.s32.totalorder %s64, %s66
    %p73 = scmp.eq.s32.totalorder %s14, 1
    %p74 = por %p72, %p73
    %p75 = scmp.ne.s32.totalorder %s66, %s67
    %p76 = scmp.eq.s32.totalorder %s14, 0
    %p77 = por %p75, %p76
    %p78 = scmp.ne.s32.totalorder %s66, %s67
    %p79 = scmp.eq.s32.totalorder %s15, 1
    %p80 = por %p78, %p79
    %p82 = scmp.ne.s32.totalorder %s67, %s81
    %p83 = scmp.eq.s32.totalorder %s15, 0
    %p84 = por %p82, %p83
    %s85 = ssub.s32 %s9, %s16
    %p86 = scmp.eq.s32.totalorder %s85, 0
    %s88 = sadd.s32 %s87, 1
    %s89 = scalar_select %p86, %s87, %s88
    %p92 = pneg %p86
    %p93 = scmp.eq.s32.totalorder %s9, 1
    %p94 = por %p92, %p93
    %p95 = scmp.ne.s32.totalorder %s87, %s90
    %p96 = scmp.eq.s32.totalorder %s9, 0
    %p97 = por %p95, %p96
    %p98 = scmp.ne.s32.totalorder %s87, %s90
    %p99 = scmp.eq.s32.totalorder %s14, 1
    %p100 = por %p98, %p99
    %p101 = scmp.ne.s32.totalorder %s90, %s91
    %p102 = scmp.eq.s32.totalorder %s14, 0
    %p103 = por %p101, %p102
    %p104 = scmp.ne.s32.totalorder %s90, %s91
    %p105 = scmp.eq.s32.totalorder %s15, 1
    %p106 = por %p104, %p105
    %p108 = scmp.ne.s32.totalorder %s91, %s107
    %p109 = scmp.eq.s32.totalorder %s15, 0
    %p110 = por %p108, %p109
    %p111 = scmp.le.s32.totalorder 1, %s9
    %p112 = scmp.lt.s32.totalorder %s9, 3
    %p113 = pnand %p111, %p112
    %p114 = pneg %p113
    // Predicated region
    $region9: #{encoder_forward.13} parent=5 // pred_check
      _
    $region10: #{encoder_forward.13} parent=5 // pred_check_branch
      %116 = sbr.rel (%p113) target = $region12
    $region11: #{encoder_forward.13} parent=5 // pred_region
      %s117 = ssub.s32 %s9, 1
      // Predicated region
      $region13: #{encoder_forward.13} parent=11 // pred_check
        %p118 = pneg %p56
      $region14: #{encoder_forward.13} parent=11 // pred_check_branch
        %120 = sbr.rel (%p118) target = $region16
      $region15: #{encoder_forward.13} parent=11 // pred_region
        _
      $region16: #{encoder_forward.13} parent=11 // pred_fallthru
        _
      // Predicated region
      $region17: #{encoder_forward.13} parent=11 // pred_check
        %p121 = pneg %p77
      $region18: #{encoder_forward.13} parent=11 // pred_check_branch
        %123 = sbr.rel (%p121) target = $region20
      $region19: #{encoder_forward.13} parent=11 // pred_region
        _
      $region20: #{encoder_forward.13} parent=11 // pred_fallthru
        _
    $region12: #{encoder_forward.13} parent=5 // pred_fallthru
      _
    %p124 = scmp.lt.s32.totalorder %s9, 2
    // Predicated region
    $region21: #{encoder_forward.13} parent=5 // pred_check
      %p125 = pneg %p124
    $region22: #{encoder_forward.13} parent=5 // pred_check_branch
      %127 = sbr.rel (%p125) target = $region24
    $region23: #{encoder_forward.13} parent=5 // pred_region
      // Predicated region
      $region25: #{encoder_forward.13} parent=23 // pred_check
        %p128 = pneg %p29
      $region26: #{encoder_forward.13} parent=23 // pred_check_branch
        %130 = sbr.rel (%p128) target = $region28
      $region27: #{encoder_forward.13} parent=23 // pred_region
        %s131 = smul.u32 32, %s9
        %p132 = scmp.lt.s32.totalorder %s131, 63
        %s133 = scalar_select %p132, %s131, 63
        %s134 = smul.addr %s133, 8
        %s135 = scalar_lea.vmem %s0, %s134
        %s136 = smul.u32 32, %s9
      $region28: #{encoder_forward.13} parent=23 // pred_fallthru
        _
    $region24: #{encoder_forward.13} parent=5 // pred_fallthru
      _
    %p137 = scmp.le.s32.totalorder 1, %s9
    %p138 = scmp.lt.s32.totalorder %s9, 3
    %p139 = pnand %p137, %p138
    %p140 = pneg %p139
    // Predicated region
    $region29: #{encoder_forward.13} parent=5 // pred_check
      _
    $region30: #{encoder_forward.13} parent=5 // pred_check_branch
      %142 = sbr.rel (%p139) target = $region32
    $region31: #{encoder_forward.13} parent=5 // pred_region
      %s143 = ssub.s32 %s9, 1
      %s144 = smul.u32 32, %s14
      %p145 = scmp.lt.s32.totalorder %s144, 63
      %s146 = scalar_select %p145, %s144, 63
      %s147 = smul.addr %s146, 8
      %s148 = scalar_lea.vmem %s0, %s147
      %p149 = pneg %p35
      %p150 = pneg %p32
      %p151 = pneg %p56
      %p152 = pneg %p53
      %p153 = pneg %p77
      %p154 = pneg %p74
      %p155 = pneg %p103
      %p156 = pneg %p100
      %s157 = smul.u32 32, %s14
      %p158 = scmp.lt.s32.totalorder %s157, 63
      %s159 = scalar_select %p158, %s157, 63
      %s160 = smul.addr %s159, 8
      %s161 = scalar_lea.vmem %s3, %s160
      %s162 = smul.u32 32, %s14
      %p163 = scmp.lt.s32.totalorder %s162, 63
      %s164 = scalar_select %p163, %s162, 63
      %s165 = smul.addr %s164, 8
      %s166 = scalar_lea.vmem %s0, %s165
      %s167 = smul.u32 32, %s14
      %s168 = smul.u32 32, %s14
      %p169 = scmp.lt.s32.totalorder %s168, 63
      %s170 = scalar_select %p169, %s168, 63
      %s171 = smul.addr %s170, 8
      %s172 = scalar_lea.vmem %s3, %s171
      %s173 = smul.u32 32, %s14
      %v174 = vld [vmem:[%s166] sm:$0xff]
      %v175 = vld [vmem:[%s166 + $0x8] sm:$0xff]
      %v176 = vld [vmem:[%s166 + $0x10] sm:$0xff]
      %v177 = vld [vmem:[%s166 + $0x18] sm:$0xff]
      %v178 = vld [vmem:[%s166 + $0x20] sm:$0xff]
      %v179 = vld [vmem:[%s166 + $0x28] sm:$0xff]
      %v180 = vld [vmem:[%s166 + $0x30] sm:$0xff]
      %v181 = vld [vmem:[%s166 + $0x38] sm:$0xff]
      %v182 = vld [vmem:[%s166 + $0x40] sm:$0xff]
      %v183 = vld [vmem:[%s166 + $0x48] sm:$0xff]
      %v184 = vld [vmem:[%s166 + $0x50] sm:$0xff]
      %v185 = vld [vmem:[%s166 + $0x58] sm:$0xff]
      %v186 = vld [vmem:[%s166 + $0x60] sm:$0xff]
      %v187 = vld [vmem:[%s166 + $0x68] sm:$0xff]
      %v188 = vld [vmem:[%s166 + $0x70] sm:$0xff]
      %v189 = vld [vmem:[%s166 + $0x78] sm:$0xff]
      %v190 = vld [vmem:[%s166 + $0x80] sm:$0xff]
      %v191 = vld [vmem:[%s166 + $0x88] sm:$0xff]
      %v192 = vld [vmem:[%s166 + $0x90] sm:$0xff]
      %v193 = vld [vmem:[%s166 + $0x98] sm:$0xff]
      %v194 = vld [vmem:[%s166 + $0xa0] sm:$0xff]
      %v195 = vld [vmem:[%s166 + $0xa8] sm:$0xff]
      %v196 = vld [vmem:[%s166 + $0xb0] sm:$0xff]
      %v197 = vld [vmem:[%s166 + $0xb8] sm:$0xff]
      %v198 = vld [vmem:[%s166 + $0xc0] sm:$0xff]
      %v199 = vld [vmem:[%s166 + $0xc8] sm:$0xff]
      %v200 = vld [vmem:[%s166 + $0xd0] sm:$0xff]
      %v201 = vld [vmem:[%s166 + $0xd8] sm:$0xff]
      %v202 = vld [vmem:[%s166 + $0xe0] sm:$0xff]
      %v203 = vld [vmem:[%s166 + $0xe8] sm:$0xff]
      %v204 = vld [vmem:[%s166 + $0xf0] sm:$0xff]
      %v205 = vld [vmem:[%s166 + $0xf8] sm:$0xff]
      %v206 = vld [vmem:[%s1] sm:$0x1]
      %v208 = vlaneseq
      %v209 = vshrl.u32 %v208, 7
      %v210 = vsub.s32 0, %v209
      %v211 = vrot.slane %v206, %v210
      %v213 = vmul.f32 %v174, %v211
      %v214 = vmul.f32 %v175, %v211
      %v215 = vmul.f32 %v176, %v211
      %v216 = vmul.f32 %v177, %v211
      %v217 = vmul.f32 %v178, %v211
      %v218 = vmul.f32 %v179, %v211
      %v219 = vmul.f32 %v180, %v211
      %v220 = vmul.f32 %v181, %v211
      %v221 = vmul.f32 %v182, %v211
      %v222 = vmul.f32 %v183, %v211
      %v223 = vmul.f32 %v184, %v211
      %v224 = vmul.f32 %v185, %v211
      %v225 = vmul.f32 %v186, %v211
      %v226 = vmul.f32 %v187, %v211
      %v227 = vmul.f32 %v188, %v211
      %v228 = vmul.f32 %v189, %v211
      %v229 = vmul.f32 %v190, %v211
      %v230 = vmul.f32 %v191, %v211
      %v231 = vmul.f32 %v192, %v211
      %v232 = vmul.f32 %v193, %v211
      %v233 = vmul.f32 %v194, %v211
      %v234 = vmul.f32 %v195, %v211
      %v235 = vmul.f32 %v196, %v211
      %v236 = vmul.f32 %v197, %v211
      %v237 = vmul.f32 %v198, %v211
      %v238 = vmul.f32 %v199, %v211
      %v239 = vmul.f32 %v200, %v211
      %v240 = vmul.f32 %v201, %v211
      %v241 = vmul.f32 %v202, %v211
      %v242 = vmul.f32 %v203, %v211
      %v243 = vmul.f32 %v204, %v211
      %v244 = vmul.f32 %v205, %v211
      %v245 = vld [vmem:[%s2] sm:$0x1]
      %v247 = vlaneseq
      %v248 = vshrl.u32 %v247, 7
      %v249 = vsub.s32 0, %v248
      %v250 = vrot.slane %v245, %v249
      %v252 = vadd.f32 %v213, %v250
      %v253 = vadd.f32 %v214, %v250
      %v254 = vadd.f32 %v215, %v250
      %v255 = vadd.f32 %v216, %v250
      %v256 = vadd.f32 %v217, %v250
      %v257 = vadd.f32 %v218, %v250
      %v258 = vadd.f32 %v219, %v250
      %v259 = vadd.f32 %v220, %v250
      %v260 = vadd.f32 %v221, %v250
      %v261 = vadd.f32 %v222, %v250
      %v262 = vadd.f32 %v223, %v250
      %v263 = vadd.f32 %v224, %v250
      %v264 = vadd.f32 %v225, %v250
      %v265 = vadd.f32 %v226, %v250
      %v266 = vadd.f32 %v227, %v250
      %v267 = vadd.f32 %v228, %v250
      %v268 = vadd.f32 %v229, %v250
      %v269 = vadd.f32 %v230, %v250
      %v270 = vadd.f32 %v231, %v250
      %v271 = vadd.f32 %v232, %v250
      %v272 = vadd.f32 %v233, %v250
      %v273 = vadd.f32 %v234, %v250
      %v274 = vadd.f32 %v235, %v250
      %v275 = vadd.f32 %v236, %v250
      %v276 = vadd.f32 %v237, %v250
      %v277 = vadd.f32 %v238, %v250
      %v278 = vadd.f32 %v239, %v250
      %v279 = vadd.f32 %v240, %v250
      %v280 = vadd.f32 %v241, %v250
      %v281 = vadd.f32 %v242, %v250
      %v282 = vadd.f32 %v243, %v250
      %v283 = vadd.f32 %v244, %v250
      %vm284 = vcmp.ge.f32.partialorder %v252, 0.0
      %vm285 = vcmp.ge.f32.partialorder %v253, 0.0
      %vm286 = vcmp.ge.f32.partialorder %v254, 0.0
      %vm287 = vcmp.ge.f32.partialorder %v255, 0.0
      %vm288 = vcmp.ge.f32.partialorder %v256, 0.0
      %vm289 = vcmp.ge.f32.partialorder %v257, 0.0
      %vm290 = vcmp.ge.f32.partialorder %v258, 0.0
      %vm291 = vcmp.ge.f32.partialorder %v259, 0.0
      %vm292 = vcmp.ge.f32.partialorder %v260, 0.0
      %vm293 = vcmp.ge.f32.partialorder %v261, 0.0
      %vm294 = vcmp.ge.f32.partialorder %v262, 0.0
      %vm295 = vcmp.ge.f32.partialorder %v263, 0.0
      %vm296 = vcmp.ge.f32.partialorder %v264, 0.0
      %vm297 = vcmp.ge.f32.partialorder %v265, 0.0
      %vm298 = vcmp.ge.f32.partialorder %v266, 0.0
      %vm299 = vcmp.ge.f32.partialorder %v267, 0.0
      %vm300 = vcmp.ge.f32.partialorder %v268, 0.0
      %vm301 = vcmp.ge.f32.partialorder %v269, 0.0
      %vm302 = vcmp.ge.f32.partialorder %v270, 0.0
      %vm303 = vcmp.ge.f32.partialorder %v271, 0.0
      %vm304 = vcmp.ge.f32.partialorder %v272, 0.0
      %vm305 = vcmp.ge.f32.partialorder %v273, 0.0
      %vm306 = vcmp.ge.f32.partialorder %v274, 0.0
      %vm307 = vcmp.ge.f32.partialorder %v275, 0.0
      %vm308 = vcmp.ge.f32.partialorder %v276, 0.0
      %vm309 = vcmp.ge.f32.partialorder %v277, 0.0
      %vm310 = vcmp.ge.f32.partialorder %v278, 0.0
      %vm311 = vcmp.ge.f32.partialorder %v279, 0.0
      %vm312 = vcmp.ge.f32.partialorder %v280, 0.0
      %vm313 = vcmp.ge.f32.partialorder %v281, 0.0
      %vm314 = vcmp.ge.f32.partialorder %v282, 0.0
      %vm315 = vcmp.ge.f32.partialorder %v283, 0.0
      %v316 = vmul.f32 %v252, 0.2
      %v317 = vmul.f32 %v253, 0.2
      %v318 = vmul.f32 %v254, 0.2
      %v319 = vmul.f32 %v255, 0.2
      %v320 = vmul.f32 %v256, 0.2
      %v321 = vmul.f32 %v257, 0.2
      %v322 = vmul.f32 %v258, 0.2
      %v323 = vmul.f32 %v259, 0.2
      %v324 = vmul.f32 %v260, 0.2
      %v325 = vmul.f32 %v261, 0.2
      %v326 = vmul.f32 %v262, 0.2
      %v327 = vmul.f32 %v263, 0.2
      %v328 = vmul.f32 %v264, 0.2
      %v329 = vmul.f32 %v265, 0.2
      %v330 = vmul.f32 %v266, 0.2
      %v331 = vmul.f32 %v267, 0.2
      %v332 = vmul.f32 %v268, 0.2
      %v333 = vmul.f32 %v269, 0.2
      %v334 = vmul.f32 %v270, 0.2
      %v335 = vmul.f32 %v271, 0.2
      %v336 = vmul.f32 %v272, 0.2
      %v337 = vmul.f32 %v273, 0.2
      %v338 = vmul.f32 %v274, 0.2
      %v339 = vmul.f32 %v275, 0.2
      %v340 = vmul.f32 %v276, 0.2
      %v341 = vmul.f32 %v277, 0.2
      %v342 = vmul.f32 %v278, 0.2
      %v343 = vmul.f32 %v279, 0.2
      %v344 = vmul.f32 %v280, 0.2
      %v345 = vmul.f32 %v281, 0.2
      %v346 = vmul.f32 %v282, 0.2
      %v347 = vmul.f32 %v283, 0.2
      %v348 = vsel %vm284, %v252, %v316
      %v349 = vsel %vm285, %v253, %v317
      %v350 = vsel %vm286, %v254, %v318
      %v351 = vsel %vm287, %v255, %v319
      %v352 = vsel %vm288, %v256, %v320
      %v353 = vsel %vm289, %v257, %v321
      %v354 = vsel %vm290, %v258, %v322
      %v355 = vsel %vm291, %v259, %v323
      %v356 = vsel %vm292, %v260, %v324
      %v357 = vsel %vm293, %v261, %v325
      %v358 = vsel %vm294, %v262, %v326
      %v359 = vsel %vm295, %v263, %v327
      %v360 = vsel %vm296, %v264, %v328
      %v361 = vsel %vm297, %v265, %v329
      %v362 = vsel %vm298, %v266, %v330
      %v363 = vsel %vm299, %v267, %v331
      %v364 = vsel %vm300, %v268, %v332
      %v365 = vsel %vm301, %v269, %v333
      %v366 = vsel %vm302, %v270, %v334
      %v367 = vsel %vm303, %v271, %v335
      %v368 = vsel %vm304, %v272, %v336
      %v369 = vsel %vm305, %v273, %v337
      %v370 = vsel %vm306, %v274, %v338
      %v371 = vsel %vm307, %v275, %v339
      %v372 = vsel %vm308, %v276, %v340
      %v373 = vsel %vm309, %v277, %v341
      %v374 = vsel %vm310, %v278, %v342
      %v375 = vsel %vm311, %v279, %v343
      %v376 = vsel %vm312, %v280, %v344
      %v377 = vsel %vm313, %v281, %v345
      %v378 = vsel %vm314, %v282, %v346
      %v379 = vsel %vm315, %v283, %v347
      %380 = vst [vmem:[%s172] sm:$0xff] %v348
      %381 = vst [vmem:[%s172 + $0x8] sm:$0xff] %v349
      %382 = vst [vmem:[%s172 + $0x10] sm:$0xff] %v350
      %383 = vst [vmem:[%s172 + $0x18] sm:$0xff] %v351
      %384 = vst [vmem:[%s172 + $0x20] sm:$0xff] %v352
      %385 = vst [vmem:[%s172 + $0x28] sm:$0xff] %v353
      %386 = vst [vmem:[%s172 + $0x30] sm:$0xff] %v354
      %387 = vst [vmem:[%s172 + $0x38] sm:$0xff] %v355
      %388 = vst [vmem:[%s172 + $0x40] sm:$0xff] %v356
      %389 = vst [vmem:[%s172 + $0x48] sm:$0xff] %v357
      %390 = vst [vmem:[%s172 + $0x50] sm:$0xff] %v358
      %391 = vst [vmem:[%s172 + $0x58] sm:$0xff] %v359
      %392 = vst [vmem:[%s172 + $0x60] sm:$0xff] %v360
      %393 = vst [vmem:[%s172 + $0x68] sm:$0xff] %v361
      %394 = vst [vmem:[%s172 + $0x70] sm:$0xff] %v362
      %395 = vst [vmem:[%s172 + $0x78] sm:$0xff] %v363
      %396 = vst [vmem:[%s172 + $0x80] sm:$0xff] %v364
      %397 = vst [vmem:[%s172 + $0x88] sm:$0xff] %v365
      %398 = vst [vmem:[%s172 + $0x90] sm:$0xff] %v366
      %399 = vst [vmem:[%s172 + $0x98] sm:$0xff] %v367
      %400 = vst [vmem:[%s172 + $0xa0] sm:$0xff] %v368
      %401 = vst [vmem:[%s172 + $0xa8] sm:$0xff] %v369
      %402 = vst [vmem:[%s172 + $0xb0] sm:$0xff] %v370
      %403 = vst [vmem:[%s172 + $0xb8] sm:$0xff] %v371
      %404 = vst [vmem:[%s172 + $0xc0] sm:$0xff] %v372
      %405 = vst [vmem:[%s172 + $0xc8] sm:$0xff] %v373
      %406 = vst [vmem:[%s172 + $0xd0] sm:$0xff] %v374
      %407 = vst [vmem:[%s172 + $0xd8] sm:$0xff] %v375
      %408 = vst [vmem:[%s172 + $0xe0] sm:$0xff] %v376
      %409 = vst [vmem:[%s172 + $0xe8] sm:$0xff] %v377
      %410 = vst [vmem:[%s172 + $0xf0] sm:$0xff] %v378
      %411 = vst [vmem:[%s172 + $0xf8] sm:$0xff] %v379
      %s412 = smul.u32 32, %s14
      %p413 = scmp.lt.s32.totalorder %s412, 63
      %s414 = scalar_select %p413, %s412, 63
      %s415 = smul.addr %s414, 8
      %s416 = scalar_lea.vmem %s3, %s415
      // Predicated region
      $region33: #{encoder_forward.13} parent=31 // pred_check
        %p417 = pneg %p100
      $region34: #{encoder_forward.13} parent=31 // pred_check_branch
        %419 = sbr.rel (%p417) target = $region36
      $region35: #{encoder_forward.13} parent=31 // pred_region
        %s420 = smul.u32 32, %s14
      $region36: #{encoder_forward.13} parent=31 // pred_fallthru
        _
    $region32: #{encoder_forward.13} parent=5 // pred_fallthru
      _
    %p421 = scmp.le.s32.totalorder 2, %s9
    // Predicated region
    $region37: #{encoder_forward.13} parent=5 // pred_check
      %p422 = pneg %p421
    $region38: #{encoder_forward.13} parent=5 // pred_check_branch
      %424 = sbr.rel (%p422) target = $region40
    $region39: #{encoder_forward.13} parent=5 // pred_region
      %s425 = ssub.s32 %s9, 2
      // Predicated region
      $region41: #{encoder_forward.13} parent=39 // pred_check
        %p426 = pneg %p106
      $region42: #{encoder_forward.13} parent=39 // pred_check_branch
        %428 = sbr.rel (%p426) target = $region44
      $region43: #{encoder_forward.13} parent=39 // pred_region
        %s429 = smul.u32 32, %s15
        %p430 = scmp.lt.s32.totalorder %s429, 63
        %s431 = scalar_select %p430, %s429, 63
        %s432 = smul.addr %s431, 8
        %s433 = scalar_lea.vmem %s3, %s432
      $region44: #{encoder_forward.13} parent=39 // pred_fallthru
        _
    $region40: #{encoder_forward.13} parent=5 // pred_fallthru
      _
  $region6: #{encoder_forward.13} parent=0 // loop_footer
    %s13 = sadd.s32 1, %s9
  $region7: #{encoder_forward.13} parent=0 // loop_footer_branch
    %8 = sbr.rel target = $region3
  $region8: #{encoder_forward.13} parent=0 // loop_exit
    _

// kernel: encoder_forward.14
$region0: #{encoder_forward.14}
  #allocation0 [shape = 'u32[]', space=smem, size = 0x4, offset = 0x4, fixed_abs, tag = 'smem constant byte address 0x4 - core index']
  #allocation1 [shape = 'u32[144,128]{1,0:T(1,128)}', space=vmem, size = 0x12000, scoped, tag = 'internal scratch']
  %s0 = inlined_call_operand.vmem [shape: bf16[128,256], index: 0, kind: input, shape index: {}]
  %s1 = inlined_call_operand.vmem [shape: bf16[256,128], index: 1, kind: input, shape index: {}]
  %s2 = inlined_call_operand.vmem [shape: f32[128,128], index: 2, kind: output, shape index: {0}]
  %s3 = inlined_call_operand.vmem [shape: f32[8,128], index: 3, kind: output, shape index: {1}]
  %4 = xla_tuple %s2, %s3
  %s5 = sld [smem:[#allocation0]]
  $region34: #{encoder_forward.14} parent=0
    _
  %s7 = ssub.s32 1, %s5
  %s8 = scalar_select 0, %s7, %s5
  // Predicated region
  $region2: #{encoder_forward.14} parent=0 // pred_check
    _
  $region3: #{encoder_forward.14} parent=0 // pred_check_branch
    %10 = sbr.rel (0) target = $region5
  $region4: #{encoder_forward.14} parent=0 // pred_region
    _
  $region5: #{encoder_forward.14} parent=0 // pred_fallthru
    _
  // Predicated region
  $region6: #{encoder_forward.14} parent=0 // pred_check
    _
  $region7: #{encoder_forward.14} parent=0 // pred_check_branch
    %12 = sbr.rel (0) target = $region9
  $region8: #{encoder_forward.14} parent=0 // pred_region
    _
  $region9: #{encoder_forward.14} parent=0 // pred_fallthru
    _
  %p14 = scmp.eq.s32.totalorder 0, 0
  // Predicated region
  $region10: #{encoder_forward.14} parent=0 // pred_check
    %p15 = pneg %p14
  $region11: #{encoder_forward.14} parent=0 // pred_check_branch
    %17 = sbr.rel (%p15) target = $region13
  $region12: #{encoder_forward.14} parent=0 // pred_region
    %18 = vst [vmem:[%s2] sm:$0xff] 0.0
    %19 = vst [vmem:[%s2 + $0x8] sm:$0xff] 0.0
    %20 = vst [vmem:[%s2 + $0x10] sm:$0xff] 0.0
    %21 = vst [vmem:[%s2 + $0x18] sm:$0xff] 0.0
    %22 = vst [vmem:[%s2 + $0x20] sm:$0xff] 0.0
    %23 = vst [vmem:[%s2 + $0x28] sm:$0xff] 0.0
    %24 = vst [vmem:[%s2 + $0x30] sm:$0xff] 0.0
    %25 = vst [vmem:[%s2 + $0x38] sm:$0xff] 0.0
    %26 = vst [vmem:[%s2 + $0x40] sm:$0xff] 0.0
    %27 = vst [vmem:[%s2 + $0x48] sm:$0xff] 0.0
    %28 = vst [vmem:[%s2 + $0x50] sm:$0xff] 0.0
    %29 = vst [vmem:[%s2 + $0x58] sm:$0xff] 0.0
    %30 = vst [vmem:[%s2 + $0x60] sm:$0xff] 0.0
    %31 = vst [vmem:[%s2 + $0x68] sm:$0xff] 0.0
    %32 = vst [vmem:[%s2 + $0x70] sm:$0xff] 0.0
    %33 = vst [vmem:[%s2 + $0x78] sm:$0xff] 0.0
  $region13: #{encoder_forward.14} parent=0 // pred_fallthru
    _
  %v34 = vld [vmem:[%s2] sm:$0xff]
  %v35 = vld [vmem:[%s2 + $0x8] sm:$0xff]
  %v36 = vld [vmem:[%s2 + $0x10] sm:$0xff]
  %v37 = vld [vmem:[%s2 + $0x18] sm:$0xff]
  %v38 = vld [vmem:[%s2 + $0x20] sm:$0xff]
  %v39 = vld [vmem:[%s2 + $0x28] sm:$0xff]
  %v40 = vld [vmem:[%s2 + $0x30] sm:$0xff]
  %v41 = vld [vmem:[%s2 + $0x38] sm:$0xff]
  %v42 = vld [vmem:[%s2 + $0x40] sm:$0xff]
  %v43 = vld [vmem:[%s2 + $0x48] sm:$0xff]
  %v44 = vld [vmem:[%s2 + $0x50] sm:$0xff]
  %v45 = vld [vmem:[%s2 + $0x58] sm:$0xff]
  %v46 = vld [vmem:[%s2 + $0x60] sm:$0xff]
  %v47 = vld [vmem:[%s2 + $0x68] sm:$0xff]
  %v48 = vld [vmem:[%s2 + $0x70] sm:$0xff]
  %v49 = vld [vmem:[%s2 + $0x78] sm:$0xff]
  %v50 = vld [vmem:[%s0] sm:$0xff]
  %v51 = vld [vmem:[%s0 + $0x8] sm:$0xff]
  %v52 = vld [vmem:[%s0 + $0x10] sm:$0xff]
  %v53 = vld [vmem:[%s0 + $0x18] sm:$0xff]
  %v54 = vld [vmem:[%s0 + $0x20] sm:$0xff]
  %v55 = vld [vmem:[%s0 + $0x28] sm:$0xff]
  %v56 = vld [vmem:[%s0 + $0x30] sm:$0xff]
  %v57 = vld [vmem:[%s0 + $0x38] sm:$0xff]
  %v58 = vld [vmem:[%s0 + $0x40] sm:$0xff]
  %v59 = vld [vmem:[%s0 + $0x48] sm:$0xff]
  %v60 = vld [vmem:[%s0 + $0x50] sm:$0xff]
  %v61 = vld [vmem:[%s0 + $0x58] sm:$0xff]
  %v62 = vld [vmem:[%s0 + $0x60] sm:$0xff]
  %v63 = vld [vmem:[%s0 + $0x68] sm:$0xff]
  %v64 = vld [vmem:[%s0 + $0x70] sm:$0xff]
  %v65 = vld [vmem:[%s0 + $0x78] sm:$0xff]
  %v66 = vld [vmem:[%s1] sm:$0xf]
  %v67 = vld [vmem:[%s1 + $0x4] sm:$0xf]
  %v68 = vld [vmem:[%s1 + $0x8] sm:$0xf]
  %v69 = vld [vmem:[%s1 + $0xc] sm:$0xf]
  %v70 = vld [vmem:[%s1 + $0x10] sm:$0xf]
  %v71 = vld [vmem:[%s1 + $0x14] sm:$0xf]
  %v72 = vld [vmem:[%s1 + $0x18] sm:$0xf]
  %v73 = vld [vmem:[%s1 + $0x1c] sm:$0xf]
  %v74 = vld [vmem:[%s1 + $0x20] sm:$0xf]
  %v75 = vld [vmem:[%s1 + $0x24] sm:$0xf]
  %v76 = vld [vmem:[%s1 + $0x28] sm:$0xf]
  %v77 = vld [vmem:[%s1 + $0x2c] sm:$0xf]
  %v78 = vld [vmem:[%s1 + $0x30] sm:$0xf]
  %v79 = vld [vmem:[%s1 + $0x34] sm:$0xf]
  %v80 = vld [vmem:[%s1 + $0x38] sm:$0xf]
  %v81 = vld [vmem:[%s1 + $0x3c] sm:$0xf]
  %v82 = vld [vmem:[%s1 + $0x40] sm:$0xf]
  %v83 = vld [vmem:[%s1 + $0x44] sm:$0xf]
  %v84 = vld [vmem:[%s1 + $0x48] sm:$0xf]
  %v85 = vld [vmem:[%s1 + $0x4c] sm:$0xf]
  %v86 = vld [vmem:[%s1 + $0x50] sm:$0xf]
  %v87 = vld [vmem:[%s1 + $0x54] sm:$0xf]
  %v88 = vld [vmem:[%s1 + $0x58] sm:$0xf]
  %v89 = vld [vmem:[%s1 + $0x5c] sm:$0xf]
  %v90 = vld [vmem:[%s1 + $0x60] sm:$0xf]
  %v91 = vld [vmem:[%s1 + $0x64] sm:$0xf]
  %v92 = vld [vmem:[%s1 + $0x68] sm:$0xf]
  %v93 = vld [vmem:[%s1 + $0x6c] sm:$0xf]
  %v94 = vld [vmem:[%s1 + $0x70] sm:$0xf]
  %v95 = vld [vmem:[%s1 + $0x74] sm:$0xf]
  %v96 = vld [vmem:[%s1 + $0x78] sm:$0xf]
  %v97 = vld [vmem:[%s1 + $0x7c] sm:$0xf]
  %v114 = vunpack.c.l.b16 %v50
  %v115 = vunpack.c.h.b16 %v50
  %v116 = vunpack.c.l.b16 %v51
  %v117 = vunpack.c.h.b16 %v51
  %v118 = vunpack.c.l.b16 %v52
  %v119 = vunpack.c.h.b16 %v52
  %v120 = vunpack.c.l.b16 %v53
  %v121 = vunpack.c.h.b16 %v53
  %v122 = vunpack.c.l.b16 %v54
  %v123 = vunpack.c.h.b16 %v54
  %v124 = vunpack.c.l.b16 %v55
  %v125 = vunpack.c.h.b16 %v55
  %v126 = vunpack.c.l.b16 %v56
  %v127 = vunpack.c.h.b16 %v56
  %v128 = vunpack.c.l.b16 %v57
  %v129 = vunpack.c.h.b16 %v57
  %v130 = vunpack.c.l.b16 %v58
  %v131 = vunpack.c.h.b16 %v58
  %v132 = vunpack.c.l.b16 %v59
  %v133 = vunpack.c.h.b16 %v59
  %v134 = vunpack.c.l.b16 %v60
  %v135 = vunpack.c.h.b16 %v60
  %v136 = vunpack.c.l.b16 %v61
  %v137 = vunpack.c.h.b16 %v61
  %v138 = vunpack.c.l.b16 %v62
  %v139 = vunpack.c.h.b16 %v62
  %v140 = vunpack.c.l.b16 %v63
  %v141 = vunpack.c.h.b16 %v63
  %v142 = vunpack.c.l.b16 %v64
  %v143 = vunpack.c.h.b16 %v64
  %v144 = vunpack.c.l.b16 %v65
  %v145 = vunpack.c.h.b16 %v65
  %v146 = vpack.c.b16 %v116, %v114
  %v147 = vpack.c.b16 %v117, %v115
  %v148 = vpack.c.b16 %v120, %v118
  %v149 = vpack.c.b16 %v121, %v119
  %v150 = vpack.c.b16 %v124, %v122
  %v151 = vpack.c.b16 %v125, %v123
  %v152 = vpack.c.b16 %v128, %v126
  %v153 = vpack.c.b16 %v129, %v127
  %v154 = vpack.c.b16 %v132, %v130
  %v155 = vpack.c.b16 %v133, %v131
  %v156 = vpack.c.b16 %v136, %v134
  %v157 = vpack.c.b16 %v137, %v135
  %v158 = vpack.c.b16 %v140, %v138
  %v159 = vpack.c.b16 %v141, %v139
  %v160 = vpack.c.b16 %v144, %v142
  %v161 = vpack.c.b16 %v145, %v143
  %v210 = vunpack.c.l.b16 %v66
  %v211 = vunpack.c.l.b16 %v67
  %v212 = vunpack.c.l.b16 %v68
  %v213 = vunpack.c.l.b16 %v69
  %v214 = vunpack.c.l.b16 %v70
  %v215 = vunpack.c.l.b16 %v71
  %v216 = vunpack.c.l.b16 %v72
  %v217 = vunpack.c.l.b16 %v73
  %v218 = vunpack.c.l.b16 %v74
  %v219 = vunpack.c.l.b16 %v75
  %v220 = vunpack.c.l.b16 %v76
  %v221 = vunpack.c.l.b16 %v77
  %v222 = vunpack.c.l.b16 %v78
  %v223 = vunpack.c.l.b16 %v79
  %v224 = vunpack.c.l.b16 %v80
  %v225 = vunpack.c.l.b16 %v81
  %v226 = vunpack.c.l.b16 %v82
  %v227 = vunpack.c.l.b16 %v83
  %v228 = vunpack.c.l.b16 %v84
  %v229 = vunpack.c.l.b16 %v85
  %v230 = vunpack.c.l.b16 %v86
  %v231 = vunpack.c.l.b16 %v87
  %v232 = vunpack.c.l.b16 %v88
  %v233 = vunpack.c.l.b16 %v89
  %v234 = vunpack.c.l.b16 %v90
  %v235 = vunpack.c.l.b16 %v91
  %v236 = vunpack.c.l.b16 %v92
  %v237 = vunpack.c.l.b16 %v93
  %v238 = vunpack.c.l.b16 %v94
  %v239 = vunpack.c.l.b16 %v95
  %v240 = vunpack.c.l.b16 %v96
  %v241 = vunpack.c.l.b16 %v97
  %v242 = vpack.c.b16 %v211, %v210
  %v243 = vpack.c.b16 %v213, %v212
  %v244 = vpack.c.b16 %v215, %v214
  %v245 = vpack.c.b16 %v217, %v216
  %v246 = vpack.c.b16 %v219, %v218
  %v247 = vpack.c.b16 %v221, %v220
  %v248 = vpack.c.b16 %v223, %v222
  %v249 = vpack.c.b16 %v225, %v224
  %v250 = vpack.c.b16 %v227, %v226
  %v251 = vpack.c.b16 %v229, %v228
  %v252 = vpack.c.b16 %v231, %v230
  %v253 = vpack.c.b16 %v233, %v232
  %v254 = vpack.c.b16 %v235, %v234
  %v255 = vpack.c.b16 %v237, %v236
  %v256 = vpack.c.b16 %v239, %v238
  %v257 = vpack.c.b16 %v241, %v240
  %274 = vmatprep.subr.bf16.mxu0 0
  %275 = vmatpush1.bf16.msra.mxu0 %v242
  %276 = vmatprep.subr.bf16.mxu0 0
  %277 = vmatpush1.bf16.msra.mxu0 %v243
  %278 = vmatprep.subr.bf16.mxu0 0
  %279 = vmatpush1.bf16.msra.mxu0 %v244
  %280 = vmatprep.subr.bf16.mxu0 0
  %281 = vmatpush1.bf16.msra.mxu0 %v245
  %282 = vmatprep.subr.bf16.mxu0 0
  %283 = vmatpush1.bf16.msra.mxu0 %v246
  %284 = vmatprep.subr.bf16.mxu0 0
  %285 = vmatpush1.bf16.msra.mxu0 %v247
  %286 = vmatprep.subr.bf16.mxu0 0
  %287 = vmatpush1.bf16.msra.mxu0 %v248
  %288 = vmatprep.subr.bf16.mxu0 0
  %289 = vmatpush1.bf16.msra.mxu0 %v249
  %290 = vmatprep.subr.bf16.mxu0 0
  %291 = vmatpush1.bf16.msra.mxu0 %v250
  %292 = vmatprep.subr.bf16.mxu0 0
  %293 = vmatpush1.bf16.msra.mxu0 %v251
  %294 = vmatprep.subr.bf16.mxu0 0
  %295 = vmatpush1.bf16.msra.mxu0 %v252
  %296 = vmatprep.subr.bf16.mxu0 0
  %297 = vmatpush1.bf16.msra.mxu0 %v253
  %298 = vmatprep.subr.bf16.mxu0 0
  %299 = vmatpush1.bf16.msra.mxu0 %v254
  %300 = vmatprep.subr.bf16.mxu0 0
  %301 = vmatpush1.bf16.msra.mxu0 %v255
  %302 = vmatprep.subr.bf16.mxu0 0
  %303 = vmatpush1.bf16.msra.mxu0 %v256
  %304 = vmatprep.subr.bf16.mxu0 0
  %305 = vmatpush1.bf16.msra.mxu0 %v257
  %306 = vmatprep.mubr.bf16.mxu0 %v147
  %307 = vmatmul.mubr.bf16.gmra.mrb[0].mxu0 %v146
  %v308 = vpop.f32.mrb[0].mxu0
  %v309 = vadd.f32 0.0, %v308
  %v310 = vpop.f32.mrb[0].mxu0
  %v311 = vpop.f32.mrb[0].mxu0
  %v312 = vadd.f32 0.0, %v311
  %v313 = vpop.f32.mrb[0].mxu0
  %314 = vmatprep.mubr.bf16.mxu0 %v149
  %315 = vmatmul.mubr.bf16.gmra.mrb[0].mxu0 %v148
  %v316 = vpop.f32.mrb[0].mxu0
  %v317 = vadd.f32 0.0, %v316
  %v318 = vpop.f32.mrb[0].mxu0
  %v319 = vpop.f32.mrb[0].mxu0
  %v320 = vadd.f32 0.0, %v319
  %v321 = vpop.f32.mrb[0].mxu0
  %322 = vmatprep.mubr.bf16.mxu0 %v151
  %323 = vmatmul.mubr.bf16.gmra.mrb[0].mxu0 %v150
  %v324 = vpop.f32.mrb[0].mxu0
  %v325 = vadd.f32 0.0, %v324
  %v326 = vpop.f32.mrb[0].mxu0
  %v327 = vpop.f32.mrb[0].mxu0
  %v328 = vadd.f32 0.0, %v327
  %v329 = vpop.f32.mrb[0].mxu0
  %330 = vmatprep.mubr.bf16.mxu0 %v153
  %331 = vmatmul.mubr.bf16.gmra.mrb[0].mxu0 %v152
  %v332 = vpop.f32.mrb[0].mxu0
  %v333 = vadd.f32 0.0, %v332
  %v334 = vpop.f32.mrb[0].mxu0
  %v335 = vpop.f32.mrb[0].mxu0
  %v336 = vadd.f32 0.0, %v335
  %v337 = vpop.f32.mrb[0].mxu0
  %338 = vmatprep.mubr.bf16.mxu0 %v155
  %339 = vmatmul.mubr.bf16.gmra.mrb[0].mxu0 %v154
  %v340 = vpop.f32.mrb[0].mxu0
  %v341 = vadd.f32 0.0, %v340
  %v342 = vpop.f32.mrb[0].mxu0
  %v343 = vpop.f32.mrb[0].mxu0
  %v344 = vadd.f32 0.0, %v343
  %v345 = vpop.f32.mrb[0].mxu0
  %346 = vmatprep.mubr.bf16.mxu0 %v157
  %347 = vmatmul.mubr.bf16.gmra.mrb[0].mxu0 %v156
  %v348 = vpop.f32.mrb[0].mxu0
  %v349 = vadd.f32 0.0, %v348
  %v350 = vpop.f32.mrb[0].mxu0
  %v351 = vpop.f32.mrb[0].mxu0
  %v352 = vadd.f32 0.0, %v351
  %v353 = vpop.f32.mrb[0].mxu0
  %354 = vmatprep.mubr.bf16.mxu0 %v159
  %355 = vmatmul.mubr.bf16.gmra.mrb[0].mxu0 %v158
  %v356 = vpop.f32.mrb[0].mxu0
  %v357 = vadd.f32 0.0, %v356
  %v358 = vpop.f32.mrb[0].mxu0
  %v359 = vpop.f32.mrb[0].mxu0
  %v360 = vadd.f32 0.0, %v359
  %v361 = vpop.f32.mrb[0].mxu0
  %362 = vmatprep.mubr.bf16.mxu0 %v161
  %363 = vmatmul.mubr.bf16.gmra.mrb[0].mxu0 %v160
  %v364 = vpop.f32.mrb[0].mxu0
  %v365 = vadd.f32 0.0, %v364
  %v366 = vpop.f32.mrb[0].mxu0
  %v367 = vpop.f32.mrb[0].mxu0
  %v368 = vadd.f32 0.0, %v367
  %v369 = vpop.f32.mrb[0].mxu0
  %370 = vdwg.mxu0
  %v371 = vadd.f32 %v34, %v309
  %v372 = vadd.f32 %v35, %v312
  %v373 = vadd.f32 %v36, %v317
  %v374 = vadd.f32 %v37, %v320
  %v375 = vadd.f32 %v38, %v325
  %v376 = vadd.f32 %v39, %v328
  %v377 = vadd.f32 %v40, %v333
  %v378 = vadd.f32 %v41, %v336
  %v379 = vadd.f32 %v42, %v341
  %v380 = vadd.f32 %v43, %v344
  %v381 = vadd.f32 %v44, %v349
  %v382 = vadd.f32 %v45, %v352
  %v383 = vadd.f32 %v46, %v357
  %v384 = vadd.f32 %v47, %v360
  %v385 = vadd.f32 %v48, %v365
  %v386 = vadd.f32 %v49, %v368
  %387 = vst [vmem:[%s2] sm:$0xff] %v371
  %388 = vst [vmem:[%s2 + $0x8] sm:$0xff] %v372
  %389 = vst [vmem:[%s2 + $0x10] sm:$0xff] %v373
  %390 = vst [vmem:[%s2 + $0x18] sm:$0xff] %v374
  %391 = vst [vmem:[%s2 + $0x20] sm:$0xff] %v375
  %392 = vst [vmem:[%s2 + $0x28] sm:$0xff] %v376
  %393 = vst [vmem:[%s2 + $0x30] sm:$0xff] %v377
  %394 = vst [vmem:[%s2 + $0x38] sm:$0xff] %v378
  %395 = vst [vmem:[%s2 + $0x40] sm:$0xff] %v379
  %396 = vst [vmem:[%s2 + $0x48] sm:$0xff] %v380
  %397 = vst [vmem:[%s2 + $0x50] sm:$0xff] %v381
  %398 = vst [vmem:[%s2 + $0x58] sm:$0xff] %v382
  %399 = vst [vmem:[%s2 + $0x60] sm:$0xff] %v383
  %400 = vst [vmem:[%s2 + $0x68] sm:$0xff] %v384
  %401 = vst [vmem:[%s2 + $0x70] sm:$0xff] %v385
  %402 = vst [vmem:[%s2 + $0x78] sm:$0xff] %v386
  // Predicated region
  $region14: #{encoder_forward.14} parent=0 // pred_check
    %p403 = pneg %p14
  $region15: #{encoder_forward.14} parent=0 // pred_check_branch
    %405 = sbr.rel (%p403) target = $region17
  $region16: #{encoder_forward.14} parent=0 // pred_region
    %v406 = vld [vmem:[%s2] sm:$0xff]
    %v407 = vld [vmem:[%s2 + $0x8] sm:$0xff]
    %v408 = vld [vmem:[%s2 + $0x10] sm:$0xff]
    %v409 = vld [vmem:[%s2 + $0x18] sm:$0xff]
    %v410 = vld [vmem:[%s2 + $0x20] sm:$0xff]
    %v411 = vld [vmem:[%s2 + $0x28] sm:$0xff]
    %v412 = vld [vmem:[%s2 + $0x30] sm:$0xff]
    %v413 = vld [vmem:[%s2 + $0x38] sm:$0xff]
    %v414 = vld [vmem:[%s2 + $0x40] sm:$0xff]
    %v415 = vld [vmem:[%s2 + $0x48] sm:$0xff]
    %v416 = vld [vmem:[%s2 + $0x50] sm:$0xff]
    %v417 = vld [vmem:[%s2 + $0x58] sm:$0xff]
    %v418 = vld [vmem:[%s2 + $0x60] sm:$0xff]
    %v419 = vld [vmem:[%s2 + $0x68] sm:$0xff]
    %v420 = vld [vmem:[%s2 + $0x70] sm:$0xff]
    %v421 = vld [vmem:[%s2 + $0x78] sm:$0xff]
    %v422 = vadd.f32 %v406, %v407
    %v423 = vadd.f32 %v422, %v408
    %v424 = vadd.f32 %v423, %v409
    %v425 = vadd.f32 %v424, %v410
    %v426 = vadd.f32 %v425, %v411
    %v427 = vadd.f32 %v426, %v412
    %v428 = vadd.f32 %v427, %v413
    %v429 = vadd.f32 %v428, %v414
    %v430 = vadd.f32 %v429, %v415
    %v431 = vadd.f32 %v430, %v416
    %v432 = vadd.f32 %v431, %v417
    %v433 = vadd.f32 %v432, %v418
    %v434 = vadd.f32 %v433, %v419
    %v435 = vadd.f32 %v434, %v420
    %v436 = vadd.f32 %v435, %v421
    %v437 = vrot.slane %v436, 4
    %v438 = vadd.f32 %v436, %v437
    %v439 = vrot.slane %v438, 2
    %v440 = vadd.f32 %v438, %v439
    %v441 = vrot.slane %v440, 1
    %v442 = vadd.f32 %v440, %v441
    %v443 = vmul.f32 %v406, %v406
    %v444 = vmul.f32 %v407, %v407
    %v445 = vmul.f32 %v408, %v408
    %v446 = vmul.f32 %v409, %v409
    %v447 = vmul.f32 %v410, %v410
    %v448 = vmul.f32 %v411, %v411
    %v449 = vmul.f32 %v412, %v412
    %v450 = vmul.f32 %v413, %v413
    %v451 = vmul.f32 %v414, %v414
    %v452 = vmul.f32 %v415, %v415
    %v453 = vmul.f32 %v416, %v416
    %v454 = vmul.f32 %v417, %v417
    %v455 = vmul.f32 %v418, %v418
    %v456 = vmul.f32 %v419, %v419
    %v457 = vmul.f32 %v420, %v420
    %v458 = vmul.f32 %v421, %v421
    %v459 = vadd.f32 %v443, %v444
    %v460 = vadd.f32 %v459, %v445
    %v461 = vadd.f32 %v460, %v446
    %v462 = vadd.f32 %v461, %v447
    %v463 = vadd.f32 %v462, %v448
    %v464 = vadd.f32 %v463, %v449
    %v465 = vadd.f32 %v464, %v450
    %v466 = vadd.f32 %v465, %v451
    %v467 = vadd.f32 %v466, %v452
    %v468 = vadd.f32 %v467, %v453
    %v469 = vadd.f32 %v468, %v454
    %v470 = vadd.f32 %v469, %v455
    %v471 = vadd.f32 %v470, %v456
    %v472 = vadd.f32 %v471, %v457
    %v473 = vadd.f32 %v472, %v458
    %v474 = vrot.slane %v473, 4
    %v475 = vadd.f32 %v473, %v474
    %v476 = vrot.slane %v475, 2
    %v477 = vadd.f32 %v475, %v476
    %v478 = vrot.slane %v477, 1
    %v479 = vadd.f32 %v477, %v478
    %v480 = vlaneseq
    %v481 = vshrl.u32 %v480, 7
    %vm482 = vcmp.eq.s32.totalorder %v481, 0
    %vm483 = vcmp.eq.s32.totalorder %v481, 1
    %v484 = vsel %vm483, %v479, 0.0
    %v485 = vsel %vm482, %v442, %v484
    %486 = vst [vmem:[%s3] sm:$0xff] %v485
  $region17: #{encoder_forward.14} parent=0 // pred_fallthru
    _
  // Predicated region
  $region18: #{encoder_forward.14} parent=0 // pred_check
    _
  $region19: #{encoder_forward.14} parent=0 // pred_check_branch
    %488 = sbr.rel (0) target = $region21
  $region20: #{encoder_forward.14} parent=0 // pred_region
    _
  $region21: #{encoder_forward.14} parent=0 // pred_fallthru
    _
  // Predicated region
  $region22: #{encoder_forward.14} parent=0 // pred_check
    _
  $region23: #{encoder_forward.14} parent=0 // pred_check_branch
    %490 = sbr.rel (0) target = $region25
  $region24: #{encoder_forward.14} parent=0 // pred_region
    _
  $region25: #{encoder_forward.14} parent=0 // pred_fallthru
    _
  // Predicated region
  $region26: #{encoder_forward.14} parent=0 // pred_check
    _
  $region27: #{encoder_forward.14} parent=0 // pred_check_branch
    %492 = sbr.rel (0) target = $region29
  $region28: #{encoder_forward.14} parent=0 // pred_region
    _
  $region29: #{encoder_forward.14} parent=0 // pred_fallthru
    _
  // Predicated region
  $region30: #{encoder_forward.14} parent=0 // pred_check
    _
  $region31: #{encoder_forward.14} parent=0 // pred_check_branch
    %494 = sbr.rel (0) target = $region33
  $region32: #{encoder_forward.14} parent=0 // pred_region
    _
  $region33: #{encoder_forward.14} parent=0 // pred_fallthru
    _

// kernel: encoder_forward.15
$region0: #{encoder_forward.15}
  #allocation0 [shape = 'u32[]', space=smem, size = 0x4, offset = 0x4, fixed_abs, tag = 'smem constant byte address 0x4 - core index']
  #allocation1 [shape = 'u32[144,128]{1,0:T(1,128)}', space=vmem, size = 0x12000, scoped, tag = 'internal scratch']
  %s0 = inlined_call_operand.vmem [shape: f32[128,128], index: 0, kind: input, shape index: {}]
  %s1 = inlined_call_operand.vmem [shape: f32[1,128], index: 1, kind: input, shape index: {}]
  %s2 = inlined_call_operand.vmem [shape: f32[1,128], index: 2, kind: input, shape index: {}]
  %s3 = inlined_call_operand.vmem [shape: f32[128,128], index: 3, kind: output, shape index: {}]
  %s4 = sld [smem:[#allocation0]]
  $region22: #{encoder_forward.15} parent=0
    _
  %s6 = ssub.s32 1, %s4
  %s7 = scalar_select 0, %s6, %s4
  // Predicated region
  $region2: #{encoder_forward.15} parent=0 // pred_check
    _
  $region3: #{encoder_forward.15} parent=0 // pred_check_branch
    %9 = sbr.rel (0) target = $region5
  $region4: #{encoder_forward.15} parent=0 // pred_region
    _
  $region5: #{encoder_forward.15} parent=0 // pred_fallthru
    _
  // Predicated region
  $region6: #{encoder_forward.15} parent=0 // pred_check
    _
  $region7: #{encoder_forward.15} parent=0 // pred_check_branch
    %11 = sbr.rel (0) target = $region9
  $region8: #{encoder_forward.15} parent=0 // pred_region
    _
  $region9: #{encoder_forward.15} parent=0 // pred_fallthru
    _
  // Predicated region
  $region10: #{encoder_forward.15} parent=0 // pred_check
    _
  $region11: #{encoder_forward.15} parent=0 // pred_check_branch
    %13 = sbr.rel (0) target = $region13
  $region12: #{encoder_forward.15} parent=0 // pred_region
    _
  $region13: #{encoder_forward.15} parent=0 // pred_fallthru
    _
  %v14 = vld [vmem:[%s0] sm:$0xff]
  %v15 = vld [vmem:[%s0 + $0x8] sm:$0xff]
  %v16 = vld [vmem:[%s0 + $0x10] sm:$0xff]
  %v17 = vld [vmem:[%s0 + $0x18] sm:$0xff]
  %v18 = vld [vmem:[%s0 + $0x20] sm:$0xff]
  %v19 = vld [vmem:[%s0 + $0x28] sm:$0xff]
  %v20 = vld [vmem:[%s0 + $0x30] sm:$0xff]
  %v21 = vld [vmem:[%s0 + $0x38] sm:$0xff]
  %v22 = vld [vmem:[%s0 + $0x40] sm:$0xff]
  %v23 = vld [vmem:[%s0 + $0x48] sm:$0xff]
  %v24 = vld [vmem:[%s0 + $0x50] sm:$0xff]
  %v25 = vld [vmem:[%s0 + $0x58] sm:$0xff]
  %v26 = vld [vmem:[%s0 + $0x60] sm:$0xff]
  %v27 = vld [vmem:[%s0 + $0x68] sm:$0xff]
  %v28 = vld [vmem:[%s0 + $0x70] sm:$0xff]
  %v29 = vld [vmem:[%s0 + $0x78] sm:$0xff]
  %v30 = vld [vmem:[%s1] sm:$0x1]
  %v32 = vlaneseq
  %v33 = vshrl.u32 %v32, 7
  %v34 = vsub.s32 0, %v33
  %v35 = vrot.slane %v30, %v34
  %v37 = vmul.f32 %v14, %v35
  %v38 = vmul.f32 %v15, %v35
  %v39 = vmul.f32 %v16, %v35
  %v40 = vmul.f32 %v17, %v35
  %v41 = vmul.f32 %v18, %v35
  %v42 = vmul.f32 %v19, %v35
  %v43 = vmul.f32 %v20, %v35
  %v44 = vmul.f32 %v21, %v35
  %v45 = vmul.f32 %v22, %v35
  %v46 = vmul.f32 %v23, %v35
  %v47 = vmul.f32 %v24, %v35
  %v48 = vmul.f32 %v25, %v35
  %v49 = vmul.f32 %v26, %v35
  %v50 = vmul.f32 %v27, %v35
  %v51 = vmul.f32 %v28, %v35
  %v52 = vmul.f32 %v29, %v35
  %v53 = vld [vmem:[%s2] sm:$0x1]
  %v55 = vlaneseq
  %v56 = vshrl.u32 %v55, 7
  %v57 = vsub.s32 0, %v56
  %v58 = vrot.slane %v53, %v57
  %v60 = vadd.f32 %v37, %v58
  %v61 = vadd.f32 %v38, %v58
  %v62 = vadd.f32 %v39, %v58
  %v63 = vadd.f32 %v40, %v58
  %v64 = vadd.f32 %v41, %v58
  %v65 = vadd.f32 %v42, %v58
  %v66 = vadd.f32 %v43, %v58
  %v67 = vadd.f32 %v44, %v58
  %v68 = vadd.f32 %v45, %v58
  %v69 = vadd.f32 %v46, %v58
  %v70 = vadd.f32 %v47, %v58
  %v71 = vadd.f32 %v48, %v58
  %v72 = vadd.f32 %v49, %v58
  %v73 = vadd.f32 %v50, %v58
  %v74 = vadd.f32 %v51, %v58
  %v75 = vadd.f32 %v52, %v58
  %vm76 = vcmp.ge.f32.partialorder %v60, 0.0
  %vm77 = vcmp.ge.f32.partialorder %v61, 0.0
  %vm78 = vcmp.ge.f32.partialorder %v62, 0.0
  %vm79 = vcmp.ge.f32.partialorder %v63, 0.0
  %vm80 = vcmp.ge.f32.partialorder %v64, 0.0
  %vm81 = vcmp.ge.f32.partialorder %v65, 0.0
  %vm82 = vcmp.ge.f32.partialorder %v66, 0.0
  %vm83 = vcmp.ge.f32.partialorder %v67, 0.0
  %vm84 = vcmp.ge.f32.partialorder %v68, 0.0
  %vm85 = vcmp.ge.f32.partialorder %v69, 0.0
  %vm86 = vcmp.ge.f32.partialorder %v70, 0.0
  %vm87 = vcmp.ge.f32.partialorder %v71, 0.0
  %vm88 = vcmp.ge.f32.partialorder %v72, 0.0
  %vm89 = vcmp.ge.f32.partialorder %v73, 0.0
  %vm90 = vcmp.ge.f32.partialorder %v74, 0.0
  %vm91 = vcmp.ge.f32.partialorder %v75, 0.0
  %v92 = vmul.f32 %v60, 0.2
  %v93 = vmul.f32 %v61, 0.2
  %v94 = vmul.f32 %v62, 0.2
  %v95 = vmul.f32 %v63, 0.2
  %v96 = vmul.f32 %v64, 0.2
  %v97 = vmul.f32 %v65, 0.2
  %v98 = vmul.f32 %v66, 0.2
  %v99 = vmul.f32 %v67, 0.2
  %v100 = vmul.f32 %v68, 0.2
  %v101 = vmul.f32 %v69, 0.2
  %v102 = vmul.f32 %v70, 0.2
  %v103 = vmul.f32 %v71, 0.2
  %v104 = vmul.f32 %v72, 0.2
  %v105 = vmul.f32 %v73, 0.2
  %v106 = vmul.f32 %v74, 0.2
  %v107 = vmul.f32 %v75, 0.2
  %v108 = vsel %vm76, %v60, %v92
  %v109 = vsel %vm77, %v61, %v93
  %v110 = vsel %vm78, %v62, %v94
  %v111 = vsel %vm79, %v63, %v95
  %v112 = vsel %vm80, %v64, %v96
  %v113 = vsel %vm81, %v65, %v97
  %v114 = vsel %vm82, %v66, %v98
  %v115 = vsel %vm83, %v67, %v99
  %v116 = vsel %vm84, %v68, %v100
  %v117 = vsel %vm85, %v69, %v101
  %v118 = vsel %vm86, %v70, %v102
  %v119 = vsel %vm87, %v71, %v103
  %v120 = vsel %vm88, %v72, %v104
  %v121 = vsel %vm89, %v73, %v105
  %v122 = vsel %vm90, %v74, %v106
  %v123 = vsel %vm91, %v75, %v107
  %124 = vst [vmem:[%s3] sm:$0xff] %v108
  %125 = vst [vmem:[%s3 + $0x8] sm:$0xff] %v109
  %126 = vst [vmem:[%s3 + $0x10] sm:$0xff] %v110
  %127 = vst [vmem:[%s3 + $0x18] sm:$0xff] %v111
  %128 = vst [vmem:[%s3 + $0x20] sm:$0xff] %v112
  %129 = vst [vmem:[%s3 + $0x28] sm:$0xff] %v113
  %130 = vst [vmem:[%s3 + $0x30] sm:$0xff] %v114
  %131 = vst [vmem:[%s3 + $0x38] sm:$0xff] %v115
  %132 = vst [vmem:[%s3 + $0x40] sm:$0xff] %v116
  %133 = vst [vmem:[%s3 + $0x48] sm:$0xff] %v117
  %134 = vst [vmem:[%s3 + $0x50] sm:$0xff] %v118
  %135 = vst [vmem:[%s3 + $0x58] sm:$0xff] %v119
  %136 = vst [vmem:[%s3 + $0x60] sm:$0xff] %v120
  %137 = vst [vmem:[%s3 + $0x68] sm:$0xff] %v121
  %138 = vst [vmem:[%s3 + $0x70] sm:$0xff] %v122
  %139 = vst [vmem:[%s3 + $0x78] sm:$0xff] %v123
  // Predicated region
  $region14: #{encoder_forward.15} parent=0 // pred_check
    _
  $region15: #{encoder_forward.15} parent=0 // pred_check_branch
    %141 = sbr.rel (0) target = $region17
  $region16: #{encoder_forward.15} parent=0 // pred_region
    _
  $region17: #{encoder_forward.15} parent=0 // pred_fallthru
    _
  // Predicated region
  $region18: #{encoder_forward.15} parent=0 // pred_check
    _
  $region19: #{encoder_forward.15} parent=0 // pred_check_branch
    %143 = sbr.rel (0) target = $region21
  $region20: #{encoder_forward.15} parent=0 // pred_region
    _
  $region21: #{encoder_forward.15} parent=0 // pred_fallthru
    _

// kernel: encoder_forward.17
$region0: #{encoder_forward.17}
  #allocation0 [shape = 'u32[]', space=smem, size = 0x4, offset = 0x4, fixed_abs, tag = 'smem constant byte address 0x4 - core index']
  #allocation1 [shape = 'u32[144,128]{1,0:T(1,128)}', space=vmem, size = 0x12000, scoped, tag = 'internal scratch']
  %s0 = inlined_call_operand.vmem [shape: f32[32,128], index: 0, kind: input, shape index: {}]
  %s1 = inlined_call_operand.vmem [shape: f32[1,128], index: 1, kind: input, shape index: {}]
  %s2 = inlined_call_operand.vmem [shape: f32[1,128], index: 2, kind: input, shape index: {}]
  %s3 = inlined_call_operand.vmem [shape: f32[32,128], index: 3, kind: output, shape index: {}]
  %s4 = sld [smem:[#allocation0]]
  $region22: #{encoder_forward.17} parent=0
    _
  %s6 = ssub.s32 1, %s4
  %s7 = scalar_select 0, %s6, %s4
  // Predicated region
  $region2: #{encoder_forward.17} parent=0 // pred_check
    _
  $region3: #{encoder_forward.17} parent=0 // pred_check_branch
    %9 = sbr.rel (0) target = $region5
  $region4: #{encoder_forward.17} parent=0 // pred_region
    _
  $region5: #{encoder_forward.17} parent=0 // pred_fallthru
    _
  // Predicated region
  $region6: #{encoder_forward.17} parent=0 // pred_check
    _
  $region7: #{encoder_forward.17} parent=0 // pred_check_branch
    %11 = sbr.rel (0) target = $region9
  $region8: #{encoder_forward.17} parent=0 // pred_region
    _
  $region9: #{encoder_forward.17} parent=0 // pred_fallthru
    _
  // Predicated region
  $region10: #{encoder_forward.17} parent=0 // pred_check
    _
  $region11: #{encoder_forward.17} parent=0 // pred_check_branch
    %13 = sbr.rel (0) target = $region13
  $region12: #{encoder_forward.17} parent=0 // pred_region
    _
  $region13: #{encoder_forward.17} parent=0 // pred_fallthru
    _
  %v14 = vld [vmem:[%s0] sm:$0xff]
  %v15 = vld [vmem:[%s0 + $0x8] sm:$0xff]
  %v16 = vld [vmem:[%s0 + $0x10] sm:$0xff]
  %v17 = vld [vmem:[%s0 + $0x18] sm:$0xff]
  %v18 = vld [vmem:[%s1] sm:$0x1]
  %v20 = vlaneseq
  %v21 = vshrl.u32 %v20, 7
  %v22 = vsub.s32 0, %v21
  %v23 = vrot.slane %v18, %v22
  %v25 = vmul.f32 %v14, %v23
  %v26 = vmul.f32 %v15, %v23
  %v27 = vmul.f32 %v16, %v23
  %v28 = vmul.f32 %v17, %v23
  %v29 = vld [vmem:[%s2] sm:$0x1]
  %v31 = vlaneseq
  %v32 = vshrl.u32 %v31, 7
  %v33 = vsub.s32 0, %v32
  %v34 = vrot.slane %v29, %v33
  %v36 = vadd.f32 %v25, %v34
  %v37 = vadd.f32 %v26, %v34
  %v38 = vadd.f32 %v27, %v34
  %v39 = vadd.f32 %v28, %v34
  %vm40 = vcmp.ge.f32.partialorder %v36, 0.0
  %vm41 = vcmp.ge.f32.partialorder %v37, 0.0
  %vm42 = vcmp.ge.f32.partialorder %v38, 0.0
  %vm43 = vcmp.ge.f32.partialorder %v39, 0.0
  %v44 = vmul.f32 %v36, 0.2
  %v45 = vmul.f32 %v37, 0.2
  %v46 = vmul.f32 %v38, 0.2
  %v47 = vmul.f32 %v39, 0.2
  %v48 = vsel %vm40, %v36, %v44
  %v49 = vsel %vm41, %v37, %v45
  %v50 = vsel %vm42, %v38, %v46
  %v51 = vsel %vm43, %v39, %v47
  %52 = vst [vmem:[%s3] sm:$0xff] %v48
  %53 = vst [vmem:[%s3 + $0x8] sm:$0xff] %v49
  %54 = vst [vmem:[%s3 + $0x10] sm:$0xff] %v50
  %55 = vst [vmem:[%s3 + $0x18] sm:$0xff] %v51
  // Predicated region
  $region14: #{encoder_forward.17} parent=0 // pred_check
    _
  $region15: #{encoder_forward.17} parent=0 // pred_check_branch
    %57 = sbr.rel (0) target = $region17
  $region16: #{encoder_forward.17} parent=0 // pred_region
    _
  $region17: #{encoder_forward.17} parent=0 // pred_fallthru
    _
  // Predicated region
  $region18: #{encoder_forward.17} parent=0 // pred_check
    _
  $region19: #{encoder_forward.17} parent=0 // pred_check_branch
    %59 = sbr.rel (0) target = $region21
  $region20: #{encoder_forward.17} parent=0 // pred_region
    _
  $region21: #{encoder_forward.17} parent=0 // pred_fallthru
    _

// kernel: encoder_forward.16
$region0: #{encoder_forward.16}
  #allocation0 [shape = 'u32[]', space=smem, size = 0x4, offset = 0x4, fixed_abs, tag = 'smem constant byte address 0x4 - core index']
  #allocation1 [shape = 'u32[144,128]{1,0:T(1,128)}', space=vmem, size = 0x12000, scoped, tag = 'internal scratch']
  %s0 = inlined_call_operand.vmem [shape: bf16[32,512], index: 0, kind: input, shape index: {}]
  %s1 = inlined_call_operand.vmem [shape: bf16[512,128], index: 1, kind: input, shape index: {}]
  %s2 = inlined_call_operand.vmem [shape: f32[32,128], index: 2, kind: output, shape index: {0}]
  %s3 = inlined_call_operand.vmem [shape: f32[8,128], index: 3, kind: output, shape index: {1}]
  %4 = xla_tuple %s2, %s3
  %s5 = sld [smem:[#allocation0]]
  $region34: #{encoder_forward.16} parent=0
    _
  %s7 = ssub.s32 1, %s5
  %s8 = scalar_select 0, %s7, %s5
  // Predicated region
  $region2: #{encoder_forward.16} parent=0 // pred_check
    _
  $region3: #{encoder_forward.16} parent=0 // pred_check_branch
    %10 = sbr.rel (0) target = $region5
  $region4: #{encoder_forward.16} parent=0 // pred_region
    _
  $region5: #{encoder_forward.16} parent=0 // pred_fallthru
    _
  // Predicated region
  $region6: #{encoder_forward.16} parent=0 // pred_check
    _
  $region7: #{encoder_forward.16} parent=0 // pred_check_branch
    %12 = sbr.rel (0) target = $region9
  $region8: #{encoder_forward.16} parent=0 // pred_region
    _
  $region9: #{encoder_forward.16} parent=0 // pred_fallthru
    _
  %p14 = scmp.eq.s32.totalorder 0, 0
  // Predicated region
  $region10: #{encoder_forward.16} parent=0 // pred_check
    %p15 = pneg %p14
  $region11: #{encoder_forward.16} parent=0 // pred_check_branch
    %17 = sbr.rel (%p15) target = $region13
  $region12: #{encoder_forward.16} parent=0 // pred_region
    %18 = vst [vmem:[%s2] sm:$0xff] 0.0
    %19 = vst [vmem:[%s2 + $0x8] sm:$0xff] 0.0
    %20 = vst [vmem:[%s2 + $0x10] sm:$0xff] 0.0
    %21 = vst [vmem:[%s2 + $0x18] sm:$0xff] 0.0
  $region13: #{encoder_forward.16} parent=0 // pred_fallthru
    _
  %v22 = vld [vmem:[%s2] sm:$0xff]
  %v23 = vld [vmem:[%s2 + $0x8] sm:$0xff]
  %v24 = vld [vmem:[%s2 + $0x10] sm:$0xff]
  %v25 = vld [vmem:[%s2 + $0x18] sm:$0xff]
  %v26 = vld [vmem:[%s0] sm:$0xff]
  %v27 = vld [vmem:[%s0 + $0x8] sm:$0xff]
  %v28 = vld [vmem:[%s0 + $0x10] sm:$0xff]
  %v29 = vld [vmem:[%s0 + $0x18] sm:$0xff]
  %v30 = vld [vmem:[%s0 + $0x20] sm:$0xff]
  %v31 = vld [vmem:[%s0 + $0x28] sm:$0xff]
  %v32 = vld [vmem:[%s0 + $0x30] sm:$0xff]
  %v33 = vld [vmem:[%s0 + $0x38] sm:$0xff]
  %v34 = vld [vmem:[%s1] sm:$0xf]
  %v35 = vld [vmem:[%s1 + $0x4] sm:$0xf]
  %v36 = vld [vmem:[%s1 + $0x8] sm:$0xf]
  %v37 = vld [vmem:[%s1 + $0xc] sm:$0xf]
  %v38 = vld [vmem:[%s1 + $0x10] sm:$0xf]
  %v39 = vld [vmem:[%s1 + $0x14] sm:$0xf]
  %v40 = vld [vmem:[%s1 + $0x18] sm:$0xf]
  %v41 = vld [vmem:[%s1 + $0x1c] sm:$0xf]
  %v42 = vld [vmem:[%s1 + $0x20] sm:$0xf]
  %v43 = vld [vmem:[%s1 + $0x24] sm:$0xf]
  %v44 = vld [vmem:[%s1 + $0x28] sm:$0xf]
  %v45 = vld [vmem:[%s1 + $0x2c] sm:$0xf]
  %v46 = vld [vmem:[%s1 + $0x30] sm:$0xf]
  %v47 = vld [vmem:[%s1 + $0x34] sm:$0xf]
  %v48 = vld [vmem:[%s1 + $0x38] sm:$0xf]
  %v49 = vld [vmem:[%s1 + $0x3c] sm:$0xf]
  %v50 = vld [vmem:[%s1 + $0x40] sm:$0xf]
  %v51 = vld [vmem:[%s1 + $0x44] sm:$0xf]
  %v52 = vld [vmem:[%s1 + $0x48] sm:$0xf]
  %v53 = vld [vmem:[%s1 + $0x4c] sm:$0xf]
  %v54 = vld [vmem:[%s1 + $0x50] sm:$0xf]
  %v55 = vld [vmem:[%s1 + $0x54] sm:$0xf]
  %v56 = vld [vmem:[%s1 + $0x58] sm:$0xf]
  %v57 = vld [vmem:[%s1 + $0x5c] sm:$0xf]
  %v58 = vld [vmem:[%s1 + $0x60] sm:$0xf]
  %v59 = vld [vmem:[%s1 + $0x64] sm:$0xf]
  %v60 = vld [vmem:[%s1 + $0x68] sm:$0xf]
  %v61 = vld [vmem:[%s1 + $0x6c] sm:$0xf]
  %v62 = vld [vmem:[%s1 + $0x70] sm:$0xf]
  %v63 = vld [vmem:[%s1 + $0x74] sm:$0xf]
  %v64 = vld [vmem:[%s1 + $0x78] sm:$0xf]
  %v65 = vld [vmem:[%s1 + $0x7c] sm:$0xf]
  %v66 = vld [vmem:[%s1 + $0x80] sm:$0xf]
  %v67 = vld [vmem:[%s1 + $0x84] sm:$0xf]
  %v68 = vld [vmem:[%s1 + $0x88] sm:$0xf]
  %v69 = vld [vmem:[%s1 + $0x8c] sm:$0xf]
  %v70 = vld [vmem:[%s1 + $0x90] sm:$0xf]
  %v71 = vld [vmem:[%s1 + $0x94] sm:$0xf]
  %v72 = vld [vmem:[%s1 + $0x98] sm:$0xf]
  %v73 = vld [vmem:[%s1 + $0x9c] sm:$0xf]
  %v74 = vld [vmem:[%s1 + $0xa0] sm:$0xf]
  %v75 = vld [vmem:[%s1 + $0xa4] sm:$0xf]
  %v76 = vld [vmem:[%s1 + $0xa8] sm:$0xf]
  %v77 = vld [vmem:[%s1 + $0xac] sm:$0xf]
  %v78 = vld [vmem:[%s1 + $0xb0] sm:$0xf]
  %v79 = vld [vmem:[%s1 + $0xb4] sm:$0xf]
  %v80 = vld [vmem:[%s1 + $0xb8] sm:$0xf]
  %v81 = vld [vmem:[%s1 + $0xbc] sm:$0xf]
  %v82 = vld [vmem:[%s1 + $0xc0] sm:$0xf]
  %v83 = vld [vmem:[%s1 + $0xc4] sm:$0xf]
  %v84 = vld [vmem:[%s1 + $0xc8] sm:$0xf]
  %v85 = vld [vmem:[%s1 + $0xcc] sm:$0xf]
  %v86 = vld [vmem:[%s1 + $0xd0] sm:$0xf]
  %v87 = vld [vmem:[%s1 + $0xd4] sm:$0xf]
  %v88 = vld [vmem:[%s1 + $0xd8] sm:$0xf]
  %v89 = vld [vmem:[%s1 + $0xdc] sm:$0xf]
  %v90 = vld [vmem:[%s1 + $0xe0] sm:$0xf]
  %v91 = vld [vmem:[%s1 + $0xe4] sm:$0xf]
  %v92 = vld [vmem:[%s1 + $0xe8] sm:$0xf]
  %v93 = vld [vmem:[%s1 + $0xec] sm:$0xf]
  %v94 = vld [vmem:[%s1 + $0xf0] sm:$0xf]
  %v95 = vld [vmem:[%s1 + $0xf4] sm:$0xf]
  %v96 = vld [vmem:[%s1 + $0xf8] sm:$0xf]
  %v97 = vld [vmem:[%s1 + $0xfc] sm:$0xf]
  %v106 = vunpack.c.l.b16 %v26
  %v107 = vunpack.c.h.b16 %v26
  %v108 = vunpack.c.l.b16 %v27
  %v109 = vunpack.c.h.b16 %v27
  %v110 = vunpack.c.l.b16 %v28
  %v111 = vunpack.c.h.b16 %v28
  %v112 = vunpack.c.l.b16 %v29
  %v113 = vunpack.c.h.b16 %v29
  %v114 = vunpack.c.l.b16 %v30
  %v115 = vunpack.c.h.b16 %v30
  %v116 = vunpack.c.l.b16 %v31
  %v117 = vunpack.c.h.b16 %v31
  %v118 = vunpack.c.l.b16 %v32
  %v119 = vunpack.c.h.b16 %v32
  %v120 = vunpack.c.l.b16 %v33
  %v121 = vunpack.c.h.b16 %v33
  %v122 = vpack.c.b16 %v110, %v106
  %v123 = vpack.c.b16 %v111, %v107
  %v124 = vpack.c.b16 %v112, %v108
  %v125 = vpack.c.b16 %v113, %v109
  %v126 = vpack.c.b16 %v118, %v114
  %v127 = vpack.c.b16 %v119, %v115
  %v128 = vpack.c.b16 %v120, %v116
  %v129 = vpack.c.b16 %v121, %v117
  %v202 = vunpack.c.l.b16 %v34
  %v203 = vunpack.c.l.b16 %v35
  %v204 = vunpack.c.l.b16 %v36
  %v205 = vunpack.c.l.b16 %v37
  %v206 = vunpack.c.l.b16 %v38
  %v207 = vunpack.c.l.b16 %v39
  %v208 = vunpack.c.l.b16 %v40
  %v209 = vunpack.c.l.b16 %v41
  %v210 = vunpack.c.l.b16 %v42
  %v211 = vunpack.c.l.b16 %v43
  %v212 = vunpack.c.l.b16 %v44
  %v213 = vunpack.c.l.b16 %v45
  %v214 = vunpack.c.l.b16 %v46
  %v215 = vunpack.c.l.b16 %v47
  %v216 = vunpack.c.l.b16 %v48
  %v217 = vunpack.c.l.b16 %v49
  %v218 = vunpack.c.l.b16 %v50
  %v219 = vunpack.c.l.b16 %v51
  %v220 = vunpack.c.l.b16 %v52
  %v221 = vunpack.c.l.b16 %v53
  %v222 = vunpack.c.l.b16 %v54
  %v223 = vunpack.c.l.b16 %v55
  %v224 = vunpack.c.l.b16 %v56
  %v225 = vunpack.c.l.b16 %v57
  %v226 = vunpack.c.l.b16 %v58
  %v227 = vunpack.c.l.b16 %v59
  %v228 = vunpack.c.l.b16 %v60
  %v229 = vunpack.c.l.b16 %v61
  %v230 = vunpack.c.l.b16 %v62
  %v231 = vunpack.c.l.b16 %v63
  %v232 = vunpack.c.l.b16 %v64
  %v233 = vunpack.c.l.b16 %v65
  %v234 = vunpack.c.l.b16 %v66
  %v235 = vunpack.c.l.b16 %v67
  %v236 = vunpack.c.l.b16 %v68
  %v237 = vunpack.c.l.b16 %v69
  %v238 = vunpack.c.l.b16 %v70
  %v239 = vunpack.c.l.b16 %v71
  %v240 = vunpack.c.l.b16 %v72
  %v241 = vunpack.c.l.b16 %v73
  %v242 = vunpack.c.l.b16 %v74
  %v243 = vunpack.c.l.b16 %v75
  %v244 = vunpack.c.l.b16 %v76
  %v245 = vunpack.c.l.b16 %v77
  %v246 = vunpack.c.l.b16 %v78
  %v247 = vunpack.c.l.b16 %v79
  %v248 = vunpack.c.l.b16 %v80
  %v249 = vunpack.c.l.b16 %v81
  %v250 = vunpack.c.l.b16 %v82
  %v251 = vunpack.c.l.b16 %v83
  %v252 = vunpack.c.l.b16 %v84
  %v253 = vunpack.c.l.b16 %v85
  %v254 = vunpack.c.l.b16 %v86
  %v255 = vunpack.c.l.b16 %v87
  %v256 = vunpack.c.l.b16 %v88
  %v257 = vunpack.c.l.b16 %v89
  %v258 = vunpack.c.l.b16 %v90
  %v259 = vunpack.c.l.b16 %v91
  %v260 = vunpack.c.l.b16 %v92
  %v261 = vunpack.c.l.b16 %v93
  %v262 = vunpack.c.l.b16 %v94
  %v263 = vunpack.c.l.b16 %v95
  %v264 = vunpack.c.l.b16 %v96
  %v265 = vunpack.c.l.b16 %v97
  %v266 = vpack.c.b16 %v203, %v202
  %v267 = vpack.c.b16 %v205, %v204
  %v268 = vpack.c.b16 %v207, %v206
  %v269 = vpack.c.b16 %v209, %v208
  %v270 = vpack.c.b16 %v211, %v210
  %v271 = vpack.c.b16 %v213, %v212
  %v272 = vpack.c.b16 %v215, %v214
  %v273 = vpack.c.b16 %v217, %v216
  %v274 = vpack.c.b16 %v219, %v218
  %v275 = vpack.c.b16 %v221, %v220
  %v276 = vpack.c.b16 %v223, %v222
  %v277 = vpack.c.b16 %v225, %v224
  %v278 = vpack.c.b16 %v227, %v226
  %v279 = vpack.c.b16 %v229, %v228
  %v280 = vpack.c.b16 %v231, %v230
  %v281 = vpack.c.b16 %v233, %v232
  %v282 = vpack.c.b16 %v235, %v234
  %v283 = vpack.c.b16 %v237, %v236
  %v284 = vpack.c.b16 %v239, %v238
  %v285 = vpack.c.b16 %v241, %v240
  %v286 = vpack.c.b16 %v243, %v242
  %v287 = vpack.c.b16 %v245, %v244
  %v288 = vpack.c.b16 %v247, %v246
  %v289 = vpack.c.b16 %v249, %v248
  %v290 = vpack.c.b16 %v251, %v250
  %v291 = vpack.c.b16 %v253, %v252
  %v292 = vpack.c.b16 %v255, %v254
  %v293 = vpack.c.b16 %v257, %v256
  %v294 = vpack.c.b16 %v259, %v258
  %v295 = vpack.c.b16 %v261, %v260
  %v296 = vpack.c.b16 %v263, %v262
  %v297 = vpack.c.b16 %v265, %v264
  %330 = vmatprep.subr.bf16.mxu0 0
  %331 = vmatpush1.bf16.msra.mxu0 %v266
  %332 = vmatprep.subr.bf16.mxu0 0
  %333 = vmatpush1.bf16.msra.mxu0 %v267
  %334 = vmatprep.subr.bf16.mxu0 0
  %335 = vmatpush1.bf16.msra.mxu0 %v268
  %336 = vmatprep.subr.bf16.mxu0 0
  %337 = vmatpush1.bf16.msra.mxu0 %v269
  %338 = vmatprep.subr.bf16.mxu0 0
  %339 = vmatpush1.bf16.msra.mxu0 %v270
  %340 = vmatprep.subr.bf16.mxu0 0
  %341 = vmatpush1.bf16.msra.mxu0 %v271
  %342 = vmatprep.subr.bf16.mxu0 0
  %343 = vmatpush1.bf16.msra.mxu0 %v272
  %344 = vmatprep.subr.bf16.mxu0 0
  %345 = vmatpush1.bf16.msra.mxu0 %v273
  %346 = vmatprep.subr.bf16.mxu0 0
  %347 = vmatpush1.bf16.msra.mxu0 %v274
  %348 = vmatprep.subr.bf16.mxu0 0
  %349 = vmatpush1.bf16.msra.mxu0 %v275
  %350 = vmatprep.subr.bf16.mxu0 0
  %351 = vmatpush1.bf16.msra.mxu0 %v276
  %352 = vmatprep.subr.bf16.mxu0 0
  %353 = vmatpush1.bf16.msra.mxu0 %v277
  %354 = vmatprep.subr.bf16.mxu0 0
  %355 = vmatpush1.bf16.msra.mxu0 %v278
  %356 = vmatprep.subr.bf16.mxu0 0
  %357 = vmatpush1.bf16.msra.mxu0 %v279
  %358 = vmatprep.subr.bf16.mxu0 0
  %359 = vmatpush1.bf16.msra.mxu0 %v280
  %360 = vmatprep.subr.bf16.mxu0 0
  %361 = vmatpush1.bf16.msra.mxu0 %v281
  %362 = vmatprep.mubr.bf16.mxu0 %v123
  %363 = vmatmul.mubr.bf16.gmra.mrb[0].mxu0 %v122
  %v364 = vpop.f32.mrb[0].mxu0
  %v365 = vadd.f32 0.0, %v364
  %v366 = vpop.f32.mrb[0].mxu0
  %v367 = vpop.f32.mrb[0].mxu0
  %v368 = vadd.f32 0.0, %v367
  %v369 = vpop.f32.mrb[0].mxu0
  %370 = vmatprep.mubr.bf16.mxu0 %v127
  %371 = vmatmul.mubr.bf16.gmra.mrb[0].mxu0 %v126
  %v372 = vpop.f32.mrb[0].mxu0
  %v373 = vadd.f32 0.0, %v372
  %v374 = vpop.f32.mrb[0].mxu0
  %v375 = vpop.f32.mrb[0].mxu0
  %v376 = vadd.f32 0.0, %v375
  %v377 = vpop.f32.mrb[0].mxu0
  %378 = vdwg.mxu0
  %379 = vmatprep.subr.bf16.mxu0 0
  %380 = vmatpush1.bf16.msra.mxu0 %v282
  %381 = vmatprep.subr.bf16.mxu0 0
  %382 = vmatpush1.bf16.msra.mxu0 %v283
  %383 = vmatprep.subr.bf16.mxu0 0
  %384 = vmatpush1.bf16.msra.mxu0 %v284
  %385 = vmatprep.subr.bf16.mxu0 0
  %386 = vmatpush1.bf16.msra.mxu0 %v285
  %387 = vmatprep.subr.bf16.mxu0 0
  %388 = vmatpush1.bf16.msra.mxu0 %v286
  %389 = vmatprep.subr.bf16.mxu0 0
  %390 = vmatpush1.bf16.msra.mxu0 %v287
  %391 = vmatprep.subr.bf16.mxu0 0
  %392 = vmatpush1.bf16.msra.mxu0 %v288
  %393 = vmatprep.subr.bf16.mxu0 0
  %394 = vmatpush1.bf16.msra.mxu0 %v289
  %395 = vmatprep.subr.bf16.mxu0 0
  %396 = vmatpush1.bf16.msra.mxu0 %v290
  %397 = vmatprep.subr.bf16.mxu0 0
  %398 = vmatpush1.bf16.msra.mxu0 %v291
  %399 = vmatprep.subr.bf16.mxu0 0
  %400 = vmatpush1.bf16.msra.mxu0 %v292
  %401 = vmatprep.subr.bf16.mxu0 0
  %402 = vmatpush1.bf16.msra.mxu0 %v293
  %403 = vmatprep.subr.bf16.mxu0 0
  %404 = vmatpush1.bf16.msra.mxu0 %v294
  %405 = vmatprep.subr.bf16.mxu0 0
  %406 = vmatpush1.bf16.msra.mxu0 %v295
  %407 = vmatprep.subr.bf16.mxu0 0
  %408 = vmatpush1.bf16.msra.mxu0 %v296
  %409 = vmatprep.subr.bf16.mxu0 0
  %410 = vmatpush1.bf16.msra.mxu0 %v297
  %411 = vmatprep.mubr.bf16.mxu0 %v125
  %412 = vmatmul.mubr.bf16.gmra.mrb[0].mxu0 %v124
  %v413 = vpop.f32.mrb[0].mxu0
  %v414 = vadd.f32 %v365, %v413
  %v415 = vpop.f32.mrb[0].mxu0
  %v416 = vpop.f32.mrb[0].mxu0
  %v417 = vadd.f32 %v368, %v416
  %v418 = vpop.f32.mrb[0].mxu0
  %419 = vmatprep.mubr.bf16.mxu0 %v129
  %420 = vmatmul.mubr.bf16.gmra.mrb[0].mxu0 %v128
  %v421 = vpop.f32.mrb[0].mxu0
  %v422 = vadd.f32 %v373, %v421
  %v423 = vpop.f32.mrb[0].mxu0
  %v424 = vpop.f32.mrb[0].mxu0
  %v425 = vadd.f32 %v376, %v424
  %v426 = vpop.f32.mrb[0].mxu0
  %427 = vdwg.mxu0
  %v428 = vadd.f32 %v22, %v414
  %v429 = vadd.f32 %v23, %v417
  %v430 = vadd.f32 %v24, %v422
  %v431 = vadd.f32 %v25, %v425
  %432 = vst [vmem:[%s2] sm:$0xff] %v428
  %433 = vst [vmem:[%s2 + $0x8] sm:$0xff] %v429
  %434 = vst [vmem:[%s2 + $0x10] sm:$0xff] %v430
  %435 = vst [vmem:[%s2 + $0x18] sm:$0xff] %v431
  // Predicated region
  $region14: #{encoder_forward.16} parent=0 // pred_check
    %p436 = pneg %p14
  $region15: #{encoder_forward.16} parent=0 // pred_check_branch
    %438 = sbr.rel (%p436) target = $region17
  $region16: #{encoder_forward.16} parent=0 // pred_region
    %v439 = vld [vmem:[%s2] sm:$0xff]
    %v440 = vld [vmem:[%s2 + $0x8] sm:$0xff]
    %v441 = vld [vmem:[%s2 + $0x10] sm:$0xff]
    %v442 = vld [vmem:[%s2 + $0x18] sm:$0xff]
    %v443 = vadd.f32 %v439, %v440
    %v444 = vadd.f32 %v443, %v441
    %v445 = vadd.f32 %v444, %v442
    %v446 = vrot.slane %v445, 4
    %v447 = vadd.f32 %v445, %v446
    %v448 = vrot.slane %v447, 2
    %v449 = vadd.f32 %v447, %v448
    %v450 = vrot.slane %v449, 1
    %v451 = vadd.f32 %v449, %v450
    %v452 = vmul.f32 %v439, %v439
    %v453 = vmul.f32 %v440, %v440
    %v454 = vmul.f32 %v441, %v441
    %v455 = vmul.f32 %v442, %v442
    %v456 = vadd.f32 %v452, %v453
    %v457 = vadd.f32 %v456, %v454
    %v458 = vadd.f32 %v457, %v455
    %v459 = vrot.slane %v458, 4
    %v460 = vadd.f32 %v458, %v459
    %v461 = vrot.slane %v460, 2
    %v462 = vadd.f32 %v460, %v461
    %v463 = vrot.slane %v462, 1
    %v464 = vadd.f32 %v462, %v463
    %v465 = vlaneseq
    %v466 = vshrl.u32 %v465, 7
    %vm467 = vcmp.eq.s32.totalorder %v466, 0
    %vm468 = vcmp.eq.s32.totalorder %v466, 1
    %v469 = vsel %vm468, %v464, 0.0
    %v470 = vsel %vm467, %v451, %v469
    %471 = vst [vmem:[%s3] sm:$0xff] %v470
  $region17: #{encoder_forward.16} parent=0 // pred_fallthru
    _
  // Predicated region
  $region18: #{encoder_forward.16} parent=0 // pred_check
    _
  $region19: #{encoder_forward.16} parent=0 // pred_check_branch
    %473 = sbr.rel (0) target = $region21
  $region20: #{encoder_forward.16} parent=0 // pred_region
    _
  $region21: #{encoder_forward.16} parent=0 // pred_fallthru
    _
  // Predicated region
  $region22: #{encoder_forward.16} parent=0 // pred_check
    _
  $region23: #{encoder_forward.16} parent=0 // pred_check_branch
    %475 = sbr.rel (0) target = $region25
  $region24: #{encoder_forward.16} parent=0 // pred_region
    _
  $region25: #{encoder_forward.16} parent=0 // pred_fallthru
    _
  // Predicated region
  $region26: #{encoder_forward.16} parent=0 // pred_check
    _
  $region27: #{encoder_forward.16} parent=0 // pred_check_branch
    %477 = sbr.rel (0) target = $region29
  $region28: #{encoder_forward.16} parent=0 // pred_region
    _
  $region29: #{encoder_forward.16} parent=0 // pred_fallthru
    _
  // Predicated region
  $region30: #{encoder_forward.16} parent=0 // pred_check
    _
  $region31: #{encoder_forward.16} parent=0 // pred_check_branch
    %479 = sbr.rel (0) target = $region33
  $region32: #{encoder_forward.16} parent=0 // pred_region
    _
  $region33: #{encoder_forward.16} parent=0 // pred_fallthru
    _

// kernel: encoder_forward.19
$region0: #{encoder_forward.19}
  #allocation0 [shape = 'u32[]', space=smem, size = 0x4, offset = 0x4, fixed_abs, tag = 'smem constant byte address 0x4 - core index']
  #allocation1 [shape = 'u32[144,128]{1,0:T(1,128)}', space=vmem, size = 0x12000, scoped, tag = 'internal scratch']
  %s0 = inlined_call_operand.vmem [shape: f32[8,128], index: 0, kind: input, shape index: {}]
  %s1 = inlined_call_operand.vmem [shape: f32[1,128], index: 1, kind: input, shape index: {}]
  %s2 = inlined_call_operand.vmem [shape: f32[1,128], index: 2, kind: input, shape index: {}]
  %s3 = inlined_call_operand.vmem [shape: f32[8,128], index: 3, kind: output, shape index: {}]
  %s4 = sld [smem:[#allocation0]]
  $region22: #{encoder_forward.19} parent=0
    _
  %s6 = ssub.s32 1, %s4
  %s7 = scalar_select 0, %s6, %s4
  // Predicated region
  $region2: #{encoder_forward.19} parent=0 // pred_check
    _
  $region3: #{encoder_forward.19} parent=0 // pred_check_branch
    %9 = sbr.rel (0) target = $region5
  $region4: #{encoder_forward.19} parent=0 // pred_region
    _
  $region5: #{encoder_forward.19} parent=0 // pred_fallthru
    _
  // Predicated region
  $region6: #{encoder_forward.19} parent=0 // pred_check
    _
  $region7: #{encoder_forward.19} parent=0 // pred_check_branch
    %11 = sbr.rel (0) target = $region9
  $region8: #{encoder_forward.19} parent=0 // pred_region
    _
  $region9: #{encoder_forward.19} parent=0 // pred_fallthru
    _
  // Predicated region
  $region10: #{encoder_forward.19} parent=0 // pred_check
    _
  $region11: #{encoder_forward.19} parent=0 // pred_check_branch
    %13 = sbr.rel (0) target = $region13
  $region12: #{encoder_forward.19} parent=0 // pred_region
    _
  $region13: #{encoder_forward.19} parent=0 // pred_fallthru
    _
  %v14 = vld [vmem:[%s0] sm:$0xff]
  %v15 = vld [vmem:[%s1] sm:$0x1]
  %v17 = vlaneseq
  %v18 = vshrl.u32 %v17, 7
  %v19 = vsub.s32 0, %v18
  %v20 = vrot.slane %v15, %v19
  %v22 = vmul.f32 %v14, %v20
  %v23 = vld [vmem:[%s2] sm:$0x1]
  %v25 = vlaneseq
  %v26 = vshrl.u32 %v25, 7
  %v27 = vsub.s32 0, %v26
  %v28 = vrot.slane %v23, %v27
  %v30 = vadd.f32 %v22, %v28
  %v31 = vtanh.pop %v30
  %32 = vst [vmem:[%s3] sm:$0xff] %v31
  // Predicated region
  $region14: #{encoder_forward.19} parent=0 // pred_check
    _
  $region15: #{encoder_forward.19} parent=0 // pred_check_branch
    %34 = sbr.rel (0) target = $region17
  $region16: #{encoder_forward.19} parent=0 // pred_region
    _
  $region17: #{encoder_forward.19} parent=0 // pred_fallthru
    _
  // Predicated region
  $region18: #{encoder_forward.19} parent=0 // pred_check
    _
  $region19: #{encoder_forward.19} parent=0 // pred_check_branch
    %36 = sbr.rel (0) target = $region21
  $region20: #{encoder_forward.19} parent=0 // pred_region
    _
  $region21: #{encoder_forward.19} parent=0 // pred_fallthru
    _

// kernel: encoder_forward.18
$region0: #{encoder_forward.18}
  #allocation0 [shape = 'u32[]', space=smem, size = 0x4, offset = 0x4, fixed_abs, tag = 'smem constant byte address 0x4 - core index']
  #allocation1 [shape = 'u32[144,128]{1,0:T(1,128)}', space=vmem, size = 0x12000, scoped, tag = 'internal scratch']
  %s0 = inlined_call_operand.vmem [shape: bf16[8,1024], index: 0, kind: input, shape index: {}]
  %s1 = inlined_call_operand.vmem [shape: bf16[1024,128], index: 1, kind: input, shape index: {}]
  %s2 = inlined_call_operand.vmem [shape: f32[8,128], index: 2, kind: output, shape index: {0}]
  %s3 = inlined_call_operand.vmem [shape: f32[8,128], index: 3, kind: output, shape index: {1}]
  %4 = xla_tuple %s2, %s3
  %s5 = sld [smem:[#allocation0]]
  $region34: #{encoder_forward.18} parent=0
    _
  %s7 = ssub.s32 1, %s5
  %s8 = scalar_select 0, %s7, %s5
  // Predicated region
  $region2: #{encoder_forward.18} parent=0 // pred_check
    _
  $region3: #{encoder_forward.18} parent=0 // pred_check_branch
    %10 = sbr.rel (0) target = $region5
  $region4: #{encoder_forward.18} parent=0 // pred_region
    _
  $region5: #{encoder_forward.18} parent=0 // pred_fallthru
    _
  // Predicated region
  $region6: #{encoder_forward.18} parent=0 // pred_check
    _
  $region7: #{encoder_forward.18} parent=0 // pred_check_branch
    %12 = sbr.rel (0) target = $region9
  $region8: #{encoder_forward.18} parent=0 // pred_region
    _
  $region9: #{encoder_forward.18} parent=0 // pred_fallthru
    _
  %p14 = scmp.eq.s32.totalorder 0, 0
  // Predicated region
  $region10: #{encoder_forward.18} parent=0 // pred_check
    %p15 = pneg %p14
  $region11: #{encoder_forward.18} parent=0 // pred_check_branch
    %17 = sbr.rel (%p15) target = $region13
  $region12: #{encoder_forward.18} parent=0 // pred_region
    %18 = vst [vmem:[%s2] sm:$0xff] 0.0
  $region13: #{encoder_forward.18} parent=0 // pred_fallthru
    _
  %v19 = vld [vmem:[%s2] sm:$0xff]
  %v20 = vld [vmem:[%s0] sm:$0xff]
  %v21 = vld [vmem:[%s0 + $0x8] sm:$0xff]
  %v22 = vld [vmem:[%s0 + $0x10] sm:$0xff]
  %v23 = vld [vmem:[%s0 + $0x18] sm:$0xff]
  %v24 = vld [vmem:[%s1] sm:$0xf]
  %v25 = vld [vmem:[%s1 + $0x4] sm:$0xf]
  %v26 = vld [vmem:[%s1 + $0x8] sm:$0xf]
  %v27 = vld [vmem:[%s1 + $0xc] sm:$0xf]
  %v28 = vld [vmem:[%s1 + $0x10] sm:$0xf]
  %v29 = vld [vmem:[%s1 + $0x14] sm:$0xf]
  %v30 = vld [vmem:[%s1 + $0x18] sm:$0xf]
  %v31 = vld [vmem:[%s1 + $0x1c] sm:$0xf]
  %v32 = vld [vmem:[%s1 + $0x20] sm:$0xf]
  %v33 = vld [vmem:[%s1 + $0x24] sm:$0xf]
  %v34 = vld [vmem:[%s1 + $0x28] sm:$0xf]
  %v35 = vld [vmem:[%s1 + $0x2c] sm:$0xf]
  %v36 = vld [vmem:[%s1 + $0x30] sm:$0xf]
  %v37 = vld [vmem:[%s1 + $0x34] sm:$0xf]
  %v38 = vld [vmem:[%s1 + $0x38] sm:$0xf]
  %v39 = vld [vmem:[%s1 + $0x3c] sm:$0xf]
  %v40 = vld [vmem:[%s1 + $0x40] sm:$0xf]
  %v41 = vld [vmem:[%s1 + $0x44] sm:$0xf]
  %v42 = vld [vmem:[%s1 + $0x48] sm:$0xf]
  %v43 = vld [vmem:[%s1 + $0x4c] sm:$0xf]
  %v44 = vld [vmem:[%s1 + $0x50] sm:$0xf]
  %v45 = vld [vmem:[%s1 + $0x54] sm:$0xf]
  %v46 = vld [vmem:[%s1 + $0x58] sm:$0xf]
  %v47 = vld [vmem:[%s1 + $0x5c] sm:$0xf]
  %v48 = vld [vmem:[%s1 + $0x60] sm:$0xf]
  %v49 = vld [vmem:[%s1 + $0x64] sm:$0xf]
  %v50 = vld [vmem:[%s1 + $0x68] sm:$0xf]
  %v51 = vld [vmem:[%s1 + $0x6c] sm:$0xf]
  %v52 = vld [vmem:[%s1 + $0x70] sm:$0xf]
  %v53 = vld [vmem:[%s1 + $0x74] sm:$0xf]
  %v54 = vld [vmem:[%s1 + $0x78] sm:$0xf]
  %v55 = vld [vmem:[%s1 + $0x7c] sm:$0xf]
  %v56 = vld [vmem:[%s1 + $0x80] sm:$0xf]
  %v57 = vld [vmem:[%s1 + $0x84] sm:$0xf]
  %v58 = vld [vmem:[%s1 + $0x88] sm:$0xf]
  %v59 = vld [vmem:[%s1 + $0x8c] sm:$0xf]
  %v60 = vld [vmem:[%s1 + $0x90] sm:$0xf]
  %v61 = vld [vmem:[%s1 + $0x94] sm:$0xf]
  %v62 = vld [vmem:[%s1 + $0x98] sm:$0xf]
  %v63 = vld [vmem:[%s1 + $0x9c] sm:$0xf]
  %v64 = vld [vmem:[%s1 + $0xa0] sm:$0xf]
  %v65 = vld [vmem:[%s1 + $0xa4] sm:$0xf]
  %v66 = vld [vmem:[%s1 + $0xa8] sm:$0xf]
  %v67 = vld [vmem:[%s1 + $0xac] sm:$0xf]
  %v68 = vld [vmem:[%s1 + $0xb0] sm:$0xf]
  %v69 = vld [vmem:[%s1 + $0xb4] sm:$0xf]
  %v70 = vld [vmem:[%s1 + $0xb8] sm:$0xf]
  %v71 = vld [vmem:[%s1 + $0xbc] sm:$0xf]
  %v72 = vld [vmem:[%s1 + $0xc0] sm:$0xf]
  %v73 = vld [vmem:[%s1 + $0xc4] sm:$0xf]
  %v74 = vld [vmem:[%s1 + $0xc8] sm:$0xf]
  %v75 = vld [vmem:[%s1 + $0xcc] sm:$0xf]
  %v76 = vld [vmem:[%s1 + $0xd0] sm:$0xf]
  %v77 = vld [vmem:[%s1 + $0xd4] sm:$0xf]
  %v78 = vld [vmem:[%s1 + $0xd8] sm:$0xf]
  %v79 = vld [vmem:[%s1 + $0xdc] sm:$0xf]
  %v80 = vld [vmem:[%s1 + $0xe0] sm:$0xf]
  %v81 = vld [vmem:[%s1 + $0xe4] sm:$0xf]
  %v82 = vld [vmem:[%s1 + $0xe8] sm:$0xf]
  %v83 = vld [vmem:[%s1 + $0xec] sm:$0xf]
  %v84 = vld [vmem:[%s1 + $0xf0] sm:$0xf]
  %v85 = vld [vmem:[%s1 + $0xf4] sm:$0xf]
  %v86 = vld [vmem:[%s1 + $0xf8] sm:$0xf]
  %v87 = vld [vmem:[%s1 + $0xfc] sm:$0xf]
  %v88 = vld [vmem:[%s1 + $0x100] sm:$0xf]
  %v89 = vld [vmem:[%s1 + $0x104] sm:$0xf]
  %v90 = vld [vmem:[%s1 + $0x108] sm:$0xf]
  %v91 = vld [vmem:[%s1 + $0x10c] sm:$0xf]
  %v92 = vld [vmem:[%s1 + $0x110] sm:$0xf]
  %v93 = vld [vmem:[%s1 + $0x114] sm:$0xf]
  %v94 = vld [vmem:[%s1 + $0x118] sm:$0xf]
  %v95 = vld [vmem:[%s1 + $0x11c] sm:$0xf]
  %v96 = vld [vmem:[%s1 + $0x120] sm:$0xf]
  %v97 = vld [vmem:[%s1 + $0x124] sm:$0xf]
  %v98 = vld [vmem:[%s1 + $0x128] sm:$0xf]
  %v99 = vld [vmem:[%s1 + $0x12c] sm:$0xf]
  %v100 = vld [vmem:[%s1 + $0x130] sm:$0xf]
  %v101 = vld [vmem:[%s1 + $0x134] sm:$0xf]
  %v102 = vld [vmem:[%s1 + $0x138] sm:$0xf]
  %v103 = vld [vmem:[%s1 + $0x13c] sm:$0xf]
  %v104 = vld [vmem:[%s1 + $0x140] sm:$0xf]
  %v105 = vld [vmem:[%s1 + $0x144] sm:$0xf]
  %v106 = vld [vmem:[%s1 + $0x148] sm:$0xf]
  %v107 = vld [vmem:[%s1 + $0x14c] sm:$0xf]
  %v108 = vld [vmem:[%s1 + $0x150] sm:$0xf]
  %v109 = vld [vmem:[%s1 + $0x154] sm:$0xf]
  %v110 = vld [vmem:[%s1 + $0x158] sm:$0xf]
  %v111 = vld [vmem:[%s1 + $0x15c] sm:$0xf]
  %v112 = vld [vmem:[%s1 + $0x160] sm:$0xf]
  %v113 = vld [vmem:[%s1 + $0x164] sm:$0xf]
  %v114 = vld [vmem:[%s1 + $0x168] sm:$0xf]
  %v115 = vld [vmem:[%s1 + $0x16c] sm:$0xf]
  %v116 = vld [vmem:[%s1 + $0x170] sm:$0xf]
  %v117 = vld [vmem:[%s1 + $0x174] sm:$0xf]
  %v118 = vld [vmem:[%s1 + $0x178] sm:$0xf]
  %v119 = vld [vmem:[%s1 + $0x17c] sm:$0xf]
  %v120 = vld [vmem:[%s1 + $0x180] sm:$0xf]
  %v121 = vld [vmem:[%s1 + $0x184] sm:$0xf]
  %v122 = vld [vmem:[%s1 + $0x188] sm:$0xf]
  %v123 = vld [vmem:[%s1 + $0x18c] sm:$0xf]
  %v124 = vld [vmem:[%s1 + $0x190] sm:$0xf]
  %v125 = vld [vmem:[%s1 + $0x194] sm:$0xf]
  %v126 = vld [vmem:[%s1 + $0x198] sm:$0xf]
  %v127 = vld [vmem:[%s1 + $0x19c] sm:$0xf]
  %v128 = vld [vmem:[%s1 + $0x1a0] sm:$0xf]
  %v129 = vld [vmem:[%s1 + $0x1a4] sm:$0xf]
  %v130 = vld [vmem:[%s1 + $0x1a8] sm:$0xf]
  %v131 = vld [vmem:[%s1 + $0x1ac] sm:$0xf]
  %v132 = vld [vmem:[%s1 + $0x1b0] sm:$0xf]
  %v133 = vld [vmem:[%s1 + $0x1b4] sm:$0xf]
  %v134 = vld [vmem:[%s1 + $0x1b8] sm:$0xf]
  %v135 = vld [vmem:[%s1 + $0x1bc] sm:$0xf]
  %v136 = vld [vmem:[%s1 + $0x1c0] sm:$0xf]
  %v137 = vld [vmem:[%s1 + $0x1c4] sm:$0xf]
  %v138 = vld [vmem:[%s1 + $0x1c8] sm:$0xf]
  %v139 = vld [vmem:[%s1 + $0x1cc] sm:$0xf]
  %v140 = vld [vmem:[%s1 + $0x1d0] sm:$0xf]
  %v141 = vld [vmem:[%s1 + $0x1d4] sm:$0xf]
  %v142 = vld [vmem:[%s1 + $0x1d8] sm:$0xf]
  %v143 = vld [vmem:[%s1 + $0x1dc] sm:$0xf]
  %v144 = vld [vmem:[%s1 + $0x1e0] sm:$0xf]
  %v145 = vld [vmem:[%s1 + $0x1e4] sm:$0xf]
  %v146 = vld [vmem:[%s1 + $0x1e8] sm:$0xf]
  %v147 = vld [vmem:[%s1 + $0x1ec] sm:$0xf]
  %v148 = vld [vmem:[%s1 + $0x1f0] sm:$0xf]
  %v149 = vld [vmem:[%s1 + $0x1f4] sm:$0xf]
  %v150 = vld [vmem:[%s1 + $0x1f8] sm:$0xf]
  %v151 = vld [vmem:[%s1 + $0x1fc] sm:$0xf]
  %v156 = vunpack.c.l.b16 %v20
  %v157 = vunpack.c.h.b16 %v20
  %v158 = vunpack.c.l.b16 %v21
  %v159 = vunpack.c.h.b16 %v21
  %v160 = vunpack.c.l.b16 %v22
  %v161 = vunpack.c.h.b16 %v22
  %v162 = vunpack.c.l.b16 %v23
  %v163 = vunpack.c.h.b16 %v23
  %v164 = vpack.c.b16 %v156, %v156
  %v165 = vpack.c.b16 %v157, %v157
  %v166 = vpack.c.b16 %v158, %v158
  %v167 = vpack.c.b16 %v159, %v159
  %v168 = vpack.c.b16 %v160, %v160
  %v169 = vpack.c.b16 %v161, %v161
  %v170 = vpack.c.b16 %v162, %v162
  %v171 = vpack.c.b16 %v163, %v163
  %v308 = vunpack.c.l.b16 %v24
  %v309 = vunpack.c.l.b16 %v25
  %v310 = vunpack.c.l.b16 %v26
  %v311 = vunpack.c.l.b16 %v27
  %v312 = vunpack.c.l.b16 %v28
  %v313 = vunpack.c.l.b16 %v29
  %v314 = vunpack.c.l.b16 %v30
  %v315 = vunpack.c.l.b16 %v31
  %v316 = vunpack.c.l.b16 %v32
  %v317 = vunpack.c.l.b16 %v33
  %v318 = vunpack.c.l.b16 %v34
  %v319 = vunpack.c.l.b16 %v35
  %v320 = vunpack.c.l.b16 %v36
  %v321 = vunpack.c.l.b16 %v37
  %v322 = vunpack.c.l.b16 %v38
  %v323 = vunpack.c.l.b16 %v39
  %v324 = vunpack.c.l.b16 %v40
  %v325 = vunpack.c.l.b16 %v41
  %v326 = vunpack.c.l.b16 %v42
  %v327 = vunpack.c.l.b16 %v43
  %v328 = vunpack.c.l.b16 %v44
  %v329 = vunpack.c.l.b16 %v45
  %v330 = vunpack.c.l.b16 %v46
  %v331 = vunpack.c.l.b16 %v47
  %v332 = vunpack.c.l.b16 %v48
  %v333 = vunpack.c.l.b16 %v49
  %v334 = vunpack.c.l.b16 %v50
  %v335 = vunpack.c.l.b16 %v51
  %v336 = vunpack.c.l.b16 %v52
  %v337 = vunpack.c.l.b16 %v53
  %v338 = vunpack.c.l.b16 %v54
  %v339 = vunpack.c.l.b16 %v55
  %v340 = vunpack.c.l.b16 %v56
  %v341 = vunpack.c.l.b16 %v57
  %v342 = vunpack.c.l.b16 %v58
  %v343 = vunpack.c.l.b16 %v59
  %v344 = vunpack.c.l.b16 %v60
  %v345 = vunpack.c.l.b16 %v61
  %v346 = vunpack.c.l.b16 %v62
  %v347 = vunpack.c.l.b16 %v63
  %v348 = vunpack.c.l.b16 %v64
  %v349 = vunpack.c.l.b16 %v65
  %v350 = vunpack.c.l.b16 %v66
  %v351 = vunpack.c.l.b16 %v67
  %v352 = vunpack.c.l.b16 %v68
  %v353 = vunpack.c.l.b16 %v69
  %v354 = vunpack.c.l.b16 %v70
  %v355 = vunpack.c.l.b16 %v71
  %v356 = vunpack.c.l.b16 %v72
  %v357 = vunpack.c.l.b16 %v73
  %v358 = vunpack.c.l.b16 %v74
  %v359 = vunpack.c.l.b16 %v75
  %v360 = vunpack.c.l.b16 %v76
  %v361 = vunpack.c.l.b16 %v77
  %v362 = vunpack.c.l.b16 %v78
  %v363 = vunpack.c.l.b16 %v79
  %v364 = vunpack.c.l.b16 %v80
  %v365 = vunpack.c.l.b16 %v81
  %v366 = vunpack.c.l.b16 %v82
  %v367 = vunpack.c.l.b16 %v83
  %v368 = vunpack.c.l.b16 %v84
  %v369 = vunpack.c.l.b16 %v85
  %v370 = vunpack.c.l.b16 %v86
  %v371 = vunpack.c.l.b16 %v87
  %v372 = vunpack.c.l.b16 %v88
  %v373 = vunpack.c.l.b16 %v89
  %v374 = vunpack.c.l.b16 %v90
  %v375 = vunpack.c.l.b16 %v91
  %v376 = vunpack.c.l.b16 %v92
  %v377 = vunpack.c.l.b16 %v93
  %v378 = vunpack.c.l.b16 %v94
  %v379 = vunpack.c.l.b16 %v95
  %v380 = vunpack.c.l.b16 %v96
  %v381 = vunpack.c.l.b16 %v97
  %v382 = vunpack.c.l.b16 %v98
  %v383 = vunpack.c.l.b16 %v99
  %v384 = vunpack.c.l.b16 %v100
  %v385 = vunpack.c.l.b16 %v101
  %v386 = vunpack.c.l.b16 %v102
  %v387 = vunpack.c.l.b16 %v103
  %v388 = vunpack.c.l.b16 %v104
  %v389 = vunpack.c.l.b16 %v105
  %v390 = vunpack.c.l.b16 %v106
  %v391 = vunpack.c.l.b16 %v107
  %v392 = vunpack.c.l.b16 %v108
  %v393 = vunpack.c.l.b16 %v109
  %v394 = vunpack.c.l.b16 %v110
  %v395 = vunpack.c.l.b16 %v111
  %v396 = vunpack.c.l.b16 %v112
  %v397 = vunpack.c.l.b16 %v113
  %v398 = vunpack.c.l.b16 %v114
  %v399 = vunpack.c.l.b16 %v115
  %v400 = vunpack.c.l.b16 %v116
  %v401 = vunpack.c.l.b16 %v117
  %v402 = vunpack.c.l.b16 %v118
  %v403 = vunpack.c.l.b16 %v119
  %v404 = vunpack.c.l.b16 %v120
  %v405 = vunpack.c.l.b16 %v121
  %v406 = vunpack.c.l.b16 %v122
  %v407 = vunpack.c.l.b16 %v123
  %v408 = vunpack.c.l.b16 %v124
  %v409 = vunpack.c.l.b16 %v125
  %v410 = vunpack.c.l.b16 %v126
  %v411 = vunpack.c.l.b16 %v127
  %v412 = vunpack.c.l.b16 %v128
  %v413 = vunpack.c.l.b16 %v129
  %v414 = vunpack.c.l.b16 %v130
  %v415 = vunpack.c.l.b16 %v131
  %v416 = vunpack.c.l.b16 %v132
  %v417 = vunpack.c.l.b16 %v133
  %v418 = vunpack.c.l.b16 %v134
  %v419 = vunpack.c.l.b16 %v135
  %v420 = vunpack.c.l.b16 %v136
  %v421 = vunpack.c.l.b16 %v137
  %v422 = vunpack.c.l.b16 %v138
  %v423 = vunpack.c.l.b16 %v139
  %v424 = vunpack.c.l.b16 %v140
  %v425 = vunpack.c.l.b16 %v141
  %v426 = vunpack.c.l.b16 %v142
  %v427 = vunpack.c.l.b16 %v143
  %v428 = vunpack.c.l.b16 %v144
  %v429 = vunpack.c.l.b16 %v145
  %v430 = vunpack.c.l.b16 %v146
  %v431 = vunpack.c.l.b16 %v147
  %v432 = vunpack.c.l.b16 %v148
  %v433 = vunpack.c.l.b16 %v149
  %v434 = vunpack.c.l.b16 %v150
  %v435 = vunpack.c.l.b16 %v151
  %v436 = vpack.c.b16 %v309, %v308
  %v437 = vpack.c.b16 %v311, %v310
  %v438 = vpack.c.b16 %v313, %v312
  %v439 = vpack.c.b16 %v315, %v314
  %v440 = vpack.c.b16 %v317, %v316
  %v441 = vpack.c.b16 %v319, %v318
  %v442 = vpack.c.b16 %v321, %v320
  %v443 = vpack.c.b16 %v323, %v322
  %v444 = vpack.c.b16 %v325, %v324
  %v445 = vpack.c.b16 %v327, %v326
  %v446 = vpack.c.b16 %v329, %v328
  %v447 = vpack.c.b16 %v331, %v330
  %v448 = vpack.c.b16 %v333, %v332
  %v449 = vpack.c.b16 %v335, %v334
  %v450 = vpack.c.b16 %v337, %v336
  %v451 = vpack.c.b16 %v339, %v338
  %v452 = vpack.c.b16 %v341, %v340
  %v453 = vpack.c.b16 %v343, %v342
  %v454 = vpack.c.b16 %v345, %v344
  %v455 = vpack.c.b16 %v347, %v346
  %v456 = vpack.c.b16 %v349, %v348
  %v457 = vpack.c.b16 %v351, %v350
  %v458 = vpack.c.b16 %v353, %v352
  %v459 = vpack.c.b16 %v355, %v354
  %v460 = vpack.c.b16 %v357, %v356
  %v461 = vpack.c.b16 %v359, %v358
  %v462 = vpack.c.b16 %v361, %v360
  %v463 = vpack.c.b16 %v363, %v362
  %v464 = vpack.c.b16 %v365, %v364
  %v465 = vpack.c.b16 %v367, %v366
  %v466 = vpack.c.b16 %v369, %v368
  %v467 = vpack.c.b16 %v371, %v370
  %v468 = vpack.c.b16 %v373, %v372
  %v469 = vpack.c.b16 %v375, %v374
  %v470 = vpack.c.b16 %v377, %v376
  %v471 = vpack.c.b16 %v379, %v378
  %v472 = vpack.c.b16 %v381, %v380
  %v473 = vpack.c.b16 %v383, %v382
  %v474 = vpack.c.b16 %v385, %v384
  %v475 = vpack.c.b16 %v387, %v386
  %v476 = vpack.c.b16 %v389, %v388
  %v477 = vpack.c.b16 %v391, %v390
  %v478 = vpack.c.b16 %v393, %v392
  %v479 = vpack.c.b16 %v395, %v394
  %v480 = vpack.c.b16 %v397, %v396
  %v481 = vpack.c.b16 %v399, %v398
  %v482 = vpack.c.b16 %v401, %v400
  %v483 = vpack.c.b16 %v403, %v402
  %v484 = vpack.c.b16 %v405, %v404
  %v485 = vpack.c.b16 %v407, %v406
  %v486 = vpack.c.b16 %v409, %v408
  %v487 = vpack.c.b16 %v411, %v410
  %v488 = vpack.c.b16 %v413, %v412
  %v489 = vpack.c.b16 %v415, %v414
  %v490 = vpack.c.b16 %v417, %v416
  %v491 = vpack.c.b16 %v419, %v418
  %v492 = vpack.c.b16 %v421, %v420
  %v493 = vpack.c.b16 %v423, %v422
  %v494 = vpack.c.b16 %v425, %v424
  %v495 = vpack.c.b16 %v427, %v426
  %v496 = vpack.c.b16 %v429, %v428
  %v497 = vpack.c.b16 %v431, %v430
  %v498 = vpack.c.b16 %v433, %v432
  %v499 = vpack.c.b16 %v435, %v434
  %564 = vmatprep.subr.bf16.mxu0 0
  %565 = vmatpush1.bf16.msra.mxu0 %v436
  %566 = vmatprep.subr.bf16.mxu0 0
  %567 = vmatpush1.bf16.msra.mxu0 %v437
  %568 = vmatprep.subr.bf16.mxu0 0
  %569 = vmatpush1.bf16.msra.mxu0 %v438
  %570 = vmatprep.subr.bf16.mxu0 0
  %571 = vmatpush1.bf16.msra.mxu0 %v439
  %572 = vmatprep.subr.bf16.mxu0 0
  %573 = vmatpush1.bf16.msra.mxu0 %v440
  %574 = vmatprep.subr.bf16.mxu0 0
  %575 = vmatpush1.bf16.msra.mxu0 %v441
  %576 = vmatprep.subr.bf16.mxu0 0
  %577 = vmatpush1.bf16.msra.mxu0 %v442
  %578 = vmatprep.subr.bf16.mxu0 0
  %579 = vmatpush1.bf16.msra.mxu0 %v443
  %580 = vmatprep.subr.bf16.mxu0 0
  %581 = vmatpush1.bf16.msra.mxu0 %v444
  %582 = vmatprep.subr.bf16.mxu0 0
  %583 = vmatpush1.bf16.msra.mxu0 %v445
  %584 = vmatprep.subr.bf16.mxu0 0
  %585 = vmatpush1.bf16.msra.mxu0 %v446
  %586 = vmatprep.subr.bf16.mxu0 0
  %587 = vmatpush1.bf16.msra.mxu0 %v447
  %588 = vmatprep.subr.bf16.mxu0 0
  %589 = vmatpush1.bf16.msra.mxu0 %v448
  %590 = vmatprep.subr.bf16.mxu0 0
  %591 = vmatpush1.bf16.msra.mxu0 %v449
  %592 = vmatprep.subr.bf16.mxu0 0
  %593 = vmatpush1.bf16.msra.mxu0 %v450
  %594 = vmatprep.subr.bf16.mxu0 0
  %595 = vmatpush1.bf16.msra.mxu0 %v451
  %596 = vmatprep.mubr.bf16.mxu0 %v165
  %597 = vmatmul.mubr.bf16.gmra.mrb[0].mxu0 %v164
  %v598 = vpop.f32.mrb[0].mxu0
  %v599 = vadd.f32 0.0, %v598
  %v600 = vpop.f32.mrb[0].mxu0
  %v601 = vpop.f32.mrb[0].mxu0
  %v602 = vpop.f32.mrb[0].mxu0
  %603 = vdwg.mxu0
  %604 = vmatprep.subr.bf16.mxu0 0
  %605 = vmatpush1.bf16.msra.mxu0 %v452
  %606 = vmatprep.subr.bf16.mxu0 0
  %607 = vmatpush1.bf16.msra.mxu0 %v453
  %608 = vmatprep.subr.bf16.mxu0 0
  %609 = vmatpush1.bf16.msra.mxu0 %v454
  %610 = vmatprep.subr.bf16.mxu0 0
  %611 = vmatpush1.bf16.msra.mxu0 %v455
  %612 = vmatprep.subr.bf16.mxu0 0
  %613 = vmatpush1.bf16.msra.mxu0 %v456
  %614 = vmatprep.subr.bf16.mxu0 0
  %615 = vmatpush1.bf16.msra.mxu0 %v457
  %616 = vmatprep.subr.bf16.mxu0 0
  %617 = vmatpush1.bf16.msra.mxu0 %v458
  %618 = vmatprep.subr.bf16.mxu0 0
  %619 = vmatpush1.bf16.msra.mxu0 %v459
  %620 = vmatprep.subr.bf16.mxu0 0
  %621 = vmatpush1.bf16.msra.mxu0 %v460
  %622 = vmatprep.subr.bf16.mxu0 0
  %623 = vmatpush1.bf16.msra.mxu0 %v461
  %624 = vmatprep.subr.bf16.mxu0 0
  %625 = vmatpush1.bf16.msra.mxu0 %v462
  %626 = vmatprep.subr.bf16.mxu0 0
  %627 = vmatpush1.bf16.msra.mxu0 %v463
  %628 = vmatprep.subr.bf16.mxu0 0
  %629 = vmatpush1.bf16.msra.mxu0 %v464
  %630 = vmatprep.subr.bf16.mxu0 0
  %631 = vmatpush1.bf16.msra.mxu0 %v465
  %632 = vmatprep.subr.bf16.mxu0 0
  %633 = vmatpush1.bf16.msra.mxu0 %v466
  %634 = vmatprep.subr.bf16.mxu0 0
  %635 = vmatpush1.bf16.msra.mxu0 %v467
  %636 = vmatprep.mubr.bf16.mxu0 %v167
  %637 = vmatmul.mubr.bf16.gmra.mrb[0].mxu0 %v166
  %v638 = vpop.f32.mrb[0].mxu0
  %v639 = vadd.f32 %v599, %v638
  %v640 = vpop.f32.mrb[0].mxu0
  %v641 = vpop.f32.mrb[0].mxu0
  %v642 = vpop.f32.mrb[0].mxu0
  %643 = vdwg.mxu0
  %644 = vmatprep.subr.bf16.mxu0 0
  %645 = vmatpush1.bf16.msra.mxu0 %v468
  %646 = vmatprep.subr.bf16.mxu0 0
  %647 = vmatpush1.bf16.msra.mxu0 %v469
  %648 = vmatprep.subr.bf16.mxu0 0
  %649 = vmatpush1.bf16.msra.mxu0 %v470
  %650 = vmatprep.subr.bf16.mxu0 0
  %651 = vmatpush1.bf16.msra.mxu0 %v471
  %652 = vmatprep.subr.bf16.mxu0 0
  %653 = vmatpush1.bf16.msra.mxu0 %v472
  %654 = vmatprep.subr.bf16.mxu0 0
  %655 = vmatpush1.bf16.msra.mxu0 %v473
  %656 = vmatprep.subr.bf16.mxu0 0
  %657 = vmatpush1.bf16.msra.mxu0 %v474
  %658 = vmatprep.subr.bf16.mxu0 0
  %659 = vmatpush1.bf16.msra.mxu0 %v475
  %660 = vmatprep.subr.bf16.mxu0 0
  %661 = vmatpush1.bf16.msra.mxu0 %v476
  %662 = vmatprep.subr.bf16.mxu0 0
  %663 = vmatpush1.bf16.msra.mxu0 %v477
  %664 = vmatprep.subr.bf16.mxu0 0
  %665 = vmatpush1.bf16.msra.mxu0 %v478
  %666 = vmatprep.subr.bf16.mxu0 0
  %667 = vmatpush1.bf16.msra.mxu0 %v479
  %668 = vmatprep.subr.bf16.mxu0 0
  %669 = vmatpush1.bf16.msra.mxu0 %v480
  %670 = vmatprep.subr.bf16.mxu0 0
  %671 = vmatpush1.bf16.msra.mxu0 %v481
  %672 = vmatprep.subr.bf16.mxu0 0
  %673 = vmatpush1.bf16.msra.mxu0 %v482
  %674 = vmatprep.subr.bf16.mxu0 0
  %675 = vmatpush1.bf16.msra.mxu0 %v483
  %676 = vmatprep.mubr.bf16.mxu0 %v169
  %677 = vmatmul.mubr.bf16.gmra.mrb[0].mxu0 %v168
  %v678 = vpop.f32.mrb[0].mxu0
  %v679 = vadd.f32 %v639, %v678
  %v680 = vpop.f32.mrb[0].mxu0
  %v681 = vpop.f32.mrb[0].mxu0
  %v682 = vpop.f32.mrb[0].mxu0
  %683 = vdwg.mxu0
  %684 = vmatprep.subr.bf16.mxu0 0
  %685 = vmatpush1.bf16.msra.mxu0 %v484
  %686 = vmatprep.subr.bf16.mxu0 0
  %687 = vmatpush1.bf16.msra.mxu0 %v485
  %688 = vmatprep.subr.bf16.mxu0 0
  %689 = vmatpush1.bf16.msra.mxu0 %v486
  %690 = vmatprep.subr.bf16.mxu0 0
  %691 = vmatpush1.bf16.msra.mxu0 %v487
  %692 = vmatprep.subr.bf16.mxu0 0
  %693 = vmatpush1.bf16.msra.mxu0 %v488
  %694 = vmatprep.subr.bf16.mxu0 0
  %695 = vmatpush1.bf16.msra.mxu0 %v489
  %696 = vmatprep.subr.bf16.mxu0 0
  %697 = vmatpush1.bf16.msra.mxu0 %v490
  %698 = vmatprep.subr.bf16.mxu0 0
  %699 = vmatpush1.bf16.msra.mxu0 %v491
  %700 = vmatprep.subr.bf16.mxu0 0
  %701 = vmatpush1.bf16.msra.mxu0 %v492
  %702 = vmatprep.subr.bf16.mxu0 0
  %703 = vmatpush1.bf16.msra.mxu0 %v493
  %704 = vmatprep.subr.bf16.mxu0 0
  %705 = vmatpush1.bf16.msra.mxu0 %v494
  %706 = vmatprep.subr.bf16.mxu0 0
  %707 = vmatpush1.bf16.msra.mxu0 %v495
  %708 = vmatprep.subr.bf16.mxu0 0
  %709 = vmatpush1.bf16.msra.mxu0 %v496
  %710 = vmatprep.subr.bf16.mxu0 0
  %711 = vmatpush1.bf16.msra.mxu0 %v497
  %712 = vmatprep.subr.bf16.mxu0 0
  %713 = vmatpush1.bf16.msra.mxu0 %v498
  %714 = vmatprep.subr.bf16.mxu0 0
  %715 = vmatpush1.bf16.msra.mxu0 %v499
  %716 = vmatprep.mubr.bf16.mxu0 %v171
  %717 = vmatmul.mubr.bf16.gmra.mrb[0].mxu0 %v170
  %v718 = vpop.f32.mrb[0].mxu0
  %v719 = vadd.f32 %v679, %v718
  %v720 = vpop.f32.mrb[0].mxu0
  %v721 = vpop.f32.mrb[0].mxu0
  %v722 = vpop.f32.mrb[0].mxu0
  %723 = vdwg.mxu0
  %v724 = vadd.f32 %v19, %v719
  %725 = vst [vmem:[%s2] sm:$0xff] %v724
  // Predicated region
  $region14: #{encoder_forward.18} parent=0 // pred_check
    %p726 = pneg %p14
  $region15: #{encoder_forward.18} parent=0 // pred_check_branch
    %728 = sbr.rel (%p726) target = $region17
  $region16: #{encoder_forward.18} parent=0 // pred_region
    %v729 = vld [vmem:[%s2] sm:$0xff]
    %v730 = vrot.slane %v729, 4
    %v731 = vadd.f32 %v729, %v730
    %v732 = vrot.slane %v731, 2
    %v733 = vadd.f32 %v731, %v732
    %v734 = vrot.slane %v733, 1
    %v735 = vadd.f32 %v733, %v734
    %v736 = vmul.f32 %v729, %v729
    %v737 = vrot.slane %v736, 4
    %v738 = vadd.f32 %v736, %v737
    %v739 = vrot.slane %v738, 2
    %v740 = vadd.f32 %v738, %v739
    %v741 = vrot.slane %v740, 1
    %v742 = vadd.f32 %v740, %v741
    %v743 = vlaneseq
    %v744 = vshrl.u32 %v743, 7
    %vm745 = vcmp.eq.s32.totalorder %v744, 0
    %vm746 = vcmp.eq.s32.totalorder %v744, 1
    %v747 = vsel %vm746, %v742, 0.0
    %v748 = vsel %vm745, %v735, %v747
    %749 = vst [vmem:[%s3] sm:$0xff] %v748
  $region17: #{encoder_forward.18} parent=0 // pred_fallthru
    _
  // Predicated region
  $region18: #{encoder_forward.18} parent=0 // pred_check
    _
  $region19: #{encoder_forward.18} parent=0 // pred_check_branch
    %751 = sbr.rel (0) target = $region21
  $region20: #{encoder_forward.18} parent=0 // pred_region
    _
  $region21: #{encoder_forward.18} parent=0 // pred_fallthru
    _
  // Predicated region
  $region22: #{encoder_forward.18} parent=0 // pred_check
    _
  $region23: #{encoder_forward.18} parent=0 // pred_check_branch
    %753 = sbr.rel (0) target = $region25
  $region24: #{encoder_forward.18} parent=0 // pred_region
    _
  $region25: #{encoder_forward.18} parent=0 // pred_fallthru
    _
  // Predicated region
  $region26: #{encoder_forward.18} parent=0 // pred_check
    _
  $region27: #{encoder_forward.18} parent=0 // pred_check_branch
    %755 = sbr.rel (0) target = $region29
  $region28: #{encoder_forward.18} parent=0 // pred_region
    _
  $region29: #{encoder_forward.18} parent=0 // pred_fallthru
    _
  // Predicated region
  $region30: #{encoder_forward.18} parent=0 // pred_check
    _
  $region31: #{encoder_forward.18} parent=0 // pred_check_branch
    %757 = sbr.rel (0) target = $region33
  $region32: #{encoder_forward.18} parent=0 // pred_region
    _
  $region33: #{encoder_forward.18} parent=0 // pred_fallthru
    _

</llo_original>
